<compile_context>
chip_gen: v5e
topology: v5e:2x2
jax: 0.10.0
libtpu: 0.0.40
codegen_flags: <defaults>
</compile_context>

<pallas_src>
import functools

import numpy as np
import jax
import jax.numpy as jnp
from jax.experimental import pallas as pl
from jax.experimental.pallas import tpu as pltpu


# ----------------------------------------------------------------------------
# In-kernel helpers
# ----------------------------------------------------------------------------
def _median9(p):
    """Exact elementwise median of 9 planes: sort the three triples, then
    med3(max-of-mins, med-of-meds, min-of-maxes) (Smith's 19-comparator
    median-of-9 network); ~30 full-plane min/max ops."""
    def sort3(a, b, c):
        lo_ab = jnp.minimum(a, b)
        hi_ab = jnp.maximum(a, b)
        lo = jnp.minimum(lo_ab, c)
        hi = jnp.maximum(hi_ab, c)
        mid = jnp.maximum(lo_ab, jnp.minimum(hi_ab, c))
        return lo, mid, hi

    def med3(a, b, c):
        return jnp.maximum(jnp.minimum(a, b),
                           jnp.minimum(jnp.maximum(a, b), c))

    lo0, m0, hi0 = sort3(p[0], p[1], p[2])
    lo1, m1, hi1 = sort3(p[3], p[4], p[5])
    lo2, m2, hi2 = sort3(p[6], p[7], p[8])
    max_lo = jnp.maximum(jnp.maximum(lo0, lo1), lo2)
    min_hi = jnp.minimum(jnp.minimum(hi0, hi1), hi2)
    med_m = med3(m0, m1, m2)
    return med3(max_lo, med_m, min_hi)


# ----------------------------------------------------------------------------
# Fused DWDN kernel (one batch element per grid step)
# ----------------------------------------------------------------------------
def _dwdn_kernel(x_ref, psf_ref, *refs, const_idx, Hp, Wp):
    out_ref = refs[-1]
    f32 = jnp.float32

    def C(name):
        return refs[const_idx[name]][...]

    def dot(a, b):
        return jnp.dot(a, b, preferred_element_type=f32)

    x2 = x_ref[0].astype(f32)            # (H, nf*W)   channel-in-lanes slab
    psf = psf_ref[0].astype(f32)         # (Hp, Wp)

    # ---- 1x1 reduce conv: one MXU matmul (kron'd weights) -------------------
    wf = dot(x2, C("Mr")) + C("br_slab")                 # (H, nf_r*W)

    # ---- OTF of the blur kernel (half spectrum, pre-tiled along lanes) ------
    kt_re = dot(C("fhh_re"), psf)                        # (Hr, Wp)
    kt_im = dot(C("fhh_im"), psf)
    p1 = dot(kt_re + kt_im, C("FwTile_sum"))             # Gauss 3-mult complex
    p2 = dot(kt_re, C("FwTile_re"))
    p3 = dot(kt_im, C("FwTile_im"))
    k_re = p2 - p3                                       # (Hr, nf_r*Wp)
    k_im = p1 - p2 - p3
    k_abs2 = k_re * k_re + k_im * k_im

    # ---- median / NSR statistics (pads as one-hot matmuls, lane-dense) ------
    colwin = [dot(wf, C(f"RsWtBlk{dx}")) for dx in range(3)]
    planes = [dot(C(f"RsH{dy}"), colwin[dx])
              for dy in range(3) for dx in range(3)]     # 9 x (Hp, nf_r*Wp)
    padded = planes[4]                                   # (dy=1,dx=1) == w_pad
    med = _median9(planes)

    sel = C("SelCol")                                    # (nf_r*Wp, nf_r)
    diff = med - padded
    s1 = dot(jnp.sum(diff, axis=0, keepdims=True), sel)
    s2 = dot(jnp.sum(diff * diff, axis=0, keepdims=True), sel)
    b1 = dot(jnp.sum(padded, axis=0, keepdims=True), sel)
    b2 = dot(jnp.sum(padded * padded, axis=0, keepdims=True), sel)

    # NOTE: reference quirk — normalises by shape[2]**2 (= Hp*Hp) even if Hp!=Wp
    inv_num = 1.0 / float(Hp * Hp)
    inv_nm1 = 1.0 / float(Hp * Hp - 1)
    cnt = float(Hp * Wp)
    mean_n = s1 * inv_num
    var_n = (s2 - 2.0 * mean_n * s1 + cnt * mean_n * mean_n) * inv_nm1
    mean_b = b1 * inv_num
    var_s2 = (b2 - 2.0 * mean_b * b1 + cnt * mean_b * mean_b) * inv_nm1
    # nsr = var_n / sqrt(var_s2) * 8/3/10 ; no epsilon guard (matches reference)
    nsr = var_n * (8.0 / 3.0 / 10.0) * jax.lax.rsqrt(var_s2)     # (1, nf_r)
    nsr_lane = dot(nsr, C("ExpandSel"))                          # (1, nf_r*Wp)

    # ---- forward DFT of replicate-padded features (pad folded, RFFT rows) ---
    t_re = dot(C("fhs_re"), wf)                          # (Hr, nf_r*W)
    t_im = dot(C("fhs_im"), wf)
    q1 = dot(t_re + t_im, C("FwstBlk_sum"))              # Gauss 3-mult complex
    q2 = dot(t_re, C("FwstBlk_re"))
    q3 = dot(t_im, C("FwstBlk_im"))
    x_re = q2 - q3                                       # (Hr, nf_r*Wp)
    x_im = q1 - q2 - q3

    # ---- Wiener filter on lane-dense half-spectrum slabs ---------------------
    den = k_abs2 + nsr_lane
    inv = pl.reciprocal(den, approx=True)                # EUP slot
    inv = inv * (2.0 - den * inv)                        # one Newton refinement
    ik_re = k_re * inv
    ik_im = -k_im * inv
    d_re = ik_re * x_re - ik_im * x_im
    d_im = ik_re * x_im + ik_im * x_re

    # ---- crop + inverse DFT (RFFT conjugate-pair weights folded into Gh) ----
    r1 = dot(C("Gh_sum"), d_re + d_im)                   # Gauss 3-mult complex
    r2 = dot(C("Gh_re"), d_re)
    r3 = dot(C("Gh_im"), d_im)
    b_re = r2 - r3                                       # (H, nf_r*Wp)
    b_im = r1 - r2 - r3
    clear = dot(b_re, C("GwtBlk_re")) - dot(b_im, C("GwtBlk_im"))  # (H, nf_r*W)

    # ---- 1x1 expand conv: one MXU matmul, lane-dense (H, nf*W) store --------
    out_ref[0] = (dot(clear, C("Me")) + C("be_slab")).astype(out_ref.dtype)


# ----------------------------------------------------------------------------
# Host-side constants (pad selectors, DFT matrices, kron'd conv weights)
# ----------------------------------------------------------------------------
def _dwdn_constants(H, W, ks, nf, nf_r, wr, br, we, be):
    Hp, Wp = H + 2 * ks, W + 2 * ks
    Hr = Hp // 2 + 1
    f32 = np.float32
    c = {}

    # -- pad selectors (one-hot) ----------------------------------------------
    def rep_idx(P, L):
        return np.clip(np.arange(P) - ks, 0, L - 1)

    Sh = np.eye(H, dtype=f32)[rep_idx(Hp, H)]          # (Hp, H) replicate rows
    Sw = np.eye(W, dtype=f32)[rep_idx(Wp, W)]          # (Wp, W) replicate cols

    def rep_refl_idx(P, L):
        rep = rep_idx(P, L)
        refl = np.concatenate(([1], np.arange(P), [P - 2]))
        return rep[refl]                               # replicate(ks) o reflect(1)

    rsH = np.eye(H, dtype=f32)[rep_refl_idx(Hp, H)]    # (Hp+2, H)
    rsW = np.eye(W, dtype=f32)[rep_refl_idx(Wp, W)]    # (Wp+2, W)

    eye_c = np.eye(nf_r, dtype=f32)
    for d in range(3):                                 # 3x3 median window shifts
        c[f"RsH{d}"] = rsH[d:d + Hp, :]                          # (Hp, H)
        c[f"RsWtBlk{d}"] = np.kron(eye_c, rsW[d:d + Wp, :].T)    # (nf_r*W, nf_r*Wp)

    # -- forward DFT (half-spectrum rows; inputs are real) ---------------------
    def dft(nrows, ncols, period):
        r = np.arange(nrows)[:, None].astype(np.float64)
        k = np.arange(ncols)[None, :].astype(np.float64)
        ang = -2.0 * np.pi * r * k / period
        return np.cos(ang).astype(f32), np.sin(ang).astype(f32)

    fhh_re, fhh_im = dft(Hr, Hp, Hp)                   # (Hr, Hp)
    fw_re, fw_im = dft(Wp, Wp, Wp)                     # (Wp, Wp)

    c["fhh_re"], c["fhh_im"] = fhh_re, fhh_im
    c["fhs_re"], c["fhs_im"] = fhh_re @ Sh, fhh_im @ Sh          # pad folded

    fwst_re, fwst_im = (fw_re @ Sw).T, (fw_im @ Sw).T            # (W, Wp)
    c["FwstBlk_re"] = np.kron(eye_c, fwst_re)
    c["FwstBlk_im"] = np.kron(eye_c, fwst_im)
    c["FwstBlk_sum"] = c["FwstBlk_re"] + c["FwstBlk_im"]

    c["FwTile_re"] = np.tile(fw_re.T, (1, nf_r))                 # (Wp, nf_r*Wp)
    c["FwTile_im"] = np.tile(fw_im.T, (1, nf_r))
    c["FwTile_sum"] = c["FwTile_re"] + c["FwTile_im"]

    # -- inverse DFT: crop, 1/n and RFFT conjugate-pair weights folded ---------
    cu = np.full((Hr,), 2.0, dtype=np.float64)
    cu[0] = 1.0
    if Hp % 2 == 0:
        cu[-1] = 1.0
    hh = np.arange(ks, ks + H)[:, None].astype(np.float64)
    uu = np.arange(Hr)[None, :].astype(np.float64)
    ang_h = 2.0 * np.pi * hh * uu / Hp
    c["Gh_re"] = (np.cos(ang_h) * cu / Hp).astype(f32)           # (H, Hr)
    c["Gh_im"] = (np.sin(ang_h) * cu / Hp).astype(f32)
    c["Gh_sum"] = c["Gh_re"] + c["Gh_im"]

    vv = np.arange(Wp)[:, None].astype(np.float64)
    ww = np.arange(ks, ks + W)[None, :].astype(np.float64)
    ang_w = 2.0 * np.pi * vv * ww / Wp
    gwt_re = (np.cos(ang_w) / Wp).astype(f32)                    # (Wp, W)
    gwt_im = (np.sin(ang_w) / Wp).astype(f32)
    c["GwtBlk_re"] = np.kron(eye_c, gwt_re)                      # (nf_r*Wp, nf_r*W)
    c["GwtBlk_im"] = np.kron(eye_c, gwt_im)

    # -- per-channel reduction / broadcast selectors ---------------------------
    c["SelCol"] = np.kron(eye_c, np.ones((Wp, 1), f32))          # (nf_r*Wp, nf_r)
    c["ExpandSel"] = np.kron(eye_c, np.ones((1, Wp), f32))       # (nf_r, nf_r*Wp)

    # -- 1x1 convs as kron'd MXU matmuls (weight-dependent) --------------------
    wr = jnp.asarray(wr, jnp.float32)                  # (nf_r, nf)
    we = jnp.asarray(we, jnp.float32)                  # (nf, nf_r)
    br = jnp.asarray(br, jnp.float32)
    be = jnp.asarray(be, jnp.float32)
    eye_w = jnp.eye(W, dtype=jnp.float32)
    c["Mr"] = jnp.kron(wr.T, eye_w)                              # (nf*W, nf_r*W)
    c["Me"] = jnp.kron(we.T, eye_w)                              # (nf_r*W, nf*W)
    c["br_slab"] = jnp.kron(br, jnp.ones((W,), jnp.float32))[None, :]
    c["be_slab"] = jnp.kron(be, jnp.ones((W,), jnp.float32))[None, :]
    return c


def _make_psf(kernel, Hp, Wp):
    """convert_psf2otf's circular shift: place kernel with its centre at (0,0)."""
    N, ks, _ = kernel.shape
    centre = ks // 2 + 1
    base = jnp.zeros((N, Hp, Wp), kernel.dtype).at[:, :ks, :ks].set(kernel)
    return jnp.roll(base, shift=(-(centre - 1), -(centre - 1)), axis=(1, 2))


# ----------------------------------------------------------------------------
# Wrapper
# ----------------------------------------------------------------------------
def dwdn_forward(x, kernel, params):
    """x: (N, nf, H, W) f32 (NCHW, like PyTorch); kernel: (N, ks, ks) f32."""
    N, nf, H, W = x.shape
    ks = kernel.shape[-1]
    nf_r = params["w_reduce"].shape[0]
    Hp, Wp = H + 2 * ks, W + 2 * ks

    consts = _dwdn_constants(
        H, W, ks, nf, nf_r,
        params["w_reduce"], params["b_reduce"],
        params["w_expand"], params["b_expand"])
    names = sorted(consts)
    const_arrays = [jnp.asarray(consts[k], jnp.float32) for k in names]
    const_idx = {k: i for i, k in enumerate(names)}

    # channel-in-lanes slab layout (layout plumbing only, done in the wrapper)
    x2 = jnp.transpose(x, (0, 2, 1, 3)).reshape(N, H, nf * W)
    psf = _make_psf(kernel.astype(jnp.float32), Hp, Wp)

    kernel_fn = functools.partial(_dwdn_kernel, const_idx=const_idx,
                                  Hp=Hp, Wp=Wp)

    in_specs = [pl.BlockSpec((1, H, nf * W), lambda n: (n, 0, 0)),   # x slab
                pl.BlockSpec((1, Hp, Wp), lambda n: (n, 0, 0))]      # psf
    for a in const_arrays:                                           # 2-D consts
        in_specs.append(pl.BlockSpec(a.shape, lambda n: (0, 0)))

    out2 = pl.pallas_call(
        kernel_fn,
        out_shape=jax.ShapeDtypeStruct((N, H, nf * W), x.dtype),
        grid=(N,),
        in_specs=in_specs,
        out_specs=pl.BlockSpec((1, H, nf * W), lambda n: (n, 0, 0)),
        compiler_params=pltpu.CompilerParams(
            dimension_semantics=("parallel",),
            vmem_limit_bytes=32 * 1024 * 1024),
    )(x2, psf, *const_arrays)

    return jnp.transpose(out2.reshape(N, H, nf, W), (0, 2, 1, 3))


# ----------------------------------------------------------------------------
# Pure-JAX reference (independent path: jnp.fft / jnp.median), for checking.
# ----------------------------------------------------------------------------
def dwdn_reference(x, kernel, params):
    N, nf, H, W = x.shape
    ks = kernel.shape[-1]
    Hp, Wp = H + 2 * ks, W + 2 * ks
    hp = jax.lax.Precision.HIGHEST

    wf = jnp.einsum("ok,nkhw->nohw", params["w_reduce"], x, precision=hp)
    wf = wf + params["b_reduce"][None, :, None, None]
    fp = jnp.pad(wf, ((0, 0), (0, 0), (ks, ks), (ks, ks)), mode="edge")

    otf = jnp.fft.fft2(_make_psf(kernel.astype(jnp.float32), Hp, Wp))

    chans = []
    for c in range(wf.shape[1]):
        blur = fp[:, c]                                         # (N, Hp, Wp)
        rp = jnp.pad(blur, ((0, 0), (1, 1), (1, 1)), mode="reflect")
        wins = jnp.stack([rp[:, dy:dy + Hp, dx:dx + Wp]
                          for dy in range(3) for dx in range(3)], axis=-1)
        med = jnp.median(wins, axis=-1)
        diff = med - blur
        num = Hp * Hp
        mean_n = jnp.sum(diff, axis=(1, 2), keepdims=True) / num
        var_n = jnp.sum((diff - mean_n) ** 2, axis=(1, 2),
                        keepdims=True) / (num - 1)
        mean_b = jnp.sum(blur, axis=(1, 2), keepdims=True) / num
        var_s = jnp.sqrt(jnp.sum((blur - mean_b) ** 2, axis=(1, 2),
                                 keepdims=True) / (num - 1))
        nsr = var_n / var_s * 8.0 / 3.0 / 10.0
        inv_den = otf.real ** 2 + otf.imag ** 2 + nsr
        inv_k = jnp.conj(otf) / inv_den
        deblur = jnp.real(jnp.fft.ifft2(inv_k * jnp.fft.fft2(blur)))
        chans.append(deblur[:, ks:-ks, ks:-ks])

    clear = jnp.stack(chans, axis=1)                            # (N, nf_r, H, W)
    out = jnp.einsum("oc,nchw->nohw", params["w_expand"], clear, precision=hp)
    return out + params["b_expand"][None, :, None, None]


# ----------------------------------------------------------------------------
if __name__ == "__main__":
    N, nf, H, W = 2, 16, 16, 16
    reduction, ks = 4, 5
    nf_r = nf // reduction

    key = jax.random.PRNGKey(0)
    kx, kk, kw1, kb1, kw2, kb2 = jax.random.split(key, 6)

    x = jax.random.normal(kx, (N, nf, H, W), jnp.float32)
    blur = jax.random.uniform(kk, (N, ks, ks), jnp.float32, 0.1, 1.0)
    blur = blur / jnp.sum(blur, axis=(1, 2), keepdims=True)     # normalised PSF

    params = {
        "w_reduce": jax.random.normal(kw1, (nf_r, nf), jnp.float32) / np.sqrt(nf),
        "b_reduce": 0.05 * jax.random.normal(kb1, (nf_r,), jnp.float32),
        "w_expand": jax.random.normal(kw2, (nf, nf_r), jnp.float32) / np.sqrt(nf_r),
        "b_expand": 0.05 * jax.random.normal(kb2, (nf,), jnp.float32),
    }

    out = dwdn_forward(x, blur, params)
    jax.block_until_ready(out)
    assert out.shape == (N, nf, H, W)

    ref = dwdn_reference(x, blur, params)
    rel_err = jnp.linalg.norm(out - ref) / jnp.linalg.norm(ref)
    assert float(rel_err) < 2e-2, f"relative L2 error too large: {rel_err}"

    print("KERNEL_OK")
</pallas_src>

<mosaic_0001>
module attributes {stable_mosaic.version = 11 : i64} {
  func.func @_dwdn_kernel(%arg0: i32, %arg1: memref<1x16x256xf32, #tpu.memory_space<vmem>>, %arg2: memref<1x26x26xf32, #tpu.memory_space<vmem>>, %arg3: memref<4x104xf32, #tpu.memory_space<vmem>>, %arg4: memref<26x104xf32, #tpu.memory_space<vmem>>, %arg5: memref<26x104xf32, #tpu.memory_space<vmem>>, %arg6: memref<26x104xf32, #tpu.memory_space<vmem>>, %arg7: memref<64x104xf32, #tpu.memory_space<vmem>>, %arg8: memref<64x104xf32, #tpu.memory_space<vmem>>, %arg9: memref<64x104xf32, #tpu.memory_space<vmem>>, %arg10: memref<16x14xf32, #tpu.memory_space<vmem>>, %arg11: memref<16x14xf32, #tpu.memory_space<vmem>>, %arg12: memref<16x14xf32, #tpu.memory_space<vmem>>, %arg13: memref<104x64xf32, #tpu.memory_space<vmem>>, %arg14: memref<104x64xf32, #tpu.memory_space<vmem>>, %arg15: memref<64x256xf32, #tpu.memory_space<vmem>>, %arg16: memref<256x64xf32, #tpu.memory_space<vmem>>, %arg17: memref<26x16xf32, #tpu.memory_space<vmem>>, %arg18: memref<26x16xf32, #tpu.memory_space<vmem>>, %arg19: memref<26x16xf32, #tpu.memory_space<vmem>>, %arg20: memref<64x104xf32, #tpu.memory_space<vmem>>, %arg21: memref<64x104xf32, #tpu.memory_space<vmem>>, %arg22: memref<64x104xf32, #tpu.memory_space<vmem>>, %arg23: memref<104x4xf32, #tpu.memory_space<vmem>>, %arg24: memref<1x256xf32, #tpu.memory_space<vmem>>, %arg25: memref<1x64xf32, #tpu.memory_space<vmem>>, %arg26: memref<14x26xf32, #tpu.memory_space<vmem>>, %arg27: memref<14x26xf32, #tpu.memory_space<vmem>>, %arg28: memref<14x16xf32, #tpu.memory_space<vmem>>, %arg29: memref<14x16xf32, #tpu.memory_space<vmem>>, %arg30: memref<1x16x256xf32, #tpu.memory_space<vmem>>) attributes {dimension_semantics = [#tpu.dimension_semantics<parallel>], iteration_bounds = array<i64: 2>, scalar_prefetch = 0 : i64, scratch_operands = 0 : i64, tpu.core_type = #tpu.core_type<tc>, window_params = [{transform_indices = @transform_0, window_bounds = array<i64: 1, 16, 256>}, {transform_indices = @transform_1, window_bounds = array<i64: 1, 26, 26>}, {pipeline_mode = #tpu.pipeline_mode<synchronous>, transform_indices = @transform_2, window_bounds = array<i64: 4, 104>}, {pipeline_mode = #tpu.pipeline_mode<synchronous>, transform_indices = @transform_3, window_bounds = array<i64: 26, 104>}, {pipeline_mode = #tpu.pipeline_mode<synchronous>, transform_indices = @transform_4, window_bounds = array<i64: 26, 104>}, {pipeline_mode = #tpu.pipeline_mode<synchronous>, transform_indices = @transform_5, window_bounds = array<i64: 26, 104>}, {pipeline_mode = #tpu.pipeline_mode<synchronous>, transform_indices = @transform_6, window_bounds = array<i64: 64, 104>}, {pipeline_mode = #tpu.pipeline_mode<synchronous>, transform_indices = @transform_7, window_bounds = array<i64: 64, 104>}, {pipeline_mode = #tpu.pipeline_mode<synchronous>, transform_indices = @transform_8, window_bounds = array<i64: 64, 104>}, {pipeline_mode = #tpu.pipeline_mode<synchronous>, transform_indices = @transform_9, window_bounds = array<i64: 16, 14>}, {pipeline_mode = #tpu.pipeline_mode<synchronous>, transform_indices = @transform_10, window_bounds = array<i64: 16, 14>}, {pipeline_mode = #tpu.pipeline_mode<synchronous>, transform_indices = @transform_11, window_bounds = array<i64: 16, 14>}, {pipeline_mode = #tpu.pipeline_mode<synchronous>, transform_indices = @transform_12, window_bounds = array<i64: 104, 64>}, {pipeline_mode = #tpu.pipeline_mode<synchronous>, transform_indices = @transform_13, window_bounds = array<i64: 104, 64>}, {pipeline_mode = #tpu.pipeline_mode<synchronous>, transform_indices = @transform_14, window_bounds = array<i64: 64, 256>}, {pipeline_mode = #tpu.pipeline_mode<synchronous>, transform_indices = @transform_15, window_bounds = array<i64: 256, 64>}, {pipeline_mode = #tpu.pipeline_mode<synchronous>, transform_indices = @transform_16, window_bounds = array<i64: 26, 16>}, {pipeline_mode = #tpu.pipeline_mode<synchronous>, transform_indices = @transform_17, window_bounds = array<i64: 26, 16>}, {pipeline_mode = #tpu.pipeline_mode<synchronous>, transform_indices = @transform_18, window_bounds = array<i64: 26, 16>}, {pipeline_mode = #tpu.pipeline_mode<synchronous>, transform_indices = @transform_19, window_bounds = array<i64: 64, 104>}, {pipeline_mode = #tpu.pipeline_mode<synchronous>, transform_indices = @transform_20, window_bounds = array<i64: 64, 104>}, {pipeline_mode = #tpu.pipeline_mode<synchronous>, transform_indices = @transform_21, window_bounds = array<i64: 64, 104>}, {pipeline_mode = #tpu.pipeline_mode<synchronous>, transform_indices = @transform_22, window_bounds = array<i64: 104, 4>}, {pipeline_mode = #tpu.pipeline_mode<synchronous>, transform_indices = @transform_23, window_bounds = array<i64: 1, 256>}, {pipeline_mode = #tpu.pipeline_mode<synchronous>, transform_indices = @transform_24, window_bounds = array<i64: 1, 64>}, {pipeline_mode = #tpu.pipeline_mode<synchronous>, transform_indices = @transform_25, window_bounds = array<i64: 14, 26>}, {pipeline_mode = #tpu.pipeline_mode<synchronous>, transform_indices = @transform_26, window_bounds = array<i64: 14, 26>}, {pipeline_mode = #tpu.pipeline_mode<synchronous>, transform_indices = @transform_27, window_bounds = array<i64: 14, 16>}, {pipeline_mode = #tpu.pipeline_mode<synchronous>, transform_indices = @transform_28, window_bounds = array<i64: 14, 16>}, {transform_indices = @transform_29, window_bounds = array<i64: 1, 16, 256>}]} {
    %c0 = arith.constant 0 : index
    %c0_0 = arith.constant 0 : index
    %c0_1 = arith.constant 0 : index
    %0 = vector.load %arg1[%c0, %c0_0, %c0_1] : memref<1x16x256xf32, #tpu.memory_space<vmem>>, vector<1x16x256xf32>
    %1 = vector.shape_cast %0 : vector<1x16x256xf32> to vector<16x256xf32>
    %c0_2 = arith.constant 0 : index
    %c0_3 = arith.constant 0 : index
    %c0_4 = arith.constant 0 : index
    %2 = vector.load %arg2[%c0_2, %c0_3, %c0_4] : memref<1x26x26xf32, #tpu.memory_space<vmem>>, vector<1x26x26xf32>
    %3 = vector.shape_cast %2 : vector<1x26x26xf32> to vector<26x26xf32>
    %c0_5 = arith.constant 0 : index
    %c0_6 = arith.constant 0 : index
    %4 = vector.load %arg16[%c0_5, %c0_6] : memref<256x64xf32, #tpu.memory_space<vmem>>, vector<256x64xf32>
    %cst = arith.constant dense<0.000000e+00> : vector<16x64xf32>
    %5 = tpu.matmul %1, %4, %cst {dimension_numbers = #tpu.dot_dimension_numbers<[1], [0], [0], [1], [0, 0, 1, 1], [], []>} : vector<16x256xf32>, vector<256x64xf32>, vector<16x64xf32> -> vector<16x64xf32>
    %c0_7 = arith.constant 0 : index
    %c0_8 = arith.constant 0 : index
    %6 = vector.load %arg25[%c0_7, %c0_8] : memref<1x64xf32, #tpu.memory_space<vmem>>, vector<1x64xf32>
    %7 = vector.broadcast %6 : vector<1x64xf32> to vector<16x64xf32>
    %8 = arith.addf %5, %7 : vector<16x64xf32>
    %c0_9 = arith.constant 0 : index
    %c0_10 = arith.constant 0 : index
    %9 = vector.load %arg27[%c0_9, %c0_10] : memref<14x26xf32, #tpu.memory_space<vmem>>, vector<14x26xf32>
    %cst_11 = arith.constant dense<0.000000e+00> : vector<14x26xf32>
    %10 = tpu.matmul %9, %3, %cst_11 {dimension_numbers = #tpu.dot_dimension_numbers<[1], [0], [0], [1], [0, 0, 1, 1], [], []>} : vector<14x26xf32>, vector<26x26xf32>, vector<14x26xf32> -> vector<14x26xf32>
    %c0_12 = arith.constant 0 : index
    %c0_13 = arith.constant 0 : index
    %11 = vector.load %arg26[%c0_12, %c0_13] : memref<14x26xf32, #tpu.memory_space<vmem>>, vector<14x26xf32>
    %cst_14 = arith.constant dense<0.000000e+00> : vector<14x26xf32>
    %12 = tpu.matmul %11, %3, %cst_14 {dimension_numbers = #tpu.dot_dimension_numbers<[1], [0], [0], [1], [0, 0, 1, 1], [], []>} : vector<14x26xf32>, vector<26x26xf32>, vector<14x26xf32> -> vector<14x26xf32>
    %13 = arith.addf %10, %12 : vector<14x26xf32>
    %c0_15 = arith.constant 0 : index
    %c0_16 = arith.constant 0 : index
    %14 = vector.load %arg6[%c0_15, %c0_16] : memref<26x104xf32, #tpu.memory_space<vmem>>, vector<26x104xf32>
    %cst_17 = arith.constant dense<0.000000e+00> : vector<14x104xf32>
    %15 = tpu.matmul %13, %14, %cst_17 {dimension_numbers = #tpu.dot_dimension_numbers<[1], [0], [0], [1], [0, 0, 1, 1], [], []>} : vector<14x26xf32>, vector<26x104xf32>, vector<14x104xf32> -> vector<14x104xf32>
    %c0_18 = arith.constant 0 : index
    %c0_19 = arith.constant 0 : index
    %16 = vector.load %arg5[%c0_18, %c0_19] : memref<26x104xf32, #tpu.memory_space<vmem>>, vector<26x104xf32>
    %cst_20 = arith.constant dense<0.000000e+00> : vector<14x104xf32>
    %17 = tpu.matmul %10, %16, %cst_20 {dimension_numbers = #tpu.dot_dimension_numbers<[1], [0], [0], [1], [0, 0, 1, 1], [], []>} : vector<14x26xf32>, vector<26x104xf32>, vector<14x104xf32> -> vector<14x104xf32>
    %c0_21 = arith.constant 0 : index
    %c0_22 = arith.constant 0 : index
    %18 = vector.load %arg4[%c0_21, %c0_22] : memref<26x104xf32, #tpu.memory_space<vmem>>, vector<26x104xf32>
    %cst_23 = arith.constant dense<0.000000e+00> : vector<14x104xf32>
    %19 = tpu.matmul %12, %18, %cst_23 {dimension_numbers = #tpu.dot_dimension_numbers<[1], [0], [0], [1], [0, 0, 1, 1], [], []>} : vector<14x26xf32>, vector<26x104xf32>, vector<14x104xf32> -> vector<14x104xf32>
    %20 = arith.subf %17, %19 : vector<14x104xf32>
    %21 = arith.subf %15, %17 : vector<14x104xf32>
    %22 = arith.subf %21, %19 : vector<14x104xf32>
    %23 = arith.mulf %20, %20 : vector<14x104xf32>
    %24 = arith.mulf %22, %22 : vector<14x104xf32>
    %25 = arith.addf %23, %24 : vector<14x104xf32>
    %c0_24 = arith.constant 0 : index
    %c0_25 = arith.constant 0 : index
    %26 = vector.load %arg20[%c0_24, %c0_25] : memref<64x104xf32, #tpu.memory_space<vmem>>, vector<64x104xf32>
    %cst_26 = arith.constant dense<0.000000e+00> : vector<16x104xf32>
    %27 = tpu.matmul %8, %26, %cst_26 {dimension_numbers = #tpu.dot_dimension_numbers<[1], [0], [0], [1], [0, 0, 1, 1], [], []>} : vector<16x64xf32>, vector<64x104xf32>, vector<16x104xf32> -> vector<16x104xf32>
    %c0_27 = arith.constant 0 : index
    %c0_28 = arith.constant 0 : index
    %28 = vector.load %arg21[%c0_27, %c0_28] : memref<64x104xf32, #tpu.memory_space<vmem>>, vector<64x104xf32>
    %cst_29 = arith.constant dense<0.000000e+00> : vector<16x104xf32>
    %29 = tpu.matmul %8, %28, %cst_29 {dimension_numbers = #tpu.dot_dimension_numbers<[1], [0], [0], [1], [0, 0, 1, 1], [], []>} : vector<16x64xf32>, vector<64x104xf32>, vector<16x104xf32> -> vector<16x104xf32>
    %c0_30 = arith.constant 0 : index
    %c0_31 = arith.constant 0 : index
    %30 = vector.load %arg22[%c0_30, %c0_31] : memref<64x104xf32, #tpu.memory_space<vmem>>, vector<64x104xf32>
    %cst_32 = arith.constant dense<0.000000e+00> : vector<16x104xf32>
    %31 = tpu.matmul %8, %30, %cst_32 {dimension_numbers = #tpu.dot_dimension_numbers<[1], [0], [0], [1], [0, 0, 1, 1], [], []>} : vector<16x64xf32>, vector<64x104xf32>, vector<16x104xf32> -> vector<16x104xf32>
    %c0_33 = arith.constant 0 : index
    %c0_34 = arith.constant 0 : index
    %32 = vector.load %arg17[%c0_33, %c0_34] : memref<26x16xf32, #tpu.memory_space<vmem>>, vector<26x16xf32>
    %cst_35 = arith.constant dense<0.000000e+00> : vector<26x104xf32>
    %33 = tpu.matmul %32, %27, %cst_35 {dimension_numbers = #tpu.dot_dimension_numbers<[1], [0], [0], [1], [0, 0, 1, 1], [], []>} : vector<26x16xf32>, vector<16x104xf32>, vector<26x104xf32> -> vector<26x104xf32>
    %c0_36 = arith.constant 0 : index
    %c0_37 = arith.constant 0 : index
    %34 = vector.load %arg17[%c0_36, %c0_37] : memref<26x16xf32, #tpu.memory_space<vmem>>, vector<26x16xf32>
    %cst_38 = arith.constant dense<0.000000e+00> : vector<26x104xf32>
    %35 = tpu.matmul %34, %29, %cst_38 {dimension_numbers = #tpu.dot_dimension_numbers<[1], [0], [0], [1], [0, 0, 1, 1], [], []>} : vector<26x16xf32>, vector<16x104xf32>, vector<26x104xf32> -> vector<26x104xf32>
    %c0_39 = arith.constant 0 : index
    %c0_40 = arith.constant 0 : index
    %36 = vector.load %arg17[%c0_39, %c0_40] : memref<26x16xf32, #tpu.memory_space<vmem>>, vector<26x16xf32>
    %cst_41 = arith.constant dense<0.000000e+00> : vector<26x104xf32>
    %37 = tpu.matmul %36, %31, %cst_41 {dimension_numbers = #tpu.dot_dimension_numbers<[1], [0], [0], [1], [0, 0, 1, 1], [], []>} : vector<26x16xf32>, vector<16x104xf32>, vector<26x104xf32> -> vector<26x104xf32>
    %c0_42 = arith.constant 0 : index
    %c0_43 = arith.constant 0 : index
    %38 = vector.load %arg18[%c0_42, %c0_43] : memref<26x16xf32, #tpu.memory_space<vmem>>, vector<26x16xf32>
    %cst_44 = arith.constant dense<0.000000e+00> : vector<26x104xf32>
    %39 = tpu.matmul %38, %27, %cst_44 {dimension_numbers = #tpu.dot_dimension_numbers<[1], [0], [0], [1], [0, 0, 1, 1], [], []>} : vector<26x16xf32>, vector<16x104xf32>, vector<26x104xf32> -> vector<26x104xf32>
    %c0_45 = arith.constant 0 : index
    %c0_46 = arith.constant 0 : index
    %40 = vector.load %arg18[%c0_45, %c0_46] : memref<26x16xf32, #tpu.memory_space<vmem>>, vector<26x16xf32>
    %cst_47 = arith.constant dense<0.000000e+00> : vector<26x104xf32>
    %41 = tpu.matmul %40, %29, %cst_47 {dimension_numbers = #tpu.dot_dimension_numbers<[1], [0], [0], [1], [0, 0, 1, 1], [], []>} : vector<26x16xf32>, vector<16x104xf32>, vector<26x104xf32> -> vector<26x104xf32>
    %c0_48 = arith.constant 0 : index
    %c0_49 = arith.constant 0 : index
    %42 = vector.load %arg18[%c0_48, %c0_49] : memref<26x16xf32, #tpu.memory_space<vmem>>, vector<26x16xf32>
    %cst_50 = arith.constant dense<0.000000e+00> : vector<26x104xf32>
    %43 = tpu.matmul %42, %31, %cst_50 {dimension_numbers = #tpu.dot_dimension_numbers<[1], [0], [0], [1], [0, 0, 1, 1], [], []>} : vector<26x16xf32>, vector<16x104xf32>, vector<26x104xf32> -> vector<26x104xf32>
    %c0_51 = arith.constant 0 : index
    %c0_52 = arith.constant 0 : index
    %44 = vector.load %arg19[%c0_51, %c0_52] : memref<26x16xf32, #tpu.memory_space<vmem>>, vector<26x16xf32>
    %cst_53 = arith.constant dense<0.000000e+00> : vector<26x104xf32>
    %45 = tpu.matmul %44, %27, %cst_53 {dimension_numbers = #tpu.dot_dimension_numbers<[1], [0], [0], [1], [0, 0, 1, 1], [], []>} : vector<26x16xf32>, vector<16x104xf32>, vector<26x104xf32> -> vector<26x104xf32>
    %c0_54 = arith.constant 0 : index
    %c0_55 = arith.constant 0 : index
    %46 = vector.load %arg19[%c0_54, %c0_55] : memref<26x16xf32, #tpu.memory_space<vmem>>, vector<26x16xf32>
    %cst_56 = arith.constant dense<0.000000e+00> : vector<26x104xf32>
    %47 = tpu.matmul %46, %29, %cst_56 {dimension_numbers = #tpu.dot_dimension_numbers<[1], [0], [0], [1], [0, 0, 1, 1], [], []>} : vector<26x16xf32>, vector<16x104xf32>, vector<26x104xf32> -> vector<26x104xf32>
    %c0_57 = arith.constant 0 : index
    %c0_58 = arith.constant 0 : index
    %48 = vector.load %arg19[%c0_57, %c0_58] : memref<26x16xf32, #tpu.memory_space<vmem>>, vector<26x16xf32>
    %cst_59 = arith.constant dense<0.000000e+00> : vector<26x104xf32>
    %49 = tpu.matmul %48, %31, %cst_59 {dimension_numbers = #tpu.dot_dimension_numbers<[1], [0], [0], [1], [0, 0, 1, 1], [], []>} : vector<26x16xf32>, vector<16x104xf32>, vector<26x104xf32> -> vector<26x104xf32>
    %50 = arith.minimumf %33, %35 : vector<26x104xf32>
    %51 = arith.maximumf %33, %35 : vector<26x104xf32>
    %52 = arith.minimumf %50, %37 : vector<26x104xf32>
    %53 = arith.maximumf %51, %37 : vector<26x104xf32>
    %54 = arith.minimumf %51, %37 : vector<26x104xf32>
    %55 = arith.maximumf %50, %54 : vector<26x104xf32>
    %56 = arith.minimumf %39, %41 : vector<26x104xf32>
    %57 = arith.maximumf %39, %41 : vector<26x104xf32>
    %58 = arith.minimumf %56, %43 : vector<26x104xf32>
    %59 = arith.maximumf %57, %43 : vector<26x104xf32>
    %60 = arith.minimumf %57, %43 : vector<26x104xf32>
    %61 = arith.maximumf %56, %60 : vector<26x104xf32>
    %62 = arith.minimumf %45, %47 : vector<26x104xf32>
    %63 = arith.maximumf %45, %47 : vector<26x104xf32>
    %64 = arith.minimumf %62, %49 : vector<26x104xf32>
    %65 = arith.maximumf %63, %49 : vector<26x104xf32>
    %66 = arith.minimumf %63, %49 : vector<26x104xf32>
    %67 = arith.maximumf %62, %66 : vector<26x104xf32>
    %68 = arith.maximumf %52, %58 : vector<26x104xf32>
    %69 = arith.maximumf %68, %64 : vector<26x104xf32>
    %70 = arith.minimumf %53, %59 : vector<26x104xf32>
    %71 = arith.minimumf %70, %65 : vector<26x104xf32>
    %72 = arith.minimumf %55, %61 : vector<26x104xf32>
    %73 = arith.maximumf %55, %61 : vector<26x104xf32>
    %74 = arith.minimumf %73, %67 : vector<26x104xf32>
    %75 = arith.maximumf %72, %74 : vector<26x104xf32>
    %76 = arith.minimumf %69, %75 : vector<26x104xf32>
    %77 = arith.maximumf %69, %75 : vector<26x104xf32>
    %78 = arith.minimumf %77, %71 : vector<26x104xf32>
    %79 = arith.maximumf %76, %78 : vector<26x104xf32>
    %c0_60 = arith.constant 0 : index
    %c0_61 = arith.constant 0 : index
    %80 = vector.load %arg23[%c0_60, %c0_61] : memref<104x4xf32, #tpu.memory_space<vmem>>, vector<104x4xf32>
    %81 = arith.subf %79, %41 : vector<26x104xf32>
    %cst_62 = arith.constant dense<0.000000e+00> : vector<104xf32>
    %82 = vector.multi_reduction <add>, %81, %cst_62 [0] : vector<26x104xf32> to vector<104xf32>
    %83 = vector.shape_cast %82 : vector<104xf32> to vector<1x104xf32>
    %cst_63 = arith.constant dense<0.000000e+00> : vector<1x4xf32>
    %84 = tpu.matmul %83, %80, %cst_63 {dimension_numbers = #tpu.dot_dimension_numbers<[1], [0], [0], [1], [0, 0, 1, 1], [], []>} : vector<1x104xf32>, vector<104x4xf32>, vector<1x4xf32> -> vector<1x4xf32>
    %85 = arith.mulf %81, %81 : vector<26x104xf32>
    %cst_64 = arith.constant dense<0.000000e+00> : vector<104xf32>
    %86 = vector.multi_reduction <add>, %85, %cst_64 [0] : vector<26x104xf32> to vector<104xf32>
    %87 = vector.shape_cast %86 : vector<104xf32> to vector<1x104xf32>
    %cst_65 = arith.constant dense<0.000000e+00> : vector<1x4xf32>
    %88 = tpu.matmul %87, %80, %cst_65 {dimension_numbers = #tpu.dot_dimension_numbers<[1], [0], [0], [1], [0, 0, 1, 1], [], []>} : vector<1x104xf32>, vector<104x4xf32>, vector<1x4xf32> -> vector<1x4xf32>
    %cst_66 = arith.constant dense<0.000000e+00> : vector<104xf32>
    %89 = vector.multi_reduction <add>, %41, %cst_66 [0] : vector<26x104xf32> to vector<104xf32>
    %90 = vector.shape_cast %89 : vector<104xf32> to vector<1x104xf32>
    %cst_67 = arith.constant dense<0.000000e+00> : vector<1x4xf32>
    %91 = tpu.matmul %90, %80, %cst_67 {dimension_numbers = #tpu.dot_dimension_numbers<[1], [0], [0], [1], [0, 0, 1, 1], [], []>} : vector<1x104xf32>, vector<104x4xf32>, vector<1x4xf32> -> vector<1x4xf32>
    %92 = arith.mulf %41, %41 : vector<26x104xf32>
    %cst_68 = arith.constant dense<0.000000e+00> : vector<104xf32>
    %93 = vector.multi_reduction <add>, %92, %cst_68 [0] : vector<26x104xf32> to vector<104xf32>
    %94 = vector.shape_cast %93 : vector<104xf32> to vector<1x104xf32>
    %cst_69 = arith.constant dense<0.000000e+00> : vector<1x4xf32>
    %95 = tpu.matmul %94, %80, %cst_69 {dimension_numbers = #tpu.dot_dimension_numbers<[1], [0], [0], [1], [0, 0, 1, 1], [], []>} : vector<1x104xf32>, vector<104x4xf32>, vector<1x4xf32> -> vector<1x4xf32>
    %cst_70 = arith.constant 1.479290e-03 : f32
    %96 = vector.broadcast %cst_70 : f32 to vector<1x4xf32>
    %97 = arith.mulf %84, %96 : vector<1x4xf32>
    %cst_71 = arith.constant 2.000000e+00 : f32
    %98 = vector.broadcast %cst_71 : f32 to vector<1x4xf32>
    %99 = arith.mulf %98, %97 : vector<1x4xf32>
    %100 = arith.mulf %99, %84 : vector<1x4xf32>
    %101 = arith.subf %88, %100 : vector<1x4xf32>
    %cst_72 = arith.constant 6.760000e+02 : f32
    %102 = vector.broadcast %cst_72 : f32 to vector<1x4xf32>
    %103 = arith.mulf %102, %97 : vector<1x4xf32>
    %104 = arith.mulf %103, %97 : vector<1x4xf32>
    %105 = arith.addf %101, %104 : vector<1x4xf32>
    %cst_73 = arith.constant 0.00148148148 : f32
    %106 = vector.broadcast %cst_73 : f32 to vector<1x4xf32>
    %107 = arith.mulf %105, %106 : vector<1x4xf32>
    %cst_74 = arith.constant 1.479290e-03 : f32
    %108 = vector.broadcast %cst_74 : f32 to vector<1x4xf32>
    %109 = arith.mulf %91, %108 : vector<1x4xf32>
    %cst_75 = arith.constant 2.000000e+00 : f32
    %110 = vector.broadcast %cst_75 : f32 to vector<1x4xf32>
    %111 = arith.mulf %110, %109 : vector<1x4xf32>
    %112 = arith.mulf %111, %91 : vector<1x4xf32>
    %113 = arith.subf %95, %112 : vector<1x4xf32>
    %cst_76 = arith.constant 6.760000e+02 : f32
    %114 = vector.broadcast %cst_76 : f32 to vector<1x4xf32>
    %115 = arith.mulf %114, %109 : vector<1x4xf32>
    %116 = arith.mulf %115, %109 : vector<1x4xf32>
    %117 = arith.addf %113, %116 : vector<1x4xf32>
    %cst_77 = arith.constant 0.00148148148 : f32
    %118 = vector.broadcast %cst_77 : f32 to vector<1x4xf32>
    %119 = arith.mulf %117, %118 : vector<1x4xf32>
    %cst_78 = arith.constant 0.266666681 : f32
    %120 = vector.broadcast %cst_78 : f32 to vector<1x4xf32>
    %121 = arith.mulf %107, %120 : vector<1x4xf32>
    %122 = math.rsqrt %119 : vector<1x4xf32>
    %123 = arith.mulf %121, %122 : vector<1x4xf32>
    %c0_79 = arith.constant 0 : index
    %c0_80 = arith.constant 0 : index
    %124 = vector.load %arg3[%c0_79, %c0_80] : memref<4x104xf32, #tpu.memory_space<vmem>>, vector<4x104xf32>
    %cst_81 = arith.constant dense<0.000000e+00> : vector<1x104xf32>
    %125 = tpu.matmul %123, %124, %cst_81 {dimension_numbers = #tpu.dot_dimension_numbers<[1], [0], [0], [1], [0, 0, 1, 1], [], []>} : vector<1x4xf32>, vector<4x104xf32>, vector<1x104xf32> -> vector<1x104xf32>
    %c0_82 = arith.constant 0 : index
    %c0_83 = arith.constant 0 : index
    %126 = vector.load %arg29[%c0_82, %c0_83] : memref<14x16xf32, #tpu.memory_space<vmem>>, vector<14x16xf32>
    %cst_84 = arith.constant dense<0.000000e+00> : vector<14x64xf32>
    %127 = tpu.matmul %126, %8, %cst_84 {dimension_numbers = #tpu.dot_dimension_numbers<[1], [0], [0], [1], [0, 0, 1, 1], [], []>} : vector<14x16xf32>, vector<16x64xf32>, vector<14x64xf32> -> vector<14x64xf32>
    %c0_85 = arith.constant 0 : index
    %c0_86 = arith.constant 0 : index
    %128 = vector.load %arg28[%c0_85, %c0_86] : memref<14x16xf32, #tpu.memory_space<vmem>>, vector<14x16xf32>
    %cst_87 = arith.constant dense<0.000000e+00> : vector<14x64xf32>
    %129 = tpu.matmul %128, %8, %cst_87 {dimension_numbers = #tpu.dot_dimension_numbers<[1], [0], [0], [1], [0, 0, 1, 1], [], []>} : vector<14x16xf32>, vector<16x64xf32>, vector<14x64xf32> -> vector<14x64xf32>
    %130 = arith.addf %127, %129 : vector<14x64xf32>
    %c0_88 = arith.constant 0 : index
    %c0_89 = arith.constant 0 : index
    %131 = vector.load %arg9[%c0_88, %c0_89] : memref<64x104xf32, #tpu.memory_space<vmem>>, vector<64x104xf32>
    %cst_90 = arith.constant dense<0.000000e+00> : vector<14x104xf32>
    %132 = tpu.matmul %130, %131, %cst_90 {dimension_numbers = #tpu.dot_dimension_numbers<[1], [0], [0], [1], [0, 0, 1, 1], [], []>} : vector<14x64xf32>, vector<64x104xf32>, vector<14x104xf32> -> vector<14x104xf32>
    %c0_91 = arith.constant 0 : index
    %c0_92 = arith.constant 0 : index
    %133 = vector.load %arg8[%c0_91, %c0_92] : memref<64x104xf32, #tpu.memory_space<vmem>>, vector<64x104xf32>
    %cst_93 = arith.constant dense<0.000000e+00> : vector<14x104xf32>
    %134 = tpu.matmul %127, %133, %cst_93 {dimension_numbers = #tpu.dot_dimension_numbers<[1], [0], [0], [1], [0, 0, 1, 1], [], []>} : vector<14x64xf32>, vector<64x104xf32>, vector<14x104xf32> -> vector<14x104xf32>
    %c0_94 = arith.constant 0 : index
    %c0_95 = arith.constant 0 : index
    %135 = vector.load %arg7[%c0_94, %c0_95] : memref<64x104xf32, #tpu.memory_space<vmem>>, vector<64x104xf32>
    %cst_96 = arith.constant dense<0.000000e+00> : vector<14x104xf32>
    %136 = tpu.matmul %129, %135, %cst_96 {dimension_numbers = #tpu.dot_dimension_numbers<[1], [0], [0], [1], [0, 0, 1, 1], [], []>} : vector<14x64xf32>, vector<64x104xf32>, vector<14x104xf32> -> vector<14x104xf32>
    %137 = arith.subf %134, %136 : vector<14x104xf32>
    %138 = arith.subf %132, %134 : vector<14x104xf32>
    %139 = arith.subf %138, %136 : vector<14x104xf32>
    %140 = vector.broadcast %125 : vector<1x104xf32> to vector<14x104xf32>
    %141 = arith.addf %25, %140 : vector<14x104xf32>
    %142 = tpu.reciprocal %141 {approx = true} : vector<14x104xf32> -> vector<14x104xf32>
    %143 = arith.mulf %141, %142 : vector<14x104xf32>
    %cst_97 = arith.constant 2.000000e+00 : f32
    %144 = vector.broadcast %cst_97 : f32 to vector<14x104xf32>
    %145 = arith.subf %144, %143 : vector<14x104xf32>
    %146 = arith.mulf %142, %145 : vector<14x104xf32>
    %147 = arith.mulf %20, %146 : vector<14x104xf32>
    %cst_98 = arith.constant 0.000000e+00 : f32
    %148 = vector.broadcast %cst_98 : f32 to vector<14x104xf32>
    %149 = arith.subf %148, %22 : vector<14x104xf32>
    %150 = arith.mulf %149, %146 : vector<14x104xf32>
    %151 = arith.mulf %147, %137 : vector<14x104xf32>
    %152 = arith.mulf %150, %139 : vector<14x104xf32>
    %153 = arith.subf %151, %152 : vector<14x104xf32>
    %154 = arith.mulf %147, %139 : vector<14x104xf32>
    %155 = arith.mulf %150, %137 : vector<14x104xf32>
    %156 = arith.addf %154, %155 : vector<14x104xf32>
    %c0_99 = arith.constant 0 : index
    %c0_100 = arith.constant 0 : index
    %157 = vector.load %arg12[%c0_99, %c0_100] : memref<16x14xf32, #tpu.memory_space<vmem>>, vector<16x14xf32>
    %158 = arith.addf %153, %156 : vector<14x104xf32>
    %cst_101 = arith.constant dense<0.000000e+00> : vector<16x104xf32>
    %159 = tpu.matmul %157, %158, %cst_101 {dimension_numbers = #tpu.dot_dimension_numbers<[1], [0], [0], [1], [0, 0, 1, 1], [], []>} : vector<16x14xf32>, vector<14x104xf32>, vector<16x104xf32> -> vector<16x104xf32>
    %c0_102 = arith.constant 0 : index
    %c0_103 = arith.constant 0 : index
    %160 = vector.load %arg11[%c0_102, %c0_103] : memref<16x14xf32, #tpu.memory_space<vmem>>, vector<16x14xf32>
    %cst_104 = arith.constant dense<0.000000e+00> : vector<16x104xf32>
    %161 = tpu.matmul %160, %153, %cst_104 {dimension_numbers = #tpu.dot_dimension_numbers<[1], [0], [0], [1], [0, 0, 1, 1], [], []>} : vector<16x14xf32>, vector<14x104xf32>, vector<16x104xf32> -> vector<16x104xf32>
    %c0_105 = arith.constant 0 : index
    %c0_106 = arith.constant 0 : index
    %162 = vector.load %arg10[%c0_105, %c0_106] : memref<16x14xf32, #tpu.memory_space<vmem>>, vector<16x14xf32>
    %cst_107 = arith.constant dense<0.000000e+00> : vector<16x104xf32>
    %163 = tpu.matmul %162, %156, %cst_107 {dimension_numbers = #tpu.dot_dimension_numbers<[1], [0], [0], [1], [0, 0, 1, 1], [], []>} : vector<16x14xf32>, vector<14x104xf32>, vector<16x104xf32> -> vector<16x104xf32>
    %164 = arith.subf %161, %163 : vector<16x104xf32>
    %165 = arith.subf %159, %161 : vector<16x104xf32>
    %166 = arith.subf %165, %163 : vector<16x104xf32>
    %c0_108 = arith.constant 0 : index
    %c0_109 = arith.constant 0 : index
    %167 = vector.load %arg14[%c0_108, %c0_109] : memref<104x64xf32, #tpu.memory_space<vmem>>, vector<104x64xf32>
    %cst_110 = arith.constant dense<0.000000e+00> : vector<16x64xf32>
    %168 = tpu.matmul %164, %167, %cst_110 {dimension_numbers = #tpu.dot_dimension_numbers<[1], [0], [0], [1], [0, 0, 1, 1], [], []>} : vector<16x104xf32>, vector<104x64xf32>, vector<16x64xf32> -> vector<16x64xf32>
    %c0_111 = arith.constant 0 : index
    %c0_112 = arith.constant 0 : index
    %169 = vector.load %arg13[%c0_111, %c0_112] : memref<104x64xf32, #tpu.memory_space<vmem>>, vector<104x64xf32>
    %cst_113 = arith.constant dense<0.000000e+00> : vector<16x64xf32>
    %170 = tpu.matmul %166, %169, %cst_113 {dimension_numbers = #tpu.dot_dimension_numbers<[1], [0], [0], [1], [0, 0, 1, 1], [], []>} : vector<16x104xf32>, vector<104x64xf32>, vector<16x64xf32> -> vector<16x64xf32>
    %171 = arith.subf %168, %170 : vector<16x64xf32>
    %c0_114 = arith.constant 0 : index
    %c0_115 = arith.constant 0 : index
    %172 = vector.load %arg15[%c0_114, %c0_115] : memref<64x256xf32, #tpu.memory_space<vmem>>, vector<64x256xf32>
    %cst_116 = arith.constant dense<0.000000e+00> : vector<16x256xf32>
    %173 = tpu.matmul %171, %172, %cst_116 {dimension_numbers = #tpu.dot_dimension_numbers<[1], [0], [0], [1], [0, 0, 1, 1], [], []>} : vector<16x64xf32>, vector<64x256xf32>, vector<16x256xf32> -> vector<16x256xf32>
    %c0_117 = arith.constant 0 : index
    %c0_118 = arith.constant 0 : index
    %174 = vector.load %arg24[%c0_117, %c0_118] : memref<1x256xf32, #tpu.memory_space<vmem>>, vector<1x256xf32>
    %175 = vector.broadcast %174 : vector<1x256xf32> to vector<16x256xf32>
    %176 = arith.addf %173, %175 : vector<16x256xf32>
    %c0_119 = arith.constant 0 : index
    %c0_120 = arith.constant 0 : index
    %c0_121 = arith.constant 0 : index
    %177 = vector.load %arg30[%c0_119, %c0_120, %c0_121] : memref<1x16x256xf32, #tpu.memory_space<vmem>>, vector<1x16x256xf32>
    %178 = vector.shape_cast %177 : vector<1x16x256xf32> to vector<16x256xf32>
    %179 = vector.shape_cast %176 : vector<16x256xf32> to vector<1x16x256xf32>
    tpu.vector_store %arg30[%c0_119, %c0_120, %c0_121], %179 {strides = array<i32>} : memref<1x16x256xf32, #tpu.memory_space<vmem>>, vector<1x16x256xf32>,
    return
  }
  func.func @transform_0(%arg0: i32) -> (i32, i32, i32) {
    %c0_i32 = arith.constant 0 : i32
    %c0_i32_0 = arith.constant 0 : i32
    %c0_i32_1 = arith.constant 0 : i32
    return %arg0, %c0_i32, %c0_i32_0 : i32, i32, i32
  }
  func.func @transform_1(%arg0: i32) -> (i32, i32, i32) {
    %c0_i32 = arith.constant 0 : i32
    %c0_i32_0 = arith.constant 0 : i32
    %c0_i32_1 = arith.constant 0 : i32
    return %arg0, %c0_i32, %c0_i32_0 : i32, i32, i32
  }
  func.func @transform_2(%arg0: i32) -> (i32, i32) {
    %c0_i32 = arith.constant 0 : i32
    %c0_i32_0 = arith.constant 0 : i32
    %c0_i32_1 = arith.constant 0 : i32
    return %c0_i32, %c0_i32_0 : i32, i32
  }
  func.func @transform_3(%arg0: i32) -> (i32, i32) {
    %c0_i32 = arith.constant 0 : i32
    %c0_i32_0 = arith.constant 0 : i32
    %c0_i32_1 = arith.constant 0 : i32
    return %c0_i32, %c0_i32_0 : i32, i32
  }
  func.func @transform_4(%arg0: i32) -> (i32, i32) {
    %c0_i32 = arith.constant 0 : i32
    %c0_i32_0 = arith.constant 0 : i32
    %c0_i32_1 = arith.constant 0 : i32
    return %c0_i32, %c0_i32_0 : i32, i32
  }
  func.func @transform_5(%arg0: i32) -> (i32, i32) {
    %c0_i32 = arith.constant 0 : i32
    %c0_i32_0 = arith.constant 0 : i32
    %c0_i32_1 = arith.constant 0 : i32
    return %c0_i32, %c0_i32_0 : i32, i32
  }
  func.func @transform_6(%arg0: i32) -> (i32, i32) {
    %c0_i32 = arith.constant 0 : i32
    %c0_i32_0 = arith.constant 0 : i32
    %c0_i32_1 = arith.constant 0 : i32
    return %c0_i32, %c0_i32_0 : i32, i32
  }
  func.func @transform_7(%arg0: i32) -> (i32, i32) {
    %c0_i32 = arith.constant 0 : i32
    %c0_i32_0 = arith.constant 0 : i32
    %c0_i32_1 = arith.constant 0 : i32
    return %c0_i32, %c0_i32_0 : i32, i32
  }
  func.func @transform_8(%arg0: i32) -> (i32, i32) {
    %c0_i32 = arith.constant 0 : i32
    %c0_i32_0 = arith.constant 0 : i32
    %c0_i32_1 = arith.constant 0 : i32
    return %c0_i32, %c0_i32_0 : i32, i32
  }
  func.func @transform_9(%arg0: i32) -> (i32, i32) {
    %c0_i32 = arith.constant 0 : i32
    %c0_i32_0 = arith.constant 0 : i32
    %c0_i32_1 = arith.constant 0 : i32
    return %c0_i32, %c0_i32_0 : i32, i32
  }
  func.func @transform_10(%arg0: i32) -> (i32, i32) {
    %c0_i32 = arith.constant 0 : i32
    %c0_i32_0 = arith.constant 0 : i32
    %c0_i32_1 = arith.constant 0 : i32
    return %c0_i32, %c0_i32_0 : i32, i32
  }
  func.func @transform_11(%arg0: i32) -> (i32, i32) {
    %c0_i32 = arith.constant 0 : i32
    %c0_i32_0 = arith.constant 0 : i32
    %c0_i32_1 = arith.constant 0 : i32
    return %c0_i32, %c0_i32_0 : i32, i32
  }
  func.func @transform_12(%arg0: i32) -> (i32, i32) {
    %c0_i32 = arith.constant 0 : i32
    %c0_i32_0 = arith.constant 0 : i32
    %c0_i32_1 = arith.constant 0 : i32
    return %c0_i32, %c0_i32_0 : i32, i32
  }
  func.func @transform_13(%arg0: i32) -> (i32, i32) {
    %c0_i32 = arith.constant 0 : i32
    %c0_i32_0 = arith.constant 0 : i32
    %c0_i32_1 = arith.constant 0 : i32
    return %c0_i32, %c0_i32_0 : i32, i32
  }
  func.func @transform_14(%arg0: i32) -> (i32, i32) {
    %c0_i32 = arith.constant 0 : i32
    %c0_i32_0 = arith.constant 0 : i32
    %c0_i32_1 = arith.constant 0 : i32
    return %c0_i32, %c0_i32_0 : i32, i32
  }
  func.func @transform_15(%arg0: i32) -> (i32, i32) {
    %c0_i32 = arith.constant 0 : i32
    %c0_i32_0 = arith.constant 0 : i32
    %c0_i32_1 = arith.constant 0 : i32
    return %c0_i32, %c0_i32_0 : i32, i32
  }
  func.func @transform_16(%arg0: i32) -> (i32, i32) {
    %c0_i32 = arith.constant 0 : i32
    %c0_i32_0 = arith.constant 0 : i32
    %c0_i32_1 = arith.constant 0 : i32
    return %c0_i32, %c0_i32_0 : i32, i32
  }
  func.func @transform_17(%arg0: i32) -> (i32, i32) {
    %c0_i32 = arith.constant 0 : i32
    %c0_i32_0 = arith.constant 0 : i32
    %c0_i32_1 = arith.constant 0 : i32
    return %c0_i32, %c0_i32_0 : i32, i32
  }
  func.func @transform_18(%arg0: i32) -> (i32, i32) {
    %c0_i32 = arith.constant 0 : i32
    %c0_i32_0 = arith.constant 0 : i32
    %c0_i32_1 = arith.constant 0 : i32
    return %c0_i32, %c0_i32_0 : i32, i32
  }
  func.func @transform_19(%arg0: i32) -> (i32, i32) {
    %c0_i32 = arith.constant 0 : i32
    %c0_i32_0 = arith.constant 0 : i32
    %c0_i32_1 = arith.constant 0 : i32
    return %c0_i32, %c0_i32_0 : i32, i32
  }
  func.func @transform_20(%arg0: i32) -> (i32, i32) {
    %c0_i32 = arith.constant 0 : i32
    %c0_i32_0 = arith.constant 0 : i32
    %c0_i32_1 = arith.constant 0 : i32
    return %c0_i32, %c0_i32_0 : i32, i32
  }
  func.func @transform_21(%arg0: i32) -> (i32, i32) {
    %c0_i32 = arith.constant 0 : i32
    %c0_i32_0 = arith.constant 0 : i32
    %c0_i32_1 = arith.constant 0 : i32
    return %c0_i32, %c0_i32_0 : i32, i32
  }
  func.func @transform_22(%arg0: i32) -> (i32, i32) {
    %c0_i32 = arith.constant 0 : i32
    %c0_i32_0 = arith.constant 0 : i32
    %c0_i32_1 = arith.constant 0 : i32
    return %c0_i32, %c0_i32_0 : i32, i32
  }
  func.func @transform_23(%arg0: i32) -> (i32, i32) {
    %c0_i32 = arith.constant 0 : i32
    %c0_i32_0 = arith.constant 0 : i32
    %c0_i32_1 = arith.constant 0 : i32
    return %c0_i32, %c0_i32_0 : i32, i32
  }
  func.func @transform_24(%arg0: i32) -> (i32, i32) {
    %c0_i32 = arith.constant 0 : i32
    %c0_i32_0 = arith.constant 0 : i32
    %c0_i32_1 = arith.constant 0 : i32
    return %c0_i32, %c0_i32_0 : i32, i32
  }
  func.func @transform_25(%arg0: i32) -> (i32, i32) {
    %c0_i32 = arith.constant 0 : i32
    %c0_i32_0 = arith.constant 0 : i32
    %c0_i32_1 = arith.constant 0 : i32
    return %c0_i32, %c0_i32_0 : i32, i32
  }
  func.func @transform_26(%arg0: i32) -> (i32, i32) {
    %c0_i32 = arith.constant 0 : i32
    %c0_i32_0 = arith.constant 0 : i32
    %c0_i32_1 = arith.constant 0 : i32
    return %c0_i32, %c0_i32_0 : i32, i32
  }
  func.func @transform_27(%arg0: i32) -> (i32, i32) {
    %c0_i32 = arith.constant 0 : i32
    %c0_i32_0 = arith.constant 0 : i32
    %c0_i32_1 = arith.constant 0 : i32
    return %c0_i32, %c0_i32_0 : i32, i32
  }
  func.func @transform_28(%arg0: i32) -> (i32, i32) {
    %c0_i32 = arith.constant 0 : i32
    %c0_i32_0 = arith.constant 0 : i32
    %c0_i32_1 = arith.constant 0 : i32
    return %c0_i32, %c0_i32_0 : i32, i32
  }
  func.func @transform_29(%arg0: i32) -> (i32, i32, i32) {
    %c0_i32 = arith.constant 0 : i32
    %c0_i32_0 = arith.constant 0 : i32
    %c0_i32_1 = arith.constant 0 : i32
    return %arg0, %c0_i32, %c0_i32_0 : i32, i32, i32
  }
}

</mosaic_0001>

<llo_original>
// kernel: tpu_custom_call.1
$region0: #{tpu_custom_call.1}
  #allocation0 [shape = 'u32[]', space=smem, size = 0x4, offset = 0x4, fixed_abs, tag = 'smem constant byte address 0x4 - core index']
  #allocation1 [shape = 'u32[72,128]{1,0:T(1,128)}', space=vmem, size = 0x9000, scoped, tag = 'internal scratch']
  %s0 = inlined_call_operand.smem [shape: u32[30], index: -1, kind: input, shape index: {}]
  %s1 = sld [smem:[%s0]]
  %s2 = scalar_lea.smem %s0, 1
  %s3 = sld [smem:[%s2]]
  %s4 = scalar_lea.smem %s0, 2
  %s5 = sld [smem:[%s4]]
  %s6 = scalar_lea.smem %s0, 3
  %s7 = sld [smem:[%s6]]
  %s8 = scalar_lea.smem %s0, 4
  %s9 = sld [smem:[%s8]]
  %s10 = scalar_lea.smem %s0, 5
  %s11 = sld [smem:[%s10]]
  %s12 = scalar_lea.smem %s0, 6
  %s13 = sld [smem:[%s12]]
  %s14 = scalar_lea.smem %s0, 7
  %s15 = sld [smem:[%s14]]
  %s16 = scalar_lea.smem %s0, 8
  %s17 = sld [smem:[%s16]]
  %s18 = scalar_lea.smem %s0, 9
  %s19 = sld [smem:[%s18]]
  %s20 = scalar_lea.smem %s0, 10
  %s21 = sld [smem:[%s20]]
  %s22 = scalar_lea.smem %s0, 11
  %s23 = sld [smem:[%s22]]
  %s24 = scalar_lea.smem %s0, 12
  %s25 = sld [smem:[%s24]]
  %s26 = scalar_lea.smem %s0, 13
  %s27 = sld [smem:[%s26]]
  %s28 = scalar_lea.smem %s0, 14
  %s29 = sld [smem:[%s28]]
  %s30 = scalar_lea.smem %s0, 15
  %s31 = sld [smem:[%s30]]
  %s32 = scalar_lea.smem %s0, 16
  %s33 = sld [smem:[%s32]]
  %s34 = scalar_lea.smem %s0, 17
  %s35 = sld [smem:[%s34]]
  %s36 = scalar_lea.smem %s0, 18
  %s37 = sld [smem:[%s36]]
  %s38 = scalar_lea.smem %s0, 19
  %s39 = sld [smem:[%s38]]
  %s40 = scalar_lea.smem %s0, 20
  %s41 = sld [smem:[%s40]]
  %s42 = scalar_lea.smem %s0, 21
  %s43 = sld [smem:[%s42]]
  %s44 = scalar_lea.smem %s0, 22
  %s45 = sld [smem:[%s44]]
  %s46 = scalar_lea.smem %s0, 23
  %s47 = sld [smem:[%s46]]
  %s48 = scalar_lea.smem %s0, 24
  %s49 = sld [smem:[%s48]]
  %s50 = scalar_lea.smem %s0, 25
  %s51 = sld [smem:[%s50]]
  %s52 = scalar_lea.smem %s0, 26
  %s53 = sld [smem:[%s52]]
  %s54 = scalar_lea.smem %s0, 27
  %s55 = sld [smem:[%s54]]
  %s56 = scalar_lea.smem %s0, 28
  %s57 = sld [smem:[%s56]]
  %s58 = scalar_lea.smem %s0, 29
  %s59 = sld [smem:[%s58]]
  %s60 = sld [smem:[#allocation0]]
  $region161: #{tpu_custom_call.1} parent=0
    _
  %s62 = ssub.s32 1, %s60
  %s63 = scalar_select 0, %s62, %s60
  $region1: #{tpu_custom_call.1} parent=0
    #allocation2 [shape = 'u8[2048]{0}', space=vmem, size = 0x800, scoped, tag = 'input window, operand 2, single buffered']
    #allocation3 [shape = 's32[2]{0}', space=sflag, size = 0x8, scoped, tag = 'scoped memory for tpu_custom_call.1']
    #allocation4 [shape = 's32[2]{0}', space=sflag, size = 0x8, scoped, tag = 'scoped memory for tpu_custom_call.1']
    #allocation5 [shape = 'u8[8192]{0}', space=vmem, size = 0x2000, scoped, tag = 'input window, operand 27, single buffered']
    #allocation6 [shape = 's32[1]{0}', space=sflag, size = 0x4, scoped, tag = 'scoped memory for tpu_custom_call.1']
    #allocation7 [shape = 'u8[8192]{0}', space=vmem, size = 0x2000, scoped, tag = 'input window, operand 28, single buffered']
    #allocation8 [shape = 'u8[32768]{0}', space=vmem, size = 0x8000, scoped, tag = 'output window, operand 0']
    %64 = vsyncpa [#allocation3], 0
    %65 = vsyncpa [#allocation6], 0
    %66 = vsyncpa [#allocation4], 0
    %s67 = scalar_lea.sflag [#allocation4], 1
    %68 = vsyncpa %s67, 0
    loop: start=0, step=1, limit=4
    $region2: #{tpu_custom_call.1} parent=1 // loop_pre_header
      _
    $region3: #{tpu_custom_call.1} parent=1 // loop_header
      %s70 = sphi 0, %s74
      %p71 = scmp.ge.s32.totalorder %s70, 4
      %s80 = sphi 0, %s82
      %s83 = sphi 0, %s80
      %s84 = sphi 0, %s83
      %s100 = sphi 0, %s84
      %s106 = sphi 0, %s108
      %s109 = sphi 0, %s106
      %s110 = sphi 0, %s109
      %s126 = sphi 0, %s110
      %s130 = sphi 0, %s130
      %s132 = sphi 0, %s130
      %s133 = sphi 0, %s132
      %s147 = sphi 0, %s133
      %s151 = sphi 0, %s151
      %s153 = sphi 0, %s151
      %s154 = sphi 0, %s153
      %s168 = sphi 0, %s154
      %s172 = sphi 0, %s172
      %s174 = sphi 0, %s172
      %s175 = sphi 0, %s174
      %s189 = sphi 0, %s175
      %s193 = sphi 0, %s193
      %s195 = sphi 0, %s193
      %s196 = sphi 0, %s195
      %s210 = sphi 0, %s196
      %s214 = sphi 0, %s214
      %s216 = sphi 0, %s214
      %s217 = sphi 0, %s216
      %s231 = sphi 0, %s217
      %s235 = sphi 0, %s235
      %s237 = sphi 0, %s235
      %s238 = sphi 0, %s237
      %s252 = sphi 0, %s238
      %s256 = sphi 0, %s256
      %s258 = sphi 0, %s256
      %s259 = sphi 0, %s258
      %s273 = sphi 0, %s259
      %s277 = sphi 0, %s277
      %s279 = sphi 0, %s277
      %s280 = sphi 0, %s279
      %s294 = sphi 0, %s280
      %s298 = sphi 0, %s298
      %s300 = sphi 0, %s298
      %s301 = sphi 0, %s300
      %s315 = sphi 0, %s301
      %s319 = sphi 0, %s319
      %s321 = sphi 0, %s319
      %s322 = sphi 0, %s321
      %s336 = sphi 0, %s322
      %s340 = sphi 0, %s340
      %s342 = sphi 0, %s340
      %s343 = sphi 0, %s342
      %s357 = sphi 0, %s343
      %s361 = sphi 0, %s361
      %s363 = sphi 0, %s361
      %s364 = sphi 0, %s363
      %s378 = sphi 0, %s364
      %s382 = sphi 0, %s382
      %s384 = sphi 0, %s382
      %s385 = sphi 0, %s384
      %s399 = sphi 0, %s385
      %s403 = sphi 0, %s403
      %s405 = sphi 0, %s403
      %s406 = sphi 0, %s405
      %s420 = sphi 0, %s406
      %s424 = sphi 0, %s424
      %s426 = sphi 0, %s424
      %s427 = sphi 0, %s426
      %s441 = sphi 0, %s427
      %s445 = sphi 0, %s445
      %s447 = sphi 0, %s445
      %s448 = sphi 0, %s447
      %s462 = sphi 0, %s448
      %s466 = sphi 0, %s466
      %s468 = sphi 0, %s466
      %s469 = sphi 0, %s468
      %s483 = sphi 0, %s469
      %s487 = sphi 0, %s487
      %s489 = sphi 0, %s487
      %s490 = sphi 0, %s489
      %s504 = sphi 0, %s490
      %s508 = sphi 0, %s508
      %s510 = sphi 0, %s508
      %s511 = sphi 0, %s510
      %s525 = sphi 0, %s511
      %s529 = sphi 0, %s529
      %s531 = sphi 0, %s529
      %s532 = sphi 0, %s531
      %s546 = sphi 0, %s532
      %s550 = sphi 0, %s550
      %s552 = sphi 0, %s550
      %s553 = sphi 0, %s552
      %s567 = sphi 0, %s553
      %s571 = sphi 0, %s571
      %s573 = sphi 0, %s571
      %s574 = sphi 0, %s573
      %s588 = sphi 0, %s574
      %s592 = sphi 0, %s592
      %s594 = sphi 0, %s592
      %s595 = sphi 0, %s594
      %s609 = sphi 0, %s595
      %s613 = sphi 0, %s613
      %s615 = sphi 0, %s613
      %s616 = sphi 0, %s615
      %s630 = sphi 0, %s616
      %s634 = sphi 0, %s634
      %s636 = sphi 0, %s634
      %s637 = sphi 0, %s636
      %s651 = sphi 0, %s637
      %s655 = sphi 0, %s655
      %s657 = sphi 0, %s655
      %s658 = sphi 0, %s657
      %s672 = sphi 0, %s658
      %s676 = sphi 0, %s676
      %s678 = sphi 0, %s676
      %s679 = sphi 0, %s678
      %s693 = sphi 0, %s679
      %s699 = sphi 0, %s701
      %s702 = sphi 0, %s699
      %s703 = sphi 0, %s702
      %s719 = sphi 0, %s703
    $region4: #{tpu_custom_call.1} parent=1 // loop_header_branch
      %73 = sbr.rel (%p71) target = $region8
    $region5: #{tpu_custom_call.1} parent=1 // loop_body
      %s75 = ssub.s32 %s70, 1
      %s76 = ssub.s32 %s70, 2
      %s77 = sadd.s32 %s70, 1
      %s78 = ssub.s32 %s70, %s77
      %p79 = scmp.eq.s32.totalorder %s78, 0
      %s81 = sadd.s32 %s80, 1
      %s82 = scalar_select %p79, %s80, %s81
      %p85 = pneg %p79
      %p86 = scmp.eq.s32.totalorder %s70, 1
      %p87 = por %p85, %p86
      %p88 = scmp.ne.s32.totalorder %s80, %s83
      %p89 = scmp.eq.s32.totalorder %s70, 0
      %p90 = por %p88, %p89
      %p91 = scmp.ne.s32.totalorder %s80, %s83
      %p92 = scmp.eq.s32.totalorder %s75, 1
      %p93 = por %p91, %p92
      %p94 = scmp.ne.s32.totalorder %s83, %s84
      %p95 = scmp.eq.s32.totalorder %s75, 0
      %p96 = por %p94, %p95
      %p97 = scmp.ne.s32.totalorder %s83, %s84
      %p98 = scmp.eq.s32.totalorder %s76, 1
      %p99 = por %p97, %p98
      %p101 = scmp.ne.s32.totalorder %s84, %s100
      %p102 = scmp.eq.s32.totalorder %s76, 0
      %p103 = por %p101, %p102
      %s104 = ssub.s32 %s70, %s77
      %p105 = scmp.eq.s32.totalorder %s104, 0
      %s107 = sadd.s32 %s106, 1
      %s108 = scalar_select %p105, %s106, %s107
      %p111 = pneg %p105
      %p112 = scmp.eq.s32.totalorder %s70, 1
      %p113 = por %p111, %p112
      %p114 = scmp.ne.s32.totalorder %s106, %s109
      %p115 = scmp.eq.s32.totalorder %s70, 0
      %p116 = por %p114, %p115
      %p117 = scmp.ne.s32.totalorder %s106, %s109
      %p118 = scmp.eq.s32.totalorder %s75, 1
      %p119 = por %p117, %p118
      %p120 = scmp.ne.s32.totalorder %s109, %s110
      %p121 = scmp.eq.s32.totalorder %s75, 0
      %p122 = por %p120, %p121
      %p123 = scmp.ne.s32.totalorder %s109, %s110
      %p124 = scmp.eq.s32.totalorder %s76, 1
      %p125 = por %p123, %p124
      %p127 = scmp.ne.s32.totalorder %s110, %s126
      %p128 = scmp.eq.s32.totalorder %s76, 0
      %p129 = por %p127, %p128
      %s131 = sadd.s32 %s130, 1
      %p134 = scmp.eq.s32.totalorder %s70, 1
      %p135 = scmp.ne.s32.totalorder %s130, %s132
      %p136 = scmp.eq.s32.totalorder %s70, 0
      %p137 = por %p135, %p136
      %p138 = scmp.ne.s32.totalorder %s130, %s132
      %p139 = scmp.eq.s32.totalorder %s75, 1
      %p140 = por %p138, %p139
      %p141 = scmp.ne.s32.totalorder %s132, %s133
      %p142 = scmp.eq.s32.totalorder %s75, 0
      %p143 = por %p141, %p142
      %p144 = scmp.ne.s32.totalorder %s132, %s133
      %p145 = scmp.eq.s32.totalorder %s76, 1
      %p146 = por %p144, %p145
      %p148 = scmp.ne.s32.totalorder %s133, %s147
      %p149 = scmp.eq.s32.totalorder %s76, 0
      %p150 = por %p148, %p149
      %s152 = sadd.s32 %s151, 1
      %p155 = scmp.eq.s32.totalorder %s70, 1
      %p156 = scmp.ne.s32.totalorder %s151, %s153
      %p157 = scmp.eq.s32.totalorder %s70, 0
      %p158 = por %p156, %p157
      %p159 = scmp.ne.s32.totalorder %s151, %s153
      %p160 = scmp.eq.s32.totalorder %s75, 1
      %p161 = por %p159, %p160
      %p162 = scmp.ne.s32.totalorder %s153, %s154
      %p163 = scmp.eq.s32.totalorder %s75, 0
      %p164 = por %p162, %p163
      %p165 = scmp.ne.s32.totalorder %s153, %s154
      %p166 = scmp.eq.s32.totalorder %s76, 1
      %p167 = por %p165, %p166
      %p169 = scmp.ne.s32.totalorder %s154, %s168
      %p170 = scmp.eq.s32.totalorder %s76, 0
      %p171 = por %p169, %p170
      %s173 = sadd.s32 %s172, 1
      %p176 = scmp.eq.s32.totalorder %s70, 1
      %p177 = scmp.ne.s32.totalorder %s172, %s174
      %p178 = scmp.eq.s32.totalorder %s70, 0
      %p179 = por %p177, %p178
      %p180 = scmp.ne.s32.totalorder %s172, %s174
      %p181 = scmp.eq.s32.totalorder %s75, 1
      %p182 = por %p180, %p181
      %p183 = scmp.ne.s32.totalorder %s174, %s175
      %p184 = scmp.eq.s32.totalorder %s75, 0
      %p185 = por %p183, %p184
      %p186 = scmp.ne.s32.totalorder %s174, %s175
      %p187 = scmp.eq.s32.totalorder %s76, 1
      %p188 = por %p186, %p187
      %p190 = scmp.ne.s32.totalorder %s175, %s189
      %p191 = scmp.eq.s32.totalorder %s76, 0
      %p192 = por %p190, %p191
      %s194 = sadd.s32 %s193, 1
      %p197 = scmp.eq.s32.totalorder %s70, 1
      %p198 = scmp.ne.s32.totalorder %s193, %s195
      %p199 = scmp.eq.s32.totalorder %s70, 0
      %p200 = por %p198, %p199
      %p201 = scmp.ne.s32.totalorder %s193, %s195
      %p202 = scmp.eq.s32.totalorder %s75, 1
      %p203 = por %p201, %p202
      %p204 = scmp.ne.s32.totalorder %s195, %s196
      %p205 = scmp.eq.s32.totalorder %s75, 0
      %p206 = por %p204, %p205
      %p207 = scmp.ne.s32.totalorder %s195, %s196
      %p208 = scmp.eq.s32.totalorder %s76, 1
      %p209 = por %p207, %p208
      %p211 = scmp.ne.s32.totalorder %s196, %s210
      %p212 = scmp.eq.s32.totalorder %s76, 0
      %p213 = por %p211, %p212
      %s215 = sadd.s32 %s214, 1
      %p218 = scmp.eq.s32.totalorder %s70, 1
      %p219 = scmp.ne.s32.totalorder %s214, %s216
      %p220 = scmp.eq.s32.totalorder %s70, 0
      %p221 = por %p219, %p220
      %p222 = scmp.ne.s32.totalorder %s214, %s216
      %p223 = scmp.eq.s32.totalorder %s75, 1
      %p224 = por %p222, %p223
      %p225 = scmp.ne.s32.totalorder %s216, %s217
      %p226 = scmp.eq.s32.totalorder %s75, 0
      %p227 = por %p225, %p226
      %p228 = scmp.ne.s32.totalorder %s216, %s217
      %p229 = scmp.eq.s32.totalorder %s76, 1
      %p230 = por %p228, %p229
      %p232 = scmp.ne.s32.totalorder %s217, %s231
      %p233 = scmp.eq.s32.totalorder %s76, 0
      %p234 = por %p232, %p233
      %s236 = sadd.s32 %s235, 1
      %p239 = scmp.eq.s32.totalorder %s70, 1
      %p240 = scmp.ne.s32.totalorder %s235, %s237
      %p241 = scmp.eq.s32.totalorder %s70, 0
      %p242 = por %p240, %p241
      %p243 = scmp.ne.s32.totalorder %s235, %s237
      %p244 = scmp.eq.s32.totalorder %s75, 1
      %p245 = por %p243, %p244
      %p246 = scmp.ne.s32.totalorder %s237, %s238
      %p247 = scmp.eq.s32.totalorder %s75, 0
      %p248 = por %p246, %p247
      %p249 = scmp.ne.s32.totalorder %s237, %s238
      %p250 = scmp.eq.s32.totalorder %s76, 1
      %p251 = por %p249, %p250
      %p253 = scmp.ne.s32.totalorder %s238, %s252
      %p254 = scmp.eq.s32.totalorder %s76, 0
      %p255 = por %p253, %p254
      %s257 = sadd.s32 %s256, 1
      %p260 = scmp.eq.s32.totalorder %s70, 1
      %p261 = scmp.ne.s32.totalorder %s256, %s258
      %p262 = scmp.eq.s32.totalorder %s70, 0
      %p263 = por %p261, %p262
      %p264 = scmp.ne.s32.totalorder %s256, %s258
      %p265 = scmp.eq.s32.totalorder %s75, 1
      %p266 = por %p264, %p265
      %p267 = scmp.ne.s32.totalorder %s258, %s259
      %p268 = scmp.eq.s32.totalorder %s75, 0
      %p269 = por %p267, %p268
      %p270 = scmp.ne.s32.totalorder %s258, %s259
      %p271 = scmp.eq.s32.totalorder %s76, 1
      %p272 = por %p270, %p271
      %p274 = scmp.ne.s32.totalorder %s259, %s273
      %p275 = scmp.eq.s32.totalorder %s76, 0
      %p276 = por %p274, %p275
      %s278 = sadd.s32 %s277, 1
      %p281 = scmp.eq.s32.totalorder %s70, 1
      %p282 = scmp.ne.s32.totalorder %s277, %s279
      %p283 = scmp.eq.s32.totalorder %s70, 0
      %p284 = por %p282, %p283
      %p285 = scmp.ne.s32.totalorder %s277, %s279
      %p286 = scmp.eq.s32.totalorder %s75, 1
      %p287 = por %p285, %p286
      %p288 = scmp.ne.s32.totalorder %s279, %s280
      %p289 = scmp.eq.s32.totalorder %s75, 0
      %p290 = por %p288, %p289
      %p291 = scmp.ne.s32.totalorder %s279, %s280
      %p292 = scmp.eq.s32.totalorder %s76, 1
      %p293 = por %p291, %p292
      %p295 = scmp.ne.s32.totalorder %s280, %s294
      %p296 = scmp.eq.s32.totalorder %s76, 0
      %p297 = por %p295, %p296
      %s299 = sadd.s32 %s298, 1
      %p302 = scmp.eq.s32.totalorder %s70, 1
      %p303 = scmp.ne.s32.totalorder %s298, %s300
      %p304 = scmp.eq.s32.totalorder %s70, 0
      %p305 = por %p303, %p304
      %p306 = scmp.ne.s32.totalorder %s298, %s300
      %p307 = scmp.eq.s32.totalorder %s75, 1
      %p308 = por %p306, %p307
      %p309 = scmp.ne.s32.totalorder %s300, %s301
      %p310 = scmp.eq.s32.totalorder %s75, 0
      %p311 = por %p309, %p310
      %p312 = scmp.ne.s32.totalorder %s300, %s301
      %p313 = scmp.eq.s32.totalorder %s76, 1
      %p314 = por %p312, %p313
      %p316 = scmp.ne.s32.totalorder %s301, %s315
      %p317 = scmp.eq.s32.totalorder %s76, 0
      %p318 = por %p316, %p317
      %s320 = sadd.s32 %s319, 1
      %p323 = scmp.eq.s32.totalorder %s70, 1
      %p324 = scmp.ne.s32.totalorder %s319, %s321
      %p325 = scmp.eq.s32.totalorder %s70, 0
      %p326 = por %p324, %p325
      %p327 = scmp.ne.s32.totalorder %s319, %s321
      %p328 = scmp.eq.s32.totalorder %s75, 1
      %p329 = por %p327, %p328
      %p330 = scmp.ne.s32.totalorder %s321, %s322
      %p331 = scmp.eq.s32.totalorder %s75, 0
      %p332 = por %p330, %p331
      %p333 = scmp.ne.s32.totalorder %s321, %s322
      %p334 = scmp.eq.s32.totalorder %s76, 1
      %p335 = por %p333, %p334
      %p337 = scmp.ne.s32.totalorder %s322, %s336
      %p338 = scmp.eq.s32.totalorder %s76, 0
      %p339 = por %p337, %p338
      %s341 = sadd.s32 %s340, 1
      %p344 = scmp.eq.s32.totalorder %s70, 1
      %p345 = scmp.ne.s32.totalorder %s340, %s342
      %p346 = scmp.eq.s32.totalorder %s70, 0
      %p347 = por %p345, %p346
      %p348 = scmp.ne.s32.totalorder %s340, %s342
      %p349 = scmp.eq.s32.totalorder %s75, 1
      %p350 = por %p348, %p349
      %p351 = scmp.ne.s32.totalorder %s342, %s343
      %p352 = scmp.eq.s32.totalorder %s75, 0
      %p353 = por %p351, %p352
      %p354 = scmp.ne.s32.totalorder %s342, %s343
      %p355 = scmp.eq.s32.totalorder %s76, 1
      %p356 = por %p354, %p355
      %p358 = scmp.ne.s32.totalorder %s343, %s357
      %p359 = scmp.eq.s32.totalorder %s76, 0
      %p360 = por %p358, %p359
      %s362 = sadd.s32 %s361, 1
      %p365 = scmp.eq.s32.totalorder %s70, 1
      %p366 = scmp.ne.s32.totalorder %s361, %s363
      %p367 = scmp.eq.s32.totalorder %s70, 0
      %p368 = por %p366, %p367
      %p369 = scmp.ne.s32.totalorder %s361, %s363
      %p370 = scmp.eq.s32.totalorder %s75, 1
      %p371 = por %p369, %p370
      %p372 = scmp.ne.s32.totalorder %s363, %s364
      %p373 = scmp.eq.s32.totalorder %s75, 0
      %p374 = por %p372, %p373
      %p375 = scmp.ne.s32.totalorder %s363, %s364
      %p376 = scmp.eq.s32.totalorder %s76, 1
      %p377 = por %p375, %p376
      %p379 = scmp.ne.s32.totalorder %s364, %s378
      %p380 = scmp.eq.s32.totalorder %s76, 0
      %p381 = por %p379, %p380
      %s383 = sadd.s32 %s382, 1
      %p386 = scmp.eq.s32.totalorder %s70, 1
      %p387 = scmp.ne.s32.totalorder %s382, %s384
      %p388 = scmp.eq.s32.totalorder %s70, 0
      %p389 = por %p387, %p388
      %p390 = scmp.ne.s32.totalorder %s382, %s384
      %p391 = scmp.eq.s32.totalorder %s75, 1
      %p392 = por %p390, %p391
      %p393 = scmp.ne.s32.totalorder %s384, %s385
      %p394 = scmp.eq.s32.totalorder %s75, 0
      %p395 = por %p393, %p394
      %p396 = scmp.ne.s32.totalorder %s384, %s385
      %p397 = scmp.eq.s32.totalorder %s76, 1
      %p398 = por %p396, %p397
      %p400 = scmp.ne.s32.totalorder %s385, %s399
      %p401 = scmp.eq.s32.totalorder %s76, 0
      %p402 = por %p400, %p401
      %s404 = sadd.s32 %s403, 1
      %p407 = scmp.eq.s32.totalorder %s70, 1
      %p408 = scmp.ne.s32.totalorder %s403, %s405
      %p409 = scmp.eq.s32.totalorder %s70, 0
      %p410 = por %p408, %p409
      %p411 = scmp.ne.s32.totalorder %s403, %s405
      %p412 = scmp.eq.s32.totalorder %s75, 1
      %p413 = por %p411, %p412
      %p414 = scmp.ne.s32.totalorder %s405, %s406
      %p415 = scmp.eq.s32.totalorder %s75, 0
      %p416 = por %p414, %p415
      %p417 = scmp.ne.s32.totalorder %s405, %s406
      %p418 = scmp.eq.s32.totalorder %s76, 1
      %p419 = por %p417, %p418
      %p421 = scmp.ne.s32.totalorder %s406, %s420
      %p422 = scmp.eq.s32.totalorder %s76, 0
      %p423 = por %p421, %p422
      %s425 = sadd.s32 %s424, 1
      %p428 = scmp.eq.s32.totalorder %s70, 1
      %p429 = scmp.ne.s32.totalorder %s424, %s426
      %p430 = scmp.eq.s32.totalorder %s70, 0
      %p431 = por %p429, %p430
      %p432 = scmp.ne.s32.totalorder %s424, %s426
      %p433 = scmp.eq.s32.totalorder %s75, 1
      %p434 = por %p432, %p433
      %p435 = scmp.ne.s32.totalorder %s426, %s427
      %p436 = scmp.eq.s32.totalorder %s75, 0
      %p437 = por %p435, %p436
      %p438 = scmp.ne.s32.totalorder %s426, %s427
      %p439 = scmp.eq.s32.totalorder %s76, 1
      %p440 = por %p438, %p439
      %p442 = scmp.ne.s32.totalorder %s427, %s441
      %p443 = scmp.eq.s32.totalorder %s76, 0
      %p444 = por %p442, %p443
      %s446 = sadd.s32 %s445, 1
      %p449 = scmp.eq.s32.totalorder %s70, 1
      %p450 = scmp.ne.s32.totalorder %s445, %s447
      %p451 = scmp.eq.s32.totalorder %s70, 0
      %p452 = por %p450, %p451
      %p453 = scmp.ne.s32.totalorder %s445, %s447
      %p454 = scmp.eq.s32.totalorder %s75, 1
      %p455 = por %p453, %p454
      %p456 = scmp.ne.s32.totalorder %s447, %s448
      %p457 = scmp.eq.s32.totalorder %s75, 0
      %p458 = por %p456, %p457
      %p459 = scmp.ne.s32.totalorder %s447, %s448
      %p460 = scmp.eq.s32.totalorder %s76, 1
      %p461 = por %p459, %p460
      %p463 = scmp.ne.s32.totalorder %s448, %s462
      %p464 = scmp.eq.s32.totalorder %s76, 0
      %p465 = por %p463, %p464
      %s467 = sadd.s32 %s466, 1
      %p470 = scmp.eq.s32.totalorder %s70, 1
      %p471 = scmp.ne.s32.totalorder %s466, %s468
      %p472 = scmp.eq.s32.totalorder %s70, 0
      %p473 = por %p471, %p472
      %p474 = scmp.ne.s32.totalorder %s466, %s468
      %p475 = scmp.eq.s32.totalorder %s75, 1
      %p476 = por %p474, %p475
      %p477 = scmp.ne.s32.totalorder %s468, %s469
      %p478 = scmp.eq.s32.totalorder %s75, 0
      %p479 = por %p477, %p478
      %p480 = scmp.ne.s32.totalorder %s468, %s469
      %p481 = scmp.eq.s32.totalorder %s76, 1
      %p482 = por %p480, %p481
      %p484 = scmp.ne.s32.totalorder %s469, %s483
      %p485 = scmp.eq.s32.totalorder %s76, 0
      %p486 = por %p484, %p485
      %s488 = sadd.s32 %s487, 1
      %p491 = scmp.eq.s32.totalorder %s70, 1
      %p492 = scmp.ne.s32.totalorder %s487, %s489
      %p493 = scmp.eq.s32.totalorder %s70, 0
      %p494 = por %p492, %p493
      %p495 = scmp.ne.s32.totalorder %s487, %s489
      %p496 = scmp.eq.s32.totalorder %s75, 1
      %p497 = por %p495, %p496
      %p498 = scmp.ne.s32.totalorder %s489, %s490
      %p499 = scmp.eq.s32.totalorder %s75, 0
      %p500 = por %p498, %p499
      %p501 = scmp.ne.s32.totalorder %s489, %s490
      %p502 = scmp.eq.s32.totalorder %s76, 1
      %p503 = por %p501, %p502
      %p505 = scmp.ne.s32.totalorder %s490, %s504
      %p506 = scmp.eq.s32.totalorder %s76, 0
      %p507 = por %p505, %p506
      %s509 = sadd.s32 %s508, 1
      %p512 = scmp.eq.s32.totalorder %s70, 1
      %p513 = scmp.ne.s32.totalorder %s508, %s510
      %p514 = scmp.eq.s32.totalorder %s70, 0
      %p515 = por %p513, %p514
      %p516 = scmp.ne.s32.totalorder %s508, %s510
      %p517 = scmp.eq.s32.totalorder %s75, 1
      %p518 = por %p516, %p517
      %p519 = scmp.ne.s32.totalorder %s510, %s511
      %p520 = scmp.eq.s32.totalorder %s75, 0
      %p521 = por %p519, %p520
      %p522 = scmp.ne.s32.totalorder %s510, %s511
      %p523 = scmp.eq.s32.totalorder %s76, 1
      %p524 = por %p522, %p523
      %p526 = scmp.ne.s32.totalorder %s511, %s525
      %p527 = scmp.eq.s32.totalorder %s76, 0
      %p528 = por %p526, %p527
      %s530 = sadd.s32 %s529, 1
      %p533 = scmp.eq.s32.totalorder %s70, 1
      %p534 = scmp.ne.s32.totalorder %s529, %s531
      %p535 = scmp.eq.s32.totalorder %s70, 0
      %p536 = por %p534, %p535
      %p537 = scmp.ne.s32.totalorder %s529, %s531
      %p538 = scmp.eq.s32.totalorder %s75, 1
      %p539 = por %p537, %p538
      %p540 = scmp.ne.s32.totalorder %s531, %s532
      %p541 = scmp.eq.s32.totalorder %s75, 0
      %p542 = por %p540, %p541
      %p543 = scmp.ne.s32.totalorder %s531, %s532
      %p544 = scmp.eq.s32.totalorder %s76, 1
      %p545 = por %p543, %p544
      %p547 = scmp.ne.s32.totalorder %s532, %s546
      %p548 = scmp.eq.s32.totalorder %s76, 0
      %p549 = por %p547, %p548
      %s551 = sadd.s32 %s550, 1
      %p554 = scmp.eq.s32.totalorder %s70, 1
      %p555 = scmp.ne.s32.totalorder %s550, %s552
      %p556 = scmp.eq.s32.totalorder %s70, 0
      %p557 = por %p555, %p556
      %p558 = scmp.ne.s32.totalorder %s550, %s552
      %p559 = scmp.eq.s32.totalorder %s75, 1
      %p560 = por %p558, %p559
      %p561 = scmp.ne.s32.totalorder %s552, %s553
      %p562 = scmp.eq.s32.totalorder %s75, 0
      %p563 = por %p561, %p562
      %p564 = scmp.ne.s32.totalorder %s552, %s553
      %p565 = scmp.eq.s32.totalorder %s76, 1
      %p566 = por %p564, %p565
      %p568 = scmp.ne.s32.totalorder %s553, %s567
      %p569 = scmp.eq.s32.totalorder %s76, 0
      %p570 = por %p568, %p569
      %s572 = sadd.s32 %s571, 1
      %p575 = scmp.eq.s32.totalorder %s70, 1
      %p576 = scmp.ne.s32.totalorder %s571, %s573
      %p577 = scmp.eq.s32.totalorder %s70, 0
      %p578 = por %p576, %p577
      %p579 = scmp.ne.s32.totalorder %s571, %s573
      %p580 = scmp.eq.s32.totalorder %s75, 1
      %p581 = por %p579, %p580
      %p582 = scmp.ne.s32.totalorder %s573, %s574
      %p583 = scmp.eq.s32.totalorder %s75, 0
      %p584 = por %p582, %p583
      %p585 = scmp.ne.s32.totalorder %s573, %s574
      %p586 = scmp.eq.s32.totalorder %s76, 1
      %p587 = por %p585, %p586
      %p589 = scmp.ne.s32.totalorder %s574, %s588
      %p590 = scmp.eq.s32.totalorder %s76, 0
      %p591 = por %p589, %p590
      %s593 = sadd.s32 %s592, 1
      %p596 = scmp.eq.s32.totalorder %s70, 1
      %p597 = scmp.ne.s32.totalorder %s592, %s594
      %p598 = scmp.eq.s32.totalorder %s70, 0
      %p599 = por %p597, %p598
      %p600 = scmp.ne.s32.totalorder %s592, %s594
      %p601 = scmp.eq.s32.totalorder %s75, 1
      %p602 = por %p600, %p601
      %p603 = scmp.ne.s32.totalorder %s594, %s595
      %p604 = scmp.eq.s32.totalorder %s75, 0
      %p605 = por %p603, %p604
      %p606 = scmp.ne.s32.totalorder %s594, %s595
      %p607 = scmp.eq.s32.totalorder %s76, 1
      %p608 = por %p606, %p607
      %p610 = scmp.ne.s32.totalorder %s595, %s609
      %p611 = scmp.eq.s32.totalorder %s76, 0
      %p612 = por %p610, %p611
      %s614 = sadd.s32 %s613, 1
      %p617 = scmp.eq.s32.totalorder %s70, 1
      %p618 = scmp.ne.s32.totalorder %s613, %s615
      %p619 = scmp.eq.s32.totalorder %s70, 0
      %p620 = por %p618, %p619
      %p621 = scmp.ne.s32.totalorder %s613, %s615
      %p622 = scmp.eq.s32.totalorder %s75, 1
      %p623 = por %p621, %p622
      %p624 = scmp.ne.s32.totalorder %s615, %s616
      %p625 = scmp.eq.s32.totalorder %s75, 0
      %p626 = por %p624, %p625
      %p627 = scmp.ne.s32.totalorder %s615, %s616
      %p628 = scmp.eq.s32.totalorder %s76, 1
      %p629 = por %p627, %p628
      %p631 = scmp.ne.s32.totalorder %s616, %s630
      %p632 = scmp.eq.s32.totalorder %s76, 0
      %p633 = por %p631, %p632
      %s635 = sadd.s32 %s634, 1
      %p638 = scmp.eq.s32.totalorder %s70, 1
      %p639 = scmp.ne.s32.totalorder %s634, %s636
      %p640 = scmp.eq.s32.totalorder %s70, 0
      %p641 = por %p639, %p640
      %p642 = scmp.ne.s32.totalorder %s634, %s636
      %p643 = scmp.eq.s32.totalorder %s75, 1
      %p644 = por %p642, %p643
      %p645 = scmp.ne.s32.totalorder %s636, %s637
      %p646 = scmp.eq.s32.totalorder %s75, 0
      %p647 = por %p645, %p646
      %p648 = scmp.ne.s32.totalorder %s636, %s637
      %p649 = scmp.eq.s32.totalorder %s76, 1
      %p650 = por %p648, %p649
      %p652 = scmp.ne.s32.totalorder %s637, %s651
      %p653 = scmp.eq.s32.totalorder %s76, 0
      %p654 = por %p652, %p653
      %s656 = sadd.s32 %s655, 1
      %p659 = scmp.eq.s32.totalorder %s70, 1
      %p660 = scmp.ne.s32.totalorder %s655, %s657
      %p661 = scmp.eq.s32.totalorder %s70, 0
      %p662 = por %p660, %p661
      %p663 = scmp.ne.s32.totalorder %s655, %s657
      %p664 = scmp.eq.s32.totalorder %s75, 1
      %p665 = por %p663, %p664
      %p666 = scmp.ne.s32.totalorder %s657, %s658
      %p667 = scmp.eq.s32.totalorder %s75, 0
      %p668 = por %p666, %p667
      %p669 = scmp.ne.s32.totalorder %s657, %s658
      %p670 = scmp.eq.s32.totalorder %s76, 1
      %p671 = por %p669, %p670
      %p673 = scmp.ne.s32.totalorder %s658, %s672
      %p674 = scmp.eq.s32.totalorder %s76, 0
      %p675 = por %p673, %p674
      %s677 = sadd.s32 %s676, 1
      %p680 = scmp.eq.s32.totalorder %s70, 1
      %p681 = scmp.ne.s32.totalorder %s676, %s678
      %p682 = scmp.eq.s32.totalorder %s70, 0
      %p683 = por %p681, %p682
      %p684 = scmp.ne.s32.totalorder %s676, %s678
      %p685 = scmp.eq.s32.totalorder %s75, 1
      %p686 = por %p684, %p685
      %p687 = scmp.ne.s32.totalorder %s678, %s679
      %p688 = scmp.eq.s32.totalorder %s75, 0
      %p689 = por %p687, %p688
      %p690 = scmp.ne.s32.totalorder %s678, %s679
      %p691 = scmp.eq.s32.totalorder %s76, 1
      %p692 = por %p690, %p691
      %p694 = scmp.ne.s32.totalorder %s679, %s693
      %p695 = scmp.eq.s32.totalorder %s76, 0
      %p696 = por %p694, %p695
      %s697 = ssub.s32 %s70, %s77
      %p698 = scmp.eq.s32.totalorder %s697, 0
      %s700 = sadd.s32 %s699, 1
      %s701 = scalar_select %p698, %s699, %s700
      %p704 = pneg %p698
      %p705 = scmp.eq.s32.totalorder %s70, 1
      %p706 = por %p704, %p705
      %p707 = scmp.ne.s32.totalorder %s699, %s702
      %p708 = scmp.eq.s32.totalorder %s70, 0
      %p709 = por %p707, %p708
      %p710 = scmp.ne.s32.totalorder %s699, %s702
      %p711 = scmp.eq.s32.totalorder %s75, 1
      %p712 = por %p710, %p711
      %p713 = scmp.ne.s32.totalorder %s702, %s703
      %p714 = scmp.eq.s32.totalorder %s75, 0
      %p715 = por %p713, %p714
      %p716 = scmp.ne.s32.totalorder %s702, %s703
      %p717 = scmp.eq.s32.totalorder %s76, 1
      %p718 = por %p716, %p717
      %p720 = scmp.ne.s32.totalorder %s703, %s719
      %p721 = scmp.eq.s32.totalorder %s76, 0
      %p722 = por %p720, %p721
      %p723 = scmp.le.s32.totalorder 1, %s70
      %p724 = scmp.lt.s32.totalorder %s70, 3
      %p725 = pnand %p723, %p724
      %p726 = pneg %p725
      // Predicated region
      $region9: #{tpu_custom_call.1} parent=5 // pred_check
        _
      $region10: #{tpu_custom_call.1} parent=5 // pred_check_branch
        %728 = sbr.rel (%p725) target = $region12
      $region11: #{tpu_custom_call.1} parent=5 // pred_region
        %s729 = ssub.s32 %s70, 1
        // Predicated region
        $region13: #{tpu_custom_call.1} parent=11 // pred_check
          %p730 = pneg %p143
        $region14: #{tpu_custom_call.1} parent=11 // pred_check_branch
          %732 = sbr.rel (%p730) target = $region16
        $region15: #{tpu_custom_call.1} parent=11 // pred_region
          %734 = vsyncadd [#allocation3], 0
          %s736 = sshll.u32 %s5, 4
          %s737 = int_to_ptr.hbm [resolvable:$true] %s736
          %s738 = sshll.u32 [#allocation2], 4
          %s739 = int_to_ptr.vmem [resolvable:$true] %s738
          %741 = dma.hbm_to_vmem [thread:$0]  %s737, 64, %s739, [#allocation3]
        $region16: #{tpu_custom_call.1} parent=11 // pred_fallthru
          _
        // Predicated region
        $region17: #{tpu_custom_call.1} parent=11 // pred_check
          %p742 = pneg %p164
        $region18: #{tpu_custom_call.1} parent=11 // pred_check_branch
          %744 = sbr.rel (%p742) target = $region20
        $region19: #{tpu_custom_call.1} parent=11 // pred_region
          _
        $region20: #{tpu_custom_call.1} parent=11 // pred_fallthru
          _
        // Predicated region
        $region21: #{tpu_custom_call.1} parent=11 // pred_check
          %p745 = pneg %p185
        $region22: #{tpu_custom_call.1} parent=11 // pred_check_branch
          %747 = sbr.rel (%p745) target = $region24
        $region23: #{tpu_custom_call.1} parent=11 // pred_region
          _
        $region24: #{tpu_custom_call.1} parent=11 // pred_fallthru
          _
        // Predicated region
        $region25: #{tpu_custom_call.1} parent=11 // pred_check
          %p748 = pneg %p206
        $region26: #{tpu_custom_call.1} parent=11 // pred_check_branch
          %750 = sbr.rel (%p748) target = $region28
        $region27: #{tpu_custom_call.1} parent=11 // pred_region
          _
        $region28: #{tpu_custom_call.1} parent=11 // pred_fallthru
          _
        // Predicated region
        $region29: #{tpu_custom_call.1} parent=11 // pred_check
          %p751 = pneg %p227
        $region30: #{tpu_custom_call.1} parent=11 // pred_check_branch
          %753 = sbr.rel (%p751) target = $region32
        $region31: #{tpu_custom_call.1} parent=11 // pred_region
          _
        $region32: #{tpu_custom_call.1} parent=11 // pred_fallthru
          _
        // Predicated region
        $region33: #{tpu_custom_call.1} parent=11 // pred_check
          %p754 = pneg %p248
        $region34: #{tpu_custom_call.1} parent=11 // pred_check_branch
          %756 = sbr.rel (%p754) target = $region36
        $region35: #{tpu_custom_call.1} parent=11 // pred_region
          _
        $region36: #{tpu_custom_call.1} parent=11 // pred_fallthru
          _
        // Predicated region
        $region37: #{tpu_custom_call.1} parent=11 // pred_check
          %p757 = pneg %p269
        $region38: #{tpu_custom_call.1} parent=11 // pred_check_branch
          %759 = sbr.rel (%p757) target = $region40
        $region39: #{tpu_custom_call.1} parent=11 // pred_region
          _
        $region40: #{tpu_custom_call.1} parent=11 // pred_fallthru
          _
        // Predicated region
        $region41: #{tpu_custom_call.1} parent=11 // pred_check
          %p760 = pneg %p290
        $region42: #{tpu_custom_call.1} parent=11 // pred_check_branch
          %762 = sbr.rel (%p760) target = $region44
        $region43: #{tpu_custom_call.1} parent=11 // pred_region
          _
        $region44: #{tpu_custom_call.1} parent=11 // pred_fallthru
          _
        // Predicated region
        $region45: #{tpu_custom_call.1} parent=11 // pred_check
          %p763 = pneg %p311
        $region46: #{tpu_custom_call.1} parent=11 // pred_check_branch
          %765 = sbr.rel (%p763) target = $region48
        $region47: #{tpu_custom_call.1} parent=11 // pred_region
          _
        $region48: #{tpu_custom_call.1} parent=11 // pred_fallthru
          _
        // Predicated region
        $region49: #{tpu_custom_call.1} parent=11 // pred_check
          %p766 = pneg %p332
        $region50: #{tpu_custom_call.1} parent=11 // pred_check_branch
          %768 = sbr.rel (%p766) target = $region52
        $region51: #{tpu_custom_call.1} parent=11 // pred_region
          _
        $region52: #{tpu_custom_call.1} parent=11 // pred_fallthru
          _
        // Predicated region
        $region53: #{tpu_custom_call.1} parent=11 // pred_check
          %p769 = pneg %p353
        $region54: #{tpu_custom_call.1} parent=11 // pred_check_branch
          %771 = sbr.rel (%p769) target = $region56
        $region55: #{tpu_custom_call.1} parent=11 // pred_region
          _
        $region56: #{tpu_custom_call.1} parent=11 // pred_fallthru
          _
        // Predicated region
        $region57: #{tpu_custom_call.1} parent=11 // pred_check
          %p772 = pneg %p374
        $region58: #{tpu_custom_call.1} parent=11 // pred_check_branch
          %774 = sbr.rel (%p772) target = $region60
        $region59: #{tpu_custom_call.1} parent=11 // pred_region
          _
        $region60: #{tpu_custom_call.1} parent=11 // pred_fallthru
          _
        // Predicated region
        $region61: #{tpu_custom_call.1} parent=11 // pred_check
          %p775 = pneg %p395
        $region62: #{tpu_custom_call.1} parent=11 // pred_check_branch
          %777 = sbr.rel (%p775) target = $region64
        $region63: #{tpu_custom_call.1} parent=11 // pred_region
          _
        $region64: #{tpu_custom_call.1} parent=11 // pred_fallthru
          _
        // Predicated region
        $region65: #{tpu_custom_call.1} parent=11 // pred_check
          %p778 = pneg %p416
        $region66: #{tpu_custom_call.1} parent=11 // pred_check_branch
          %780 = sbr.rel (%p778) target = $region68
        $region67: #{tpu_custom_call.1} parent=11 // pred_region
          _
        $region68: #{tpu_custom_call.1} parent=11 // pred_fallthru
          _
        // Predicated region
        $region69: #{tpu_custom_call.1} parent=11 // pred_check
          %p781 = pneg %p437
        $region70: #{tpu_custom_call.1} parent=11 // pred_check_branch
          %783 = sbr.rel (%p781) target = $region72
        $region71: #{tpu_custom_call.1} parent=11 // pred_region
          _
        $region72: #{tpu_custom_call.1} parent=11 // pred_fallthru
          _
        // Predicated region
        $region73: #{tpu_custom_call.1} parent=11 // pred_check
          %p784 = pneg %p458
        $region74: #{tpu_custom_call.1} parent=11 // pred_check_branch
          %786 = sbr.rel (%p784) target = $region76
        $region75: #{tpu_custom_call.1} parent=11 // pred_region
          _
        $region76: #{tpu_custom_call.1} parent=11 // pred_fallthru
          _
        // Predicated region
        $region77: #{tpu_custom_call.1} parent=11 // pred_check
          %p787 = pneg %p479
        $region78: #{tpu_custom_call.1} parent=11 // pred_check_branch
          %789 = sbr.rel (%p787) target = $region80
        $region79: #{tpu_custom_call.1} parent=11 // pred_region
          _
        $region80: #{tpu_custom_call.1} parent=11 // pred_fallthru
          _
        // Predicated region
        $region81: #{tpu_custom_call.1} parent=11 // pred_check
          %p790 = pneg %p500
        $region82: #{tpu_custom_call.1} parent=11 // pred_check_branch
          %792 = sbr.rel (%p790) target = $region84
        $region83: #{tpu_custom_call.1} parent=11 // pred_region
          _
        $region84: #{tpu_custom_call.1} parent=11 // pred_fallthru
          _
        // Predicated region
        $region85: #{tpu_custom_call.1} parent=11 // pred_check
          %p793 = pneg %p521
        $region86: #{tpu_custom_call.1} parent=11 // pred_check_branch
          %795 = sbr.rel (%p793) target = $region88
        $region87: #{tpu_custom_call.1} parent=11 // pred_region
          _
        $region88: #{tpu_custom_call.1} parent=11 // pred_fallthru
          _
        // Predicated region
        $region89: #{tpu_custom_call.1} parent=11 // pred_check
          %p796 = pneg %p542
        $region90: #{tpu_custom_call.1} parent=11 // pred_check_branch
          %798 = sbr.rel (%p796) target = $region92
        $region91: #{tpu_custom_call.1} parent=11 // pred_region
          _
        $region92: #{tpu_custom_call.1} parent=11 // pred_fallthru
          _
        // Predicated region
        $region93: #{tpu_custom_call.1} parent=11 // pred_check
          %p799 = pneg %p563
        $region94: #{tpu_custom_call.1} parent=11 // pred_check_branch
          %801 = sbr.rel (%p799) target = $region96
        $region95: #{tpu_custom_call.1} parent=11 // pred_region
          _
        $region96: #{tpu_custom_call.1} parent=11 // pred_fallthru
          _
        // Predicated region
        $region97: #{tpu_custom_call.1} parent=11 // pred_check
          %p802 = pneg %p584
        $region98: #{tpu_custom_call.1} parent=11 // pred_check_branch
          %804 = sbr.rel (%p802) target = $region100
        $region99: #{tpu_custom_call.1} parent=11 // pred_region
          _
        $region100: #{tpu_custom_call.1} parent=11 // pred_fallthru
          _
        // Predicated region
        $region101: #{tpu_custom_call.1} parent=11 // pred_check
          %p805 = pneg %p605
        $region102: #{tpu_custom_call.1} parent=11 // pred_check_branch
          %807 = sbr.rel (%p805) target = $region104
        $region103: #{tpu_custom_call.1} parent=11 // pred_region
          _
        $region104: #{tpu_custom_call.1} parent=11 // pred_fallthru
          _
        // Predicated region
        $region105: #{tpu_custom_call.1} parent=11 // pred_check
          %p808 = pneg %p626
        $region106: #{tpu_custom_call.1} parent=11 // pred_check_branch
          %810 = sbr.rel (%p808) target = $region108
        $region107: #{tpu_custom_call.1} parent=11 // pred_region
          _
        $region108: #{tpu_custom_call.1} parent=11 // pred_fallthru
          _
        // Predicated region
        $region109: #{tpu_custom_call.1} parent=11 // pred_check
          %p811 = pneg %p647
        $region110: #{tpu_custom_call.1} parent=11 // pred_check_branch
          %813 = sbr.rel (%p811) target = $region112
        $region111: #{tpu_custom_call.1} parent=11 // pred_region
          _
        $region112: #{tpu_custom_call.1} parent=11 // pred_fallthru
          _
        // Predicated region
        $region113: #{tpu_custom_call.1} parent=11 // pred_check
          %p814 = pneg %p668
        $region114: #{tpu_custom_call.1} parent=11 // pred_check_branch
          %816 = sbr.rel (%p814) target = $region116
        $region115: #{tpu_custom_call.1} parent=11 // pred_region
          %818 = vsyncadd [#allocation6], 0
          %s819 = sshll.u32 %s55, 4
          %s820 = int_to_ptr.hbm [resolvable:$true] %s819
          %s821 = sshll.u32 [#allocation5], 4
          %s822 = int_to_ptr.vmem [resolvable:$true] %s821
          %827 = dma.hbm_to_vmem [thread:$0]  %s820, 256, %s822, [#allocation6], 128, 128, 8
        $region116: #{tpu_custom_call.1} parent=11 // pred_fallthru
          _
        // Predicated region
        $region117: #{tpu_custom_call.1} parent=11 // pred_check
          %p828 = pneg %p689
        $region118: #{tpu_custom_call.1} parent=11 // pred_check_branch
          %830 = sbr.rel (%p828) target = $region120
        $region119: #{tpu_custom_call.1} parent=11 // pred_region
          %832 = vsyncadd [#allocation6], 0
          %s833 = sshll.u32 %s57, 4
          %s834 = int_to_ptr.hbm [resolvable:$true] %s833
          %s835 = sshll.u32 [#allocation7], 4
          %s836 = int_to_ptr.vmem [resolvable:$true] %s835
          %841 = dma.hbm_to_vmem [thread:$0]  %s834, 256, %s836, [#allocation6], 128, 128, 8
        $region120: #{tpu_custom_call.1} parent=11 // pred_fallthru
          _
      $region12: #{tpu_custom_call.1} parent=5 // pred_fallthru
        _
      %p842 = scmp.lt.s32.totalorder %s70, 2
      // Predicated region
      $region121: #{tpu_custom_call.1} parent=5 // pred_check
        %p843 = pneg %p842
      $region122: #{tpu_custom_call.1} parent=5 // pred_check_branch
        %845 = sbr.rel (%p843) target = $region124
      $region123: #{tpu_custom_call.1} parent=5 // pred_region
        // Predicated region
        $region125: #{tpu_custom_call.1} parent=123 // pred_check
          %p846 = pneg %p90
        $region126: #{tpu_custom_call.1} parent=123 // pred_check_branch
          %848 = sbr.rel (%p846) target = $region128
        $region127: #{tpu_custom_call.1} parent=123 // pred_region
          %p849 = scmp.lt.s32.totalorder %s70, 1
          %s850 = scalar_select %p849, %s70, 1
          %s851 = smul.addr %s850, 4
          %s852 = smul.addr %s851, 8
          %s853 = scalar_lea.vmem %s1, %s852
        $region128: #{tpu_custom_call.1} parent=123 // pred_fallthru
          _
        // Predicated region
        $region129: #{tpu_custom_call.1} parent=123 // pred_check
          %p854 = pneg %p116
        $region130: #{tpu_custom_call.1} parent=123 // pred_check_branch
          %856 = sbr.rel (%p854) target = $region132
        $region131: #{tpu_custom_call.1} parent=123 // pred_region
          %p857 = scmp.lt.s32.totalorder %s70, 1
          %s858 = scalar_select %p857, %s70, 1
          %s859 = smul.addr %s858, 4
          %s860 = smul.addr %s859, 8
          %s861 = scalar_lea.vmem %s3, %s860
        $region132: #{tpu_custom_call.1} parent=123 // pred_fallthru
          _
      $region124: #{tpu_custom_call.1} parent=5 // pred_fallthru
        _
      %p862 = scmp.le.s32.totalorder 1, %s70
      %p863 = scmp.lt.s32.totalorder %s70, 3
      %p864 = pnand %p862, %p863
      %p865 = pneg %p864
      // Predicated region
      $region133: #{tpu_custom_call.1} parent=5 // pred_check
        _
      $region134: #{tpu_custom_call.1} parent=5 // pred_check_branch
        %867 = sbr.rel (%p864) target = $region136
      $region135: #{tpu_custom_call.1} parent=5 // pred_region
        %s868 = ssub.s32 %s70, 1
        // Predicated region
        $region137: #{tpu_custom_call.1} parent=135 // pred_check
          %p869 = pneg %p143
        $region138: #{tpu_custom_call.1} parent=135 // pred_check_branch
          %871 = sbr.rel (%p869) target = $region140
        $region139: #{tpu_custom_call.1} parent=135 // pred_region
          %873 = dma.done [#allocation3], 64
        $region140: #{tpu_custom_call.1} parent=135 // pred_fallthru
          _
        // Predicated region
        $region141: #{tpu_custom_call.1} parent=135 // pred_check
          %p874 = pneg %p668
        $region142: #{tpu_custom_call.1} parent=135 // pred_check_branch
          %876 = sbr.rel (%p874) target = $region144
        $region143: #{tpu_custom_call.1} parent=135 // pred_region
          %878 = dma.done [#allocation6], 256
        $region144: #{tpu_custom_call.1} parent=135 // pred_fallthru
          _
        // Predicated region
        $region145: #{tpu_custom_call.1} parent=135 // pred_check
          %p879 = pneg %p689
        $region146: #{tpu_custom_call.1} parent=135 // pred_check_branch
          %881 = sbr.rel (%p879) target = $region148
        $region147: #{tpu_custom_call.1} parent=135 // pred_region
          %883 = dma.done [#allocation6], 256
        $region148: #{tpu_custom_call.1} parent=135 // pred_fallthru
          _
        %p884 = scmp.lt.s32.totalorder %s75, 1
        %s885 = scalar_select %p884, %s75, 1
        %s886 = smul.addr %s885, 4
        %s887 = smul.addr %s886, 8
        %s888 = scalar_lea.vmem %s1, %s887
        %p889 = pneg %p96
        %p890 = pneg %p93
        %p891 = scmp.lt.s32.totalorder %s75, 1
        %s892 = scalar_select %p891, %s75, 1
        %s893 = smul.addr %s892, 4
        %s894 = smul.addr %s893, 8
        %s895 = scalar_lea.vmem %s3, %s894
        %p896 = pneg %p122
        %p897 = pneg %p119
        %p898 = pneg %p143
        %p899 = pneg %p140
        %p900 = pneg %p164
        %p901 = pneg %p161
        %p902 = pneg %p185
        %p903 = pneg %p182
        %p904 = pneg %p206
        %p905 = pneg %p203
        %p906 = pneg %p227
        %p907 = pneg %p224
        %p908 = pneg %p248
        %p909 = pneg %p245
        %p910 = pneg %p269
        %p911 = pneg %p266
        %p912 = pneg %p290
        %p913 = pneg %p287
        %p914 = pneg %p311
        %p915 = pneg %p308
        %p916 = pneg %p332
        %p917 = pneg %p329
        %p918 = pneg %p353
        %p919 = pneg %p350
        %p920 = pneg %p374
        %p921 = pneg %p371
        %p922 = pneg %p395
        %p923 = pneg %p392
        %p924 = pneg %p416
        %p925 = pneg %p413
        %p926 = pneg %p437
        %p927 = pneg %p434
        %p928 = pneg %p458
        %p929 = pneg %p455
        %p930 = pneg %p479
        %p931 = pneg %p476
        %p932 = pneg %p500
        %p933 = pneg %p497
        %p934 = pneg %p521
        %p935 = pneg %p518
        %p936 = pneg %p542
        %p937 = pneg %p539
        %p938 = pneg %p563
        %p939 = pneg %p560
        %p940 = pneg %p584
        %p941 = pneg %p581
        %p942 = pneg %p605
        %p943 = pneg %p602
        %p944 = pneg %p626
        %p945 = pneg %p623
        %p946 = pneg %p647
        %p947 = pneg %p644
        %p948 = pneg %p668
        %p949 = pneg %p665
        %p950 = pneg %p689
        %p951 = pneg %p686
        %p952 = pneg %p715
        %p953 = pneg %p712
        %s954 = sand.u32 %s702, 1
        %s955 = scalar_lea.sflag [#allocation4], %s954
        %s956 = sand.u32 %s702, 1
        %s957 = smul.addr %s956, 32
        %s958 = scalar_lea.vmem [#allocation8], %s957
        %p959 = scmp.lt.s32.totalorder %s75, 1
        %s960 = scalar_select %p959, %s75, 1
        %s961 = smul.addr %s960, 4
        %s962 = smul.addr %s961, 8
        %s963 = scalar_lea.vmem %s1, %s962
        %p964 = scmp.lt.s32.totalorder %s75, 1
        %s965 = scalar_select %p964, %s75, 1
        %s966 = smul.addr %s965, 4
        %s967 = smul.addr %s966, 8
        %s968 = scalar_lea.vmem %s3, %s967
        %v969 = vld [vmem:[%s963] sm:$0xff]
        %v970 = vld [vmem:[%s963 + $0x8] sm:$0xff]
        %v971 = vld [vmem:[%s963 + $0x10] sm:$0xff]
        %v972 = vld [vmem:[%s963 + $0x18] sm:$0xff]
        %v973 = vld [vmem:[%s968] sm:$0xff]
        %v974 = vld [vmem:[%s968 + $0x8] sm:$0xff]
        %v975 = vld [vmem:[%s968 + $0x10] sm:$0xff]
        %v976 = vld [vmem:[%s968 + $0x18] sm:$0x3]
        %v977 = vld [vmem:[%s31] sm:$0xff]
        %v978 = vld [vmem:[%s31 + $0x8] sm:$0xff]
        %v979 = vld [vmem:[%s31 + $0x10] sm:$0xff]
        %v980 = vld [vmem:[%s31 + $0x18] sm:$0xff]
        %v981 = vld [vmem:[%s31 + $0x20] sm:$0xff]
        %v982 = vld [vmem:[%s31 + $0x28] sm:$0xff]
        %v983 = vld [vmem:[%s31 + $0x30] sm:$0xff]
        %v984 = vld [vmem:[%s31 + $0x38] sm:$0xff]
        %v985 = vld [vmem:[%s31 + $0x40] sm:$0xff]
        %v986 = vld [vmem:[%s31 + $0x48] sm:$0xff]
        %v987 = vld [vmem:[%s31 + $0x50] sm:$0xff]
        %v988 = vld [vmem:[%s31 + $0x58] sm:$0xff]
        %v989 = vld [vmem:[%s31 + $0x60] sm:$0xff]
        %v990 = vld [vmem:[%s31 + $0x68] sm:$0xff]
        %v991 = vld [vmem:[%s31 + $0x70] sm:$0xff]
        %v992 = vld [vmem:[%s31 + $0x78] sm:$0xff]
        %v993 = vld [vmem:[%s31 + $0x80] sm:$0xff]
        %v994 = vld [vmem:[%s31 + $0x88] sm:$0xff]
        %v995 = vld [vmem:[%s31 + $0x90] sm:$0xff]
        %v996 = vld [vmem:[%s31 + $0x98] sm:$0xff]
        %v997 = vld [vmem:[%s31 + $0xa0] sm:$0xff]
        %v998 = vld [vmem:[%s31 + $0xa8] sm:$0xff]
        %v999 = vld [vmem:[%s31 + $0xb0] sm:$0xff]
        %v1000 = vld [vmem:[%s31 + $0xb8] sm:$0xff]
        %v1001 = vld [vmem:[%s31 + $0xc0] sm:$0xff]
        %v1002 = vld [vmem:[%s31 + $0xc8] sm:$0xff]
        %v1003 = vld [vmem:[%s31 + $0xd0] sm:$0xff]
        %v1004 = vld [vmem:[%s31 + $0xd8] sm:$0xff]
        %v1005 = vld [vmem:[%s31 + $0xe0] sm:$0xff]
        %v1006 = vld [vmem:[%s31 + $0xe8] sm:$0xff]
        %v1007 = vld [vmem:[%s31 + $0xf0] sm:$0xff]
        %v1008 = vld [vmem:[%s31 + $0xf8] sm:$0xff]
        %v1009 = vld [vmem:[%s49] sm:$0x1]
        %v1011 = vperm.slane %v1009, 0
        %1013 = vmatpush.msra.mxu0 %v992
        %1014 = vmatpush.msra.mxu0 %v991
        %1015 = vmatpush.msra.mxu0 %v990
        %1016 = vmatpush.msra.mxu0 %v989
        %1017 = vmatpush.msra.mxu0 %v988
        %1018 = vmatpush.msra.mxu0 %v987
        %1019 = vmatpush.msra.mxu0 %v986
        %1020 = vmatpush.msra.mxu0 %v985
        %1021 = vmatpush.msra.mxu0 %v984
        %1022 = vmatpush.msra.mxu0 %v983
        %1023 = vmatpush.msra.mxu0 %v982
        %1024 = vmatpush.msra.mxu0 %v981
        %1025 = vmatpush.msra.mxu0 %v980
        %1026 = vmatpush.msra.mxu0 %v979
        %1027 = vmatpush.msra.mxu0 %v978
        %1028 = vmatpush.msra.mxu0 %v977
        %1029 = vmatmul.f32.gmra.mxu0 %v969
        %v1030 = vpop.f32.mrf.mxu0
        %v1031 = vadd.f32 %v1011, %v1030
        %1032 = vmatmul.f32.gmra.mxu0 %v971
        %v1033 = vpop.f32.mrf.mxu0
        %v1034 = vadd.f32 %v1011, %v1033
        %1035 = vdwg.mxu0
        %1036 = vmatpush.msra.mxu0 %v1008
        %1037 = vmatpush.msra.mxu0 %v1007
        %1038 = vmatpush.msra.mxu0 %v1006
        %1039 = vmatpush.msra.mxu0 %v1005
        %1040 = vmatpush.msra.mxu0 %v1004
        %1041 = vmatpush.msra.mxu0 %v1003
        %1042 = vmatpush.msra.mxu0 %v1002
        %1043 = vmatpush.msra.mxu0 %v1001
        %1044 = vmatpush.msra.mxu0 %v1000
        %1045 = vmatpush.msra.mxu0 %v999
        %1046 = vmatpush.msra.mxu0 %v998
        %1047 = vmatpush.msra.mxu0 %v997
        %1048 = vmatpush.msra.mxu0 %v996
        %1049 = vmatpush.msra.mxu0 %v995
        %1050 = vmatpush.msra.mxu0 %v994
        %1051 = vmatpush.msra.mxu0 %v993
        %1052 = vmatmul.f32.gmra.mxu0 %v970
        %v1053 = vpop.f32.mrf.mxu0
        %v1054 = vadd.f32 %v1031, %v1053
        %1055 = vmatmul.f32.gmra.mxu0 %v972
        %v1056 = vpop.f32.mrf.mxu0
        %v1057 = vadd.f32 %v1034, %v1056
        %1058 = vdwg.mxu0
        %v1059 = vld [vmem:[%s53] sm:$0xff]
        %v1060 = vld [vmem:[%s53 + $0x8] sm:$0x3f]
        %vm1061 = vcmask 211968
        %v1063 = vsel %vm1061, %v1059, 0
        %v1066 = vsel %vm1061, %v1060, 0
        %vm1068 = vcmask 1041408
        %v1070 = vsel %vm1068, %v976, 0
        %1072 = vmatpush.msra.mxu0 0.0
        %1073 = vmatpush.msra.mxu0 0.0
        %1074 = vmatpush.msra.mxu0 0.0
        %1075 = vmatpush.msra.mxu0 0.0
        %1076 = vmatpush.msra.mxu0 0.0
        %1077 = vmatpush.msra.mxu0 0.0
        %1078 = vmatpush.msra.mxu0 0.0
        %1079 = vmatpush.msra.mxu0 0.0
        %1080 = vmatpush.msra.mxu0 0.0
        %1081 = vmatpush.msra.mxu0 0.0
        %1082 = vmatpush.msra.mxu0 0.0
        %1083 = vmatpush.msra.mxu0 0.0
        %1084 = vmatpush.msra.mxu0 %v1070
        %1085 = vmatpush.msra.mxu0 %v975
        %1086 = vmatpush.msra.mxu0 %v974
        %1087 = vmatpush.msra.mxu0 %v973
        %1088 = vmatmul.f32.gmra.mxu0 %v1063
        %v1089 = vpop.f32.mrf.mxu0
        %v1090 = vadd.f32 0.0, %v1089
        %1091 = vmatmul.f32.gmra.mxu0 %v1066
        %v1092 = vpop.f32.mrf.mxu0
        %v1093 = vadd.f32 0.0, %v1092
        %1094 = vdwg.mxu0
        %v1095 = vld [vmem:[%s51] sm:$0xff]
        %v1096 = vld [vmem:[%s51 + $0x8] sm:$0x3f]
        %v1098 = vsel %vm1061, %v1095, 0
        %v1101 = vsel %vm1061, %v1096, 0
        %1103 = vmatpush.msra.mxu0 0.0
        %1104 = vmatpush.msra.mxu0 0.0
        %1105 = vmatpush.msra.mxu0 0.0
        %1106 = vmatpush.msra.mxu0 0.0
        %1107 = vmatpush.msra.mxu0 0.0
        %1108 = vmatpush.msra.mxu0 0.0
        %1109 = vmatpush.msra.mxu0 0.0
        %1110 = vmatpush.msra.mxu0 0.0
        %1111 = vmatpush.msra.mxu0 0.0
        %1112 = vmatpush.msra.mxu0 0.0
        %1113 = vmatpush.msra.mxu0 0.0
        %1114 = vmatpush.msra.mxu0 0.0
        %1115 = vmatpush.msra.mxu0 %v1070
        %1116 = vmatpush.msra.mxu0 %v975
        %1117 = vmatpush.msra.mxu0 %v974
        %1118 = vmatpush.msra.mxu0 %v973
        %1119 = vmatmul.f32.gmra.mxu0 %v1098
        %v1120 = vpop.f32.mrf.mxu0
        %v1121 = vadd.f32 0.0, %v1120
        %1122 = vmatmul.f32.gmra.mxu0 %v1101
        %v1123 = vpop.f32.mrf.mxu0
        %v1124 = vadd.f32 0.0, %v1123
        %1125 = vdwg.mxu0
        %v1126 = vadd.f32 %v1090, %v1121
        %v1127 = vadd.f32 %v1093, %v1124
        %v1128 = vld [vmem:[%s11] sm:$0xff]
        %v1129 = vld [vmem:[%s11 + $0x8] sm:$0xff]
        %v1130 = vld [vmem:[%s11 + $0x10] sm:$0xff]
        %v1131 = vld [vmem:[%s11 + $0x18] sm:$0x3]
        %v1133 = vsel %vm1061, %v1126, 0
        %v1136 = vsel %vm1061, %v1127, 0
        %v1139 = vsel %vm1068, %v1131, 0
        %1141 = vmatpush.msra.mxu0 0.0
        %1142 = vmatpush.msra.mxu0 0.0
        %1143 = vmatpush.msra.mxu0 0.0
        %1144 = vmatpush.msra.mxu0 0.0
        %1145 = vmatpush.msra.mxu0 0.0
        %1146 = vmatpush.msra.mxu0 0.0
        %1147 = vmatpush.msra.mxu0 0.0
        %1148 = vmatpush.msra.mxu0 0.0
        %1149 = vmatpush.msra.mxu0 0.0
        %1150 = vmatpush.msra.mxu0 0.0
        %1151 = vmatpush.msra.mxu0 0.0
        %1152 = vmatpush.msra.mxu0 0.0
        %1153 = vmatpush.msra.mxu0 %v1139
        %1154 = vmatpush.msra.mxu0 %v1130
        %1155 = vmatpush.msra.mxu0 %v1129
        %1156 = vmatpush.msra.mxu0 %v1128
        %1157 = vmatmul.f32.gmra.mxu0 %v1133
        %v1158 = vpop.f32.mrf.mxu0
        %v1159 = vadd.f32 0.0, %v1158
        %1160 = vmatmul.f32.gmra.mxu0 %v1136
        %v1161 = vpop.f32.mrf.mxu0
        %v1162 = vadd.f32 0.0, %v1161
        %1163 = vdwg.mxu0
        %v1164 = vld [vmem:[%s9] sm:$0xff]
        %v1165 = vld [vmem:[%s9 + $0x8] sm:$0xff]
        %v1166 = vld [vmem:[%s9 + $0x10] sm:$0xff]
        %v1167 = vld [vmem:[%s9 + $0x18] sm:$0x3]
        %v1169 = vsel %vm1061, %v1090, 0
        %v1172 = vsel %vm1061, %v1093, 0
        %v1175 = vsel %vm1068, %v1167, 0
        %1177 = vmatpush.msra.mxu0 0.0
        %1178 = vmatpush.msra.mxu0 0.0
        %1179 = vmatpush.msra.mxu0 0.0
        %1180 = vmatpush.msra.mxu0 0.0
        %1181 = vmatpush.msra.mxu0 0.0
        %1182 = vmatpush.msra.mxu0 0.0
        %1183 = vmatpush.msra.mxu0 0.0
        %1184 = vmatpush.msra.mxu0 0.0
        %1185 = vmatpush.msra.mxu0 0.0
        %1186 = vmatpush.msra.mxu0 0.0
        %1187 = vmatpush.msra.mxu0 0.0
        %1188 = vmatpush.msra.mxu0 0.0
        %1189 = vmatpush.msra.mxu0 %v1175
        %1190 = vmatpush.msra.mxu0 %v1166
        %1191 = vmatpush.msra.mxu0 %v1165
        %1192 = vmatpush.msra.mxu0 %v1164
        %1193 = vmatmul.f32.gmra.mxu0 %v1169
        %v1194 = vpop.f32.mrf.mxu0
        %v1195 = vadd.f32 0.0, %v1194
        %1196 = vmatmul.f32.gmra.mxu0 %v1172
        %v1197 = vpop.f32.mrf.mxu0
        %v1198 = vadd.f32 0.0, %v1197
        %1199 = vdwg.mxu0
        %v1200 = vld [vmem:[%s7] sm:$0xff]
        %v1201 = vld [vmem:[%s7 + $0x8] sm:$0xff]
        %v1202 = vld [vmem:[%s7 + $0x10] sm:$0xff]
        %v1203 = vld [vmem:[%s7 + $0x18] sm:$0x3]
        %v1205 = vsel %vm1061, %v1121, 0
        %v1208 = vsel %vm1061, %v1124, 0
        %v1211 = vsel %vm1068, %v1203, 0
        %1213 = vmatpush.msra.mxu0 0.0
        %1214 = vmatpush.msra.mxu0 0.0
        %1215 = vmatpush.msra.mxu0 0.0
        %1216 = vmatpush.msra.mxu0 0.0
        %1217 = vmatpush.msra.mxu0 0.0
        %1218 = vmatpush.msra.mxu0 0.0
        %1219 = vmatpush.msra.mxu0 0.0
        %1220 = vmatpush.msra.mxu0 0.0
        %1221 = vmatpush.msra.mxu0 0.0
        %1222 = vmatpush.msra.mxu0 0.0
        %1223 = vmatpush.msra.mxu0 0.0
        %1224 = vmatpush.msra.mxu0 0.0
        %1225 = vmatpush.msra.mxu0 %v1211
        %1226 = vmatpush.msra.mxu0 %v1202
        %1227 = vmatpush.msra.mxu0 %v1201
        %1228 = vmatpush.msra.mxu0 %v1200
        %1229 = vmatmul.f32.gmra.mxu0 %v1205
        %v1230 = vpop.f32.mrf.mxu0
        %v1231 = vadd.f32 0.0, %v1230
        %1232 = vmatmul.f32.gmra.mxu0 %v1208
        %v1233 = vpop.f32.mrf.mxu0
        %v1234 = vadd.f32 0.0, %v1233
        %1235 = vdwg.mxu0
        %v1236 = vsub.f32 %v1195, %v1231
        %v1237 = vsub.f32 %v1198, %v1234
        %v1238 = vsub.f32 %v1159, %v1195
        %v1239 = vsub.f32 %v1162, %v1198
        %v1240 = vsub.f32 %v1238, %v1231
        %v1241 = vsub.f32 %v1239, %v1234
        %v1242 = vmul.f32 %v1236, %v1236
        %v1243 = vmul.f32 %v1237, %v1237
        %v1244 = vmul.f32 %v1240, %v1240
        %v1245 = vmul.f32 %v1241, %v1241
        %v1246 = vadd.f32 %v1242, %v1244
        %v1247 = vadd.f32 %v1243, %v1245
        %v1248 = vld [vmem:[%s39] sm:$0xff]
        %v1249 = vld [vmem:[%s39 + $0x8] sm:$0xff]
        %v1250 = vld [vmem:[%s39 + $0x10] sm:$0xff]
        %v1251 = vld [vmem:[%s39 + $0x18] sm:$0xff]
        %v1252 = vld [vmem:[%s39 + $0x20] sm:$0xff]
        %v1253 = vld [vmem:[%s39 + $0x28] sm:$0xff]
        %v1254 = vld [vmem:[%s39 + $0x30] sm:$0xff]
        %v1255 = vld [vmem:[%s39 + $0x38] sm:$0xff]
        %vm1256 = vcmask 523264
        %v1258 = vsel %vm1256, %v1054, 0
        %v1261 = vsel %vm1256, %v1057, 0
        %1263 = vmatpush.msra.mxu0 0.0
        %1264 = vmatpush.msra.mxu0 0.0
        %1265 = vmatpush.msra.mxu0 0.0
        %1266 = vmatpush.msra.mxu0 0.0
        %1267 = vmatpush.msra.mxu0 0.0
        %1268 = vmatpush.msra.mxu0 0.0
        %1269 = vmatpush.msra.mxu0 0.0
        %1270 = vmatpush.msra.mxu0 0.0
        %1271 = vmatpush.msra.mxu0 %v1255
        %1272 = vmatpush.msra.mxu0 %v1254
        %1273 = vmatpush.msra.mxu0 %v1253
        %1274 = vmatpush.msra.mxu0 %v1252
        %1275 = vmatpush.msra.mxu0 %v1251
        %1276 = vmatpush.msra.mxu0 %v1250
        %1277 = vmatpush.msra.mxu0 %v1249
        %1278 = vmatpush.msra.mxu0 %v1248
        %1279 = vmatmul.f32.gmra.mxu0 %v1258
        %v1280 = vpop.f32.mrf.mxu0
        %v1281 = vadd.f32 0.0, %v1280
        %1282 = vmatmul.f32.gmra.mxu0 %v1261
        %v1283 = vpop.f32.mrf.mxu0
        %v1284 = vadd.f32 0.0, %v1283
        %1285 = vdwg.mxu0
        %v1286 = vld [vmem:[%s41] sm:$0xff]
        %v1287 = vld [vmem:[%s41 + $0x8] sm:$0xff]
        %v1288 = vld [vmem:[%s41 + $0x10] sm:$0xff]
        %v1289 = vld [vmem:[%s41 + $0x18] sm:$0xff]
        %v1290 = vld [vmem:[%s41 + $0x20] sm:$0xff]
        %v1291 = vld [vmem:[%s41 + $0x28] sm:$0xff]
        %v1292 = vld [vmem:[%s41 + $0x30] sm:$0xff]
        %v1293 = vld [vmem:[%s41 + $0x38] sm:$0xff]
        %1294 = vmatpush.msra.mxu0 0.0
        %1295 = vmatpush.msra.mxu0 0.0
        %1296 = vmatpush.msra.mxu0 0.0
        %1297 = vmatpush.msra.mxu0 0.0
        %1298 = vmatpush.msra.mxu0 0.0
        %1299 = vmatpush.msra.mxu0 0.0
        %1300 = vmatpush.msra.mxu0 0.0
        %1301 = vmatpush.msra.mxu0 0.0
        %1302 = vmatpush.msra.mxu0 %v1293
        %1303 = vmatpush.msra.mxu0 %v1292
        %1304 = vmatpush.msra.mxu0 %v1291
        %1305 = vmatpush.msra.mxu0 %v1290
        %1306 = vmatpush.msra.mxu0 %v1289
        %1307 = vmatpush.msra.mxu0 %v1288
        %1308 = vmatpush.msra.mxu0 %v1287
        %1309 = vmatpush.msra.mxu0 %v1286
        %1310 = vmatmul.f32.gmra.mxu0 %v1258
        %v1311 = vpop.f32.mrf.mxu0
        %v1312 = vadd.f32 0.0, %v1311
        %1313 = vmatmul.f32.gmra.mxu0 %v1261
        %v1314 = vpop.f32.mrf.mxu0
        %v1315 = vadd.f32 0.0, %v1314
        %1316 = vdwg.mxu0
        %v1317 = vld [vmem:[%s43] sm:$0xff]
        %v1318 = vld [vmem:[%s43 + $0x8] sm:$0xff]
        %v1319 = vld [vmem:[%s43 + $0x10] sm:$0xff]
        %v1320 = vld [vmem:[%s43 + $0x18] sm:$0xff]
        %v1321 = vld [vmem:[%s43 + $0x20] sm:$0xff]
        %v1322 = vld [vmem:[%s43 + $0x28] sm:$0xff]
        %v1323 = vld [vmem:[%s43 + $0x30] sm:$0xff]
        %v1324 = vld [vmem:[%s43 + $0x38] sm:$0xff]
        %1325 = vmatpush.msra.mxu0 0.0
        %1326 = vmatpush.msra.mxu0 0.0
        %1327 = vmatpush.msra.mxu0 0.0
        %1328 = vmatpush.msra.mxu0 0.0
        %1329 = vmatpush.msra.mxu0 0.0
        %1330 = vmatpush.msra.mxu0 0.0
        %1331 = vmatpush.msra.mxu0 0.0
        %1332 = vmatpush.msra.mxu0 0.0
        %1333 = vmatpush.msra.mxu0 %v1324
        %1334 = vmatpush.msra.mxu0 %v1323
        %1335 = vmatpush.msra.mxu0 %v1322
        %1336 = vmatpush.msra.mxu0 %v1321
        %1337 = vmatpush.msra.mxu0 %v1320
        %1338 = vmatpush.msra.mxu0 %v1319
        %1339 = vmatpush.msra.mxu0 %v1318
        %1340 = vmatpush.msra.mxu0 %v1317
        %1341 = vmatmul.f32.gmra.mxu0 %v1258
        %v1342 = vpop.f32.mrf.mxu0
        %v1343 = vadd.f32 0.0, %v1342
        %1344 = vmatmul.f32.gmra.mxu0 %v1261
        %v1345 = vpop.f32.mrf.mxu0
        %v1346 = vadd.f32 0.0, %v1345
        %1347 = vdwg.mxu0
        %v1348 = vld [vmem:[%s33] sm:$0xff]
        %v1349 = vld [vmem:[%s33 + $0x8] sm:$0xff]
        %v1350 = vld [vmem:[%s33 + $0x10] sm:$0xff]
        %v1351 = vld [vmem:[%s33 + $0x18] sm:$0x3]
        %vm1352 = vcmask 130048
        %v1354 = vsel %vm1352, %v1348, 0
        %v1357 = vsel %vm1352, %v1349, 0
        %v1360 = vsel %vm1352, %v1350, 0
        %v1363 = vsel %vm1352, %v1351, 0
        %1365 = vmatpush.msra.mxu0 0.0
        %1366 = vmatpush.msra.mxu0 0.0
        %1367 = vmatpush.msra.mxu0 0.0
        %1368 = vmatpush.msra.mxu0 0.0
        %1369 = vmatpush.msra.mxu0 0.0
        %1370 = vmatpush.msra.mxu0 0.0
        %1371 = vmatpush.msra.mxu0 0.0
        %1372 = vmatpush.msra.mxu0 0.0
        %1373 = vmatpush.msra.mxu0 0.0
        %1374 = vmatpush.msra.mxu0 0.0
        %1375 = vmatpush.msra.mxu0 0.0
        %1376 = vmatpush.msra.mxu0 0.0
        %1377 = vmatpush.msra.mxu0 0.0
        %1378 = vmatpush.msra.mxu0 0.0
        %1379 = vmatpush.msra.mxu0 %v1284
        %1380 = vmatpush.msra.mxu0 %v1281
        %1381 = vmatmul.f32.gmra.mxu0 %v1354
        %v1382 = vpop.f32.mrf.mxu0
        %v1383 = vadd.f32 0.0, %v1382
        %1384 = vmatmul.f32.gmra.mxu0 %v1357
        %v1385 = vpop.f32.mrf.mxu0
        %v1386 = vadd.f32 0.0, %v1385
        %1387 = vmatmul.f32.gmra.mxu0 %v1360
        %v1388 = vpop.f32.mrf.mxu0
        %v1389 = vadd.f32 0.0, %v1388
        %1390 = vmatmul.f32.gmra.mxu0 %v1363
        %v1391 = vpop.f32.mrf.mxu0
        %v1392 = vadd.f32 0.0, %v1391
        %1393 = vdwg.mxu0
        %1394 = vmatpush.msra.mxu0 0.0
        %1395 = vmatpush.msra.mxu0 0.0
        %1396 = vmatpush.msra.mxu0 0.0
        %1397 = vmatpush.msra.mxu0 0.0
        %1398 = vmatpush.msra.mxu0 0.0
        %1399 = vmatpush.msra.mxu0 0.0
        %1400 = vmatpush.msra.mxu0 0.0
        %1401 = vmatpush.msra.mxu0 0.0
        %1402 = vmatpush.msra.mxu0 0.0
        %1403 = vmatpush.msra.mxu0 0.0
        %1404 = vmatpush.msra.mxu0 0.0
        %1405 = vmatpush.msra.mxu0 0.0
        %1406 = vmatpush.msra.mxu0 0.0
        %1407 = vmatpush.msra.mxu0 0.0
        %1408 = vmatpush.msra.mxu0 %v1315
        %1409 = vmatpush.msra.mxu0 %v1312
        %1410 = vmatmul.f32.gmra.mxu0 %v1354
        %v1411 = vpop.f32.mrf.mxu0
        %v1412 = vadd.f32 0.0, %v1411
        %1413 = vmatmul.f32.gmra.mxu0 %v1357
        %v1414 = vpop.f32.mrf.mxu0
        %v1415 = vadd.f32 0.0, %v1414
        %1416 = vmatmul.f32.gmra.mxu0 %v1360
        %v1417 = vpop.f32.mrf.mxu0
        %v1418 = vadd.f32 0.0, %v1417
        %1419 = vmatmul.f32.gmra.mxu0 %v1363
        %v1420 = vpop.f32.mrf.mxu0
        %v1421 = vadd.f32 0.0, %v1420
        %1422 = vdwg.mxu0
        %1423 = vmatpush.msra.mxu0 0.0
        %1424 = vmatpush.msra.mxu0 0.0
        %1425 = vmatpush.msra.mxu0 0.0
        %1426 = vmatpush.msra.mxu0 0.0
        %1427 = vmatpush.msra.mxu0 0.0
        %1428 = vmatpush.msra.mxu0 0.0
        %1429 = vmatpush.msra.mxu0 0.0
        %1430 = vmatpush.msra.mxu0 0.0
        %1431 = vmatpush.msra.mxu0 0.0
        %1432 = vmatpush.msra.mxu0 0.0
        %1433 = vmatpush.msra.mxu0 0.0
        %1434 = vmatpush.msra.mxu0 0.0
        %1435 = vmatpush.msra.mxu0 0.0
        %1436 = vmatpush.msra.mxu0 0.0
        %1437 = vmatpush.msra.mxu0 %v1346
        %1438 = vmatpush.msra.mxu0 %v1343
        %1439 = vmatmul.f32.gmra.mxu0 %v1354
        %v1440 = vpop.f32.mrf.mxu0
        %v1441 = vadd.f32 0.0, %v1440
        %1442 = vmatmul.f32.gmra.mxu0 %v1357
        %v1443 = vpop.f32.mrf.mxu0
        %v1444 = vadd.f32 0.0, %v1443
        %1445 = vmatmul.f32.gmra.mxu0 %v1360
        %v1446 = vpop.f32.mrf.mxu0
        %v1447 = vadd.f32 0.0, %v1446
        %1448 = vmatmul.f32.gmra.mxu0 %v1363
        %v1449 = vpop.f32.mrf.mxu0
        %v1450 = vadd.f32 0.0, %v1449
        %1451 = vdwg.mxu0
        %v1452 = vld [vmem:[%s35] sm:$0xff]
        %v1453 = vld [vmem:[%s35 + $0x8] sm:$0xff]
        %v1454 = vld [vmem:[%s35 + $0x10] sm:$0xff]
        %v1455 = vld [vmem:[%s35 + $0x18] sm:$0x3]
        %v1457 = vsel %vm1352, %v1452, 0
        %v1460 = vsel %vm1352, %v1453, 0
        %v1463 = vsel %vm1352, %v1454, 0
        %v1466 = vsel %vm1352, %v1455, 0
        %1468 = vmatpush.msra.mxu0 0.0
        %1469 = vmatpush.msra.mxu0 0.0
        %1470 = vmatpush.msra.mxu0 0.0
        %1471 = vmatpush.msra.mxu0 0.0
        %1472 = vmatpush.msra.mxu0 0.0
        %1473 = vmatpush.msra.mxu0 0.0
        %1474 = vmatpush.msra.mxu0 0.0
        %1475 = vmatpush.msra.mxu0 0.0
        %1476 = vmatpush.msra.mxu0 0.0
        %1477 = vmatpush.msra.mxu0 0.0
        %1478 = vmatpush.msra.mxu0 0.0
        %1479 = vmatpush.msra.mxu0 0.0
        %1480 = vmatpush.msra.mxu0 0.0
        %1481 = vmatpush.msra.mxu0 0.0
        %1482 = vmatpush.msra.mxu0 %v1284
        %1483 = vmatpush.msra.mxu0 %v1281
        %1484 = vmatmul.f32.gmra.mxu0 %v1457
        %v1485 = vpop.f32.mrf.mxu0
        %v1486 = vadd.f32 0.0, %v1485
        %1487 = vmatmul.f32.gmra.mxu0 %v1460
        %v1488 = vpop.f32.mrf.mxu0
        %v1489 = vadd.f32 0.0, %v1488
        %1490 = vmatmul.f32.gmra.mxu0 %v1463
        %v1491 = vpop.f32.mrf.mxu0
        %v1492 = vadd.f32 0.0, %v1491
        %1493 = vmatmul.f32.gmra.mxu0 %v1466
        %v1494 = vpop.f32.mrf.mxu0
        %v1495 = vadd.f32 0.0, %v1494
        %1496 = vdwg.mxu0
        %1497 = vmatpush.msra.mxu0 0.0
        %1498 = vmatpush.msra.mxu0 0.0
        %1499 = vmatpush.msra.mxu0 0.0
        %1500 = vmatpush.msra.mxu0 0.0
        %1501 = vmatpush.msra.mxu0 0.0
        %1502 = vmatpush.msra.mxu0 0.0
        %1503 = vmatpush.msra.mxu0 0.0
        %1504 = vmatpush.msra.mxu0 0.0
        %1505 = vmatpush.msra.mxu0 0.0
        %1506 = vmatpush.msra.mxu0 0.0
        %1507 = vmatpush.msra.mxu0 0.0
        %1508 = vmatpush.msra.mxu0 0.0
        %1509 = vmatpush.msra.mxu0 0.0
        %1510 = vmatpush.msra.mxu0 0.0
        %1511 = vmatpush.msra.mxu0 %v1315
        %1512 = vmatpush.msra.mxu0 %v1312
        %1513 = vmatmul.f32.gmra.mxu0 %v1457
        %v1514 = vpop.f32.mrf.mxu0
        %v1515 = vadd.f32 0.0, %v1514
        %1516 = vmatmul.f32.gmra.mxu0 %v1460
        %v1517 = vpop.f32.mrf.mxu0
        %v1518 = vadd.f32 0.0, %v1517
        %1519 = vmatmul.f32.gmra.mxu0 %v1463
        %v1520 = vpop.f32.mrf.mxu0
        %v1521 = vadd.f32 0.0, %v1520
        %1522 = vmatmul.f32.gmra.mxu0 %v1466
        %v1523 = vpop.f32.mrf.mxu0
        %v1524 = vadd.f32 0.0, %v1523
        %1525 = vdwg.mxu0
        %1526 = vmatpush.msra.mxu0 0.0
        %1527 = vmatpush.msra.mxu0 0.0
        %1528 = vmatpush.msra.mxu0 0.0
        %1529 = vmatpush.msra.mxu0 0.0
        %1530 = vmatpush.msra.mxu0 0.0
        %1531 = vmatpush.msra.mxu0 0.0
        %1532 = vmatpush.msra.mxu0 0.0
        %1533 = vmatpush.msra.mxu0 0.0
        %1534 = vmatpush.msra.mxu0 0.0
        %1535 = vmatpush.msra.mxu0 0.0
        %1536 = vmatpush.msra.mxu0 0.0
        %1537 = vmatpush.msra.mxu0 0.0
        %1538 = vmatpush.msra.mxu0 0.0
        %1539 = vmatpush.msra.mxu0 0.0
        %1540 = vmatpush.msra.mxu0 %v1346
        %1541 = vmatpush.msra.mxu0 %v1343
        %1542 = vmatmul.f32.gmra.mxu0 %v1457
        %v1543 = vpop.f32.mrf.mxu0
        %v1544 = vadd.f32 0.0, %v1543
        %1545 = vmatmul.f32.gmra.mxu0 %v1460
        %v1546 = vpop.f32.mrf.mxu0
        %v1547 = vadd.f32 0.0, %v1546
        %1548 = vmatmul.f32.gmra.mxu0 %v1463
        %v1549 = vpop.f32.mrf.mxu0
        %v1550 = vadd.f32 0.0, %v1549
        %1551 = vmatmul.f32.gmra.mxu0 %v1466
        %v1552 = vpop.f32.mrf.mxu0
        %v1553 = vadd.f32 0.0, %v1552
        %1554 = vdwg.mxu0
        %v1555 = vld [vmem:[%s37] sm:$0xff]
        %v1556 = vld [vmem:[%s37 + $0x8] sm:$0xff]
        %v1557 = vld [vmem:[%s37 + $0x10] sm:$0xff]
        %v1558 = vld [vmem:[%s37 + $0x18] sm:$0x3]
        %v1560 = vsel %vm1352, %v1555, 0
        %v1563 = vsel %vm1352, %v1556, 0
        %v1566 = vsel %vm1352, %v1557, 0
        %v1569 = vsel %vm1352, %v1558, 0
        %1571 = vmatpush.msra.mxu0 0.0
        %1572 = vmatpush.msra.mxu0 0.0
        %1573 = vmatpush.msra.mxu0 0.0
        %1574 = vmatpush.msra.mxu0 0.0
        %1575 = vmatpush.msra.mxu0 0.0
        %1576 = vmatpush.msra.mxu0 0.0
        %1577 = vmatpush.msra.mxu0 0.0
        %1578 = vmatpush.msra.mxu0 0.0
        %1579 = vmatpush.msra.mxu0 0.0
        %1580 = vmatpush.msra.mxu0 0.0
        %1581 = vmatpush.msra.mxu0 0.0
        %1582 = vmatpush.msra.mxu0 0.0
        %1583 = vmatpush.msra.mxu0 0.0
        %1584 = vmatpush.msra.mxu0 0.0
        %1585 = vmatpush.msra.mxu0 %v1284
        %1586 = vmatpush.msra.mxu0 %v1281
        %1587 = vmatmul.f32.gmra.mxu0 %v1560
        %v1588 = vpop.f32.mrf.mxu0
        %v1589 = vadd.f32 0.0, %v1588
        %1590 = vmatmul.f32.gmra.mxu0 %v1563
        %v1591 = vpop.f32.mrf.mxu0
        %v1592 = vadd.f32 0.0, %v1591
        %1593 = vmatmul.f32.gmra.mxu0 %v1566
        %v1594 = vpop.f32.mrf.mxu0
        %v1595 = vadd.f32 0.0, %v1594
        %1596 = vmatmul.f32.gmra.mxu0 %v1569
        %v1597 = vpop.f32.mrf.mxu0
        %v1598 = vadd.f32 0.0, %v1597
        %1599 = vdwg.mxu0
        %1600 = vmatpush.msra.mxu0 0.0
        %1601 = vmatpush.msra.mxu0 0.0
        %1602 = vmatpush.msra.mxu0 0.0
        %1603 = vmatpush.msra.mxu0 0.0
        %1604 = vmatpush.msra.mxu0 0.0
        %1605 = vmatpush.msra.mxu0 0.0
        %1606 = vmatpush.msra.mxu0 0.0
        %1607 = vmatpush.msra.mxu0 0.0
        %1608 = vmatpush.msra.mxu0 0.0
        %1609 = vmatpush.msra.mxu0 0.0
        %1610 = vmatpush.msra.mxu0 0.0
        %1611 = vmatpush.msra.mxu0 0.0
        %1612 = vmatpush.msra.mxu0 0.0
        %1613 = vmatpush.msra.mxu0 0.0
        %1614 = vmatpush.msra.mxu0 %v1315
        %1615 = vmatpush.msra.mxu0 %v1312
        %1616 = vmatmul.f32.gmra.mxu0 %v1560
        %v1617 = vpop.f32.mrf.mxu0
        %v1618 = vadd.f32 0.0, %v1617
        %1619 = vmatmul.f32.gmra.mxu0 %v1563
        %v1620 = vpop.f32.mrf.mxu0
        %v1621 = vadd.f32 0.0, %v1620
        %1622 = vmatmul.f32.gmra.mxu0 %v1566
        %v1623 = vpop.f32.mrf.mxu0
        %v1624 = vadd.f32 0.0, %v1623
        %1625 = vmatmul.f32.gmra.mxu0 %v1569
        %v1626 = vpop.f32.mrf.mxu0
        %v1627 = vadd.f32 0.0, %v1626
        %1628 = vdwg.mxu0
        %1629 = vmatpush.msra.mxu0 0.0
        %1630 = vmatpush.msra.mxu0 0.0
        %1631 = vmatpush.msra.mxu0 0.0
        %1632 = vmatpush.msra.mxu0 0.0
        %1633 = vmatpush.msra.mxu0 0.0
        %1634 = vmatpush.msra.mxu0 0.0
        %1635 = vmatpush.msra.mxu0 0.0
        %1636 = vmatpush.msra.mxu0 0.0
        %1637 = vmatpush.msra.mxu0 0.0
        %1638 = vmatpush.msra.mxu0 0.0
        %1639 = vmatpush.msra.mxu0 0.0
        %1640 = vmatpush.msra.mxu0 0.0
        %1641 = vmatpush.msra.mxu0 0.0
        %1642 = vmatpush.msra.mxu0 0.0
        %1643 = vmatpush.msra.mxu0 %v1346
        %1644 = vmatpush.msra.mxu0 %v1343
        %1645 = vmatmul.f32.gmra.mxu0 %v1560
        %v1646 = vpop.f32.mrf.mxu0
        %v1647 = vadd.f32 0.0, %v1646
        %1648 = vmatmul.f32.gmra.mxu0 %v1563
        %v1649 = vpop.f32.mrf.mxu0
        %v1650 = vadd.f32 0.0, %v1649
        %1651 = vmatmul.f32.gmra.mxu0 %v1566
        %v1652 = vpop.f32.mrf.mxu0
        %v1653 = vadd.f32 0.0, %v1652
        %1654 = vmatmul.f32.gmra.mxu0 %v1569
        %v1655 = vpop.f32.mrf.mxu0
        %v1656 = vadd.f32 0.0, %v1655
        %1657 = vdwg.mxu0
        %v1658 = vmin.f32 %v1383, %v1412
        %v1659 = vmin.f32 %v1386, %v1415
        %v1660 = vmin.f32 %v1389, %v1418
        %v1661 = vmin.f32 %v1392, %v1421
        %v1662 = vmax.f32 %v1383, %v1412
        %v1663 = vmax.f32 %v1386, %v1415
        %v1664 = vmax.f32 %v1389, %v1418
        %v1665 = vmax.f32 %v1392, %v1421
        %v1666 = vmin.f32 %v1658, %v1441
        %v1667 = vmin.f32 %v1659, %v1444
        %v1668 = vmin.f32 %v1660, %v1447
        %v1669 = vmin.f32 %v1661, %v1450
        %v1670 = vmax.f32 %v1662, %v1441
        %v1671 = vmax.f32 %v1663, %v1444
        %v1672 = vmax.f32 %v1664, %v1447
        %v1673 = vmax.f32 %v1665, %v1450
        %v1674 = vmin.f32 %v1662, %v1441
        %v1675 = vmin.f32 %v1663, %v1444
        %v1676 = vmin.f32 %v1664, %v1447
        %v1677 = vmin.f32 %v1665, %v1450
        %v1678 = vmax.f32 %v1658, %v1674
        %v1679 = vmax.f32 %v1659, %v1675
        %v1680 = vmax.f32 %v1660, %v1676
        %v1681 = vmax.f32 %v1661, %v1677
        %v1682 = vmin.f32 %v1486, %v1515
        %v1683 = vmin.f32 %v1489, %v1518
        %v1684 = vmin.f32 %v1492, %v1521
        %v1685 = vmin.f32 %v1495, %v1524
        %v1686 = vmax.f32 %v1486, %v1515
        %v1687 = vmax.f32 %v1489, %v1518
        %v1688 = vmax.f32 %v1492, %v1521
        %v1689 = vmax.f32 %v1495, %v1524
        %v1690 = vmin.f32 %v1682, %v1544
        %v1691 = vmin.f32 %v1683, %v1547
        %v1692 = vmin.f32 %v1684, %v1550
        %v1693 = vmin.f32 %v1685, %v1553
        %v1694 = vmax.f32 %v1686, %v1544
        %v1695 = vmax.f32 %v1687, %v1547
        %v1696 = vmax.f32 %v1688, %v1550
        %v1697 = vmax.f32 %v1689, %v1553
        %v1698 = vmin.f32 %v1686, %v1544
        %v1699 = vmin.f32 %v1687, %v1547
        %v1700 = vmin.f32 %v1688, %v1550
        %v1701 = vmin.f32 %v1689, %v1553
        %v1702 = vmax.f32 %v1682, %v1698
        %v1703 = vmax.f32 %v1683, %v1699
        %v1704 = vmax.f32 %v1684, %v1700
        %v1705 = vmax.f32 %v1685, %v1701
        %v1706 = vmin.f32 %v1589, %v1618
        %v1707 = vmin.f32 %v1592, %v1621
        %v1708 = vmin.f32 %v1595, %v1624
        %v1709 = vmin.f32 %v1598, %v1627
        %v1710 = vmax.f32 %v1589, %v1618
        %v1711 = vmax.f32 %v1592, %v1621
        %v1712 = vmax.f32 %v1595, %v1624
        %v1713 = vmax.f32 %v1598, %v1627
        %v1714 = vmin.f32 %v1706, %v1647
        %v1715 = vmin.f32 %v1707, %v1650
        %v1716 = vmin.f32 %v1708, %v1653
        %v1717 = vmin.f32 %v1709, %v1656
        %v1718 = vmax.f32 %v1710, %v1647
        %v1719 = vmax.f32 %v1711, %v1650
        %v1720 = vmax.f32 %v1712, %v1653
        %v1721 = vmax.f32 %v1713, %v1656
        %v1722 = vmin.f32 %v1710, %v1647
        %v1723 = vmin.f32 %v1711, %v1650
        %v1724 = vmin.f32 %v1712, %v1653
        %v1725 = vmin.f32 %v1713, %v1656
        %v1726 = vmax.f32 %v1706, %v1722
        %v1727 = vmax.f32 %v1707, %v1723
        %v1728 = vmax.f32 %v1708, %v1724
        %v1729 = vmax.f32 %v1709, %v1725
        %v1730 = vmax.f32 %v1666, %v1690
        %v1731 = vmax.f32 %v1667, %v1691
        %v1732 = vmax.f32 %v1668, %v1692
        %v1733 = vmax.f32 %v1669, %v1693
        %v1734 = vmax.f32 %v1730, %v1714
        %v1735 = vmax.f32 %v1731, %v1715
        %v1736 = vmax.f32 %v1732, %v1716
        %v1737 = vmax.f32 %v1733, %v1717
        %v1738 = vmin.f32 %v1670, %v1694
        %v1739 = vmin.f32 %v1671, %v1695
        %v1740 = vmin.f32 %v1672, %v1696
        %v1741 = vmin.f32 %v1673, %v1697
        %v1742 = vmin.f32 %v1738, %v1718
        %v1743 = vmin.f32 %v1739, %v1719
        %v1744 = vmin.f32 %v1740, %v1720
        %v1745 = vmin.f32 %v1741, %v1721
        %v1746 = vmin.f32 %v1678, %v1702
        %v1747 = vmin.f32 %v1679, %v1703
        %v1748 = vmin.f32 %v1680, %v1704
        %v1749 = vmin.f32 %v1681, %v1705
        %v1750 = vmax.f32 %v1678, %v1702
        %v1751 = vmax.f32 %v1679, %v1703
        %v1752 = vmax.f32 %v1680, %v1704
        %v1753 = vmax.f32 %v1681, %v1705
        %v1754 = vmin.f32 %v1750, %v1726
        %v1755 = vmin.f32 %v1751, %v1727
        %v1756 = vmin.f32 %v1752, %v1728
        %v1757 = vmin.f32 %v1753, %v1729
        %v1758 = vmax.f32 %v1746, %v1754
        %v1759 = vmax.f32 %v1747, %v1755
        %v1760 = vmax.f32 %v1748, %v1756
        %v1761 = vmax.f32 %v1749, %v1757
        %v1762 = vmin.f32 %v1734, %v1758
        %v1763 = vmin.f32 %v1735, %v1759
        %v1764 = vmin.f32 %v1736, %v1760
        %v1765 = vmin.f32 %v1737, %v1761
        %v1766 = vmax.f32 %v1734, %v1758
        %v1767 = vmax.f32 %v1735, %v1759
        %v1768 = vmax.f32 %v1736, %v1760
        %v1769 = vmax.f32 %v1737, %v1761
        %v1770 = vmin.f32 %v1766, %v1742
        %v1771 = vmin.f32 %v1767, %v1743
        %v1772 = vmin.f32 %v1768, %v1744
        %v1773 = vmin.f32 %v1769, %v1745
        %v1774 = vmax.f32 %v1762, %v1770
        %v1775 = vmax.f32 %v1763, %v1771
        %v1776 = vmax.f32 %v1764, %v1772
        %v1777 = vmax.f32 %v1765, %v1773
        %v1778 = vld [vmem:[%s45] sm:$0xff]
        %v1779 = vld [vmem:[%s45 + $0x8] sm:$0xff]
        %v1780 = vld [vmem:[%s45 + $0x10] sm:$0xff]
        %v1781 = vld [vmem:[%s45 + $0x18] sm:$0xff]
        %v1782 = vld [vmem:[%s45 + $0x20] sm:$0xff]
        %v1783 = vld [vmem:[%s45 + $0x28] sm:$0xff]
        %v1784 = vld [vmem:[%s45 + $0x30] sm:$0xff]
        %v1785 = vld [vmem:[%s45 + $0x38] sm:$0xff]
        %v1786 = vld [vmem:[%s45 + $0x40] sm:$0xff]
        %v1787 = vld [vmem:[%s45 + $0x48] sm:$0xff]
        %v1788 = vld [vmem:[%s45 + $0x50] sm:$0xff]
        %v1789 = vld [vmem:[%s45 + $0x58] sm:$0xff]
        %v1790 = vld [vmem:[%s45 + $0x60] sm:$0xff]
        %v1791 = vsub.f32 %v1774, %v1515
        %v1792 = vsub.f32 %v1775, %v1518
        %v1793 = vsub.f32 %v1776, %v1521
        %v1794 = vsub.f32 %v1777, %v1524
        %vm1795 = vcmask 850944
        %v1796 = vsel %vm1795, %v1791, 0.0
        %v1797 = vsel %vm1795, %v1792, 0.0
        %v1798 = vadd.f32 %v1796, %v1797
        %v1799 = vsel %vm1795, %v1793, 0.0
        %v1800 = vadd.f32 %v1798, %v1799
        %vm1801 = vcmask 844800
        %v1802 = vsel %vm1801, %v1794, 0.0
        %v1803 = vadd.f32 %v1800, %v1802
        %v1804 = vrot.slane %v1803, 4
        %v1805 = vadd.f32 %v1803, %v1804
        %v1806 = vrot.slane %v1805, 2
        %v1807 = vadd.f32 %v1805, %v1806
        %v1808 = vrot.slane %v1807, 1
        %v1809 = vadd.f32 %v1807, %v1808
        %v1811 = vsel %vm1795, %v1809, 0
        %1813 = vmatpush.msra.mxu0 0.0
        %1814 = vmatpush.msra.mxu0 0.0
        %1815 = vmatpush.msra.mxu0 0.0
        %1816 = vmatpush.msra.mxu0 %v1790
        %1817 = vmatpush.msra.mxu0 %v1789
        %1818 = vmatpush.msra.mxu0 %v1788
        %1819 = vmatpush.msra.mxu0 %v1787
        %1820 = vmatpush.msra.mxu0 %v1786
        %1821 = vmatpush.msra.mxu0 %v1785
        %1822 = vmatpush.msra.mxu0 %v1784
        %1823 = vmatpush.msra.mxu0 %v1783
        %1824 = vmatpush.msra.mxu0 %v1782
        %1825 = vmatpush.msra.mxu0 %v1781
        %1826 = vmatpush.msra.mxu0 %v1780
        %1827 = vmatpush.msra.mxu0 %v1779
        %1828 = vmatpush.msra.mxu0 %v1778
        %1829 = vmatmul.f32.gmra.mxu0 %v1811
        %v1830 = vpop.f32.mrf.mxu0
        %v1831 = vadd.f32 0.0, %v1830
        %1832 = vdwg.mxu0
        %v1833 = vmul.f32 %v1791, %v1791
        %v1834 = vmul.f32 %v1792, %v1792
        %v1835 = vmul.f32 %v1793, %v1793
        %v1836 = vmul.f32 %v1794, %v1794
        %v1837 = vsel %vm1795, %v1833, 0.0
        %v1838 = vsel %vm1795, %v1834, 0.0
        %v1839 = vadd.f32 %v1837, %v1838
        %v1840 = vsel %vm1795, %v1835, 0.0
        %v1841 = vadd.f32 %v1839, %v1840
        %v1842 = vsel %vm1801, %v1836, 0.0
        %v1843 = vadd.f32 %v1841, %v1842
        %v1844 = vrot.slane %v1843, 4
        %v1845 = vadd.f32 %v1843, %v1844
        %v1846 = vrot.slane %v1845, 2
        %v1847 = vadd.f32 %v1845, %v1846
        %v1848 = vrot.slane %v1847, 1
        %v1849 = vadd.f32 %v1847, %v1848
        %v1851 = vsel %vm1795, %v1849, 0
        %1853 = vmatpush.msra.mxu0 0.0
        %1854 = vmatpush.msra.mxu0 0.0
        %1855 = vmatpush.msra.mxu0 0.0
        %1856 = vmatpush.msra.mxu0 %v1790
        %1857 = vmatpush.msra.mxu0 %v1789
        %1858 = vmatpush.msra.mxu0 %v1788
        %1859 = vmatpush.msra.mxu0 %v1787
        %1860 = vmatpush.msra.mxu0 %v1786
        %1861 = vmatpush.msra.mxu0 %v1785
        %1862 = vmatpush.msra.mxu0 %v1784
        %1863 = vmatpush.msra.mxu0 %v1783
        %1864 = vmatpush.msra.mxu0 %v1782
        %1865 = vmatpush.msra.mxu0 %v1781
        %1866 = vmatpush.msra.mxu0 %v1780
        %1867 = vmatpush.msra.mxu0 %v1779
        %1868 = vmatpush.msra.mxu0 %v1778
        %1869 = vmatmul.f32.gmra.mxu0 %v1851
        %v1870 = vpop.f32.mrf.mxu0
        %v1871 = vadd.f32 0.0, %v1870
        %1872 = vdwg.mxu0
        %v1873 = vsel %vm1795, %v1515, 0.0
        %v1874 = vsel %vm1795, %v1518, 0.0
        %v1875 = vadd.f32 %v1873, %v1874
        %v1876 = vsel %vm1795, %v1521, 0.0
        %v1877 = vadd.f32 %v1875, %v1876
        %v1878 = vsel %vm1801, %v1524, 0.0
        %v1879 = vadd.f32 %v1877, %v1878
        %v1880 = vrot.slane %v1879, 4
        %v1881 = vadd.f32 %v1879, %v1880
        %v1882 = vrot.slane %v1881, 2
        %v1883 = vadd.f32 %v1881, %v1882
        %v1884 = vrot.slane %v1883, 1
        %v1885 = vadd.f32 %v1883, %v1884
        %v1887 = vsel %vm1795, %v1885, 0
        %1889 = vmatpush.msra.mxu0 0.0
        %1890 = vmatpush.msra.mxu0 0.0
        %1891 = vmatpush.msra.mxu0 0.0
        %1892 = vmatpush.msra.mxu0 %v1790
        %1893 = vmatpush.msra.mxu0 %v1789
        %1894 = vmatpush.msra.mxu0 %v1788
        %1895 = vmatpush.msra.mxu0 %v1787
        %1896 = vmatpush.msra.mxu0 %v1786
        %1897 = vmatpush.msra.mxu0 %v1785
        %1898 = vmatpush.msra.mxu0 %v1784
        %1899 = vmatpush.msra.mxu0 %v1783
        %1900 = vmatpush.msra.mxu0 %v1782
        %1901 = vmatpush.msra.mxu0 %v1781
        %1902 = vmatpush.msra.mxu0 %v1780
        %1903 = vmatpush.msra.mxu0 %v1779
        %1904 = vmatpush.msra.mxu0 %v1778
        %1905 = vmatmul.f32.gmra.mxu0 %v1887
        %v1906 = vpop.f32.mrf.mxu0
        %v1907 = vadd.f32 0.0, %v1906
        %1908 = vdwg.mxu0
        %v1909 = vmul.f32 %v1515, %v1515
        %v1910 = vmul.f32 %v1518, %v1518
        %v1911 = vmul.f32 %v1521, %v1521
        %v1912 = vmul.f32 %v1524, %v1524
        %v1913 = vsel %vm1795, %v1909, 0.0
        %v1914 = vsel %vm1795, %v1910, 0.0
        %v1915 = vadd.f32 %v1913, %v1914
        %v1916 = vsel %vm1795, %v1911, 0.0
        %v1917 = vadd.f32 %v1915, %v1916
        %v1918 = vsel %vm1801, %v1912, 0.0
        %v1919 = vadd.f32 %v1917, %v1918
        %v1920 = vrot.slane %v1919, 4
        %v1921 = vadd.f32 %v1919, %v1920
        %v1922 = vrot.slane %v1921, 2
        %v1923 = vadd.f32 %v1921, %v1922
        %v1924 = vrot.slane %v1923, 1
        %v1925 = vadd.f32 %v1923, %v1924
        %v1927 = vsel %vm1795, %v1925, 0
        %1929 = vmatpush.msra.mxu0 0.0
        %1930 = vmatpush.msra.mxu0 0.0
        %1931 = vmatpush.msra.mxu0 0.0
        %1932 = vmatpush.msra.mxu0 %v1790
        %1933 = vmatpush.msra.mxu0 %v1789
        %1934 = vmatpush.msra.mxu0 %v1788
        %1935 = vmatpush.msra.mxu0 %v1787
        %1936 = vmatpush.msra.mxu0 %v1786
        %1937 = vmatpush.msra.mxu0 %v1785
        %1938 = vmatpush.msra.mxu0 %v1784
        %1939 = vmatpush.msra.mxu0 %v1783
        %1940 = vmatpush.msra.mxu0 %v1782
        %1941 = vmatpush.msra.mxu0 %v1781
        %1942 = vmatpush.msra.mxu0 %v1780
        %1943 = vmatpush.msra.mxu0 %v1779
        %1944 = vmatpush.msra.mxu0 %v1778
        %1945 = vmatmul.f32.gmra.mxu0 %v1927
        %v1946 = vpop.f32.mrf.mxu0
        %v1947 = vadd.f32 0.0, %v1946
        %1948 = vdwg.mxu0
        %v1949 = vmul.f32 %v1831, 0.00147929
        %v1950 = vmul.f32 %v1949, 2.0
        %v1951 = vmul.f32 %v1950, %v1831
        %v1952 = vsub.f32 %v1871, %v1951
        %v1953 = vmul.f32 %v1949, 676.0
        %v1954 = vmul.f32 %v1953, %v1949
        %v1955 = vadd.f32 %v1952, %v1954
        %v1956 = vmul.f32 %v1955, 0.0014814815
        %v1957 = vmul.f32 %v1907, 0.00147929
        %v1958 = vmul.f32 %v1957, 2.0
        %v1959 = vmul.f32 %v1958, %v1907
        %v1960 = vsub.f32 %v1947, %v1959
        %v1961 = vmul.f32 %v1957, 676.0
        %v1962 = vmul.f32 %v1961, %v1957
        %v1963 = vadd.f32 %v1960, %v1962
        %v1964 = vmul.f32 %v1963, 0.0014814815
        %v1965 = vmul.f32 %v1956, 0.26666668
        %v1966 = vrsqrt.pop %v1964
        %v1967 = vmul.f32 %v1966, %v1964
        %v1968 = vmul.f32 %v1967, %v1966
        %v1969 = vmul.f32 0.5, %v1968
        %v1970 = vsub.f32 1.5, %v1969
        %v1971 = vmul.f32 %v1966, %v1970
        %vm1972 = vweird.f32 %v1964
        %vm1973 = vweird.f32 %v1966
        %vm1974 = vmor %vm1972, %vm1973
        %v1975 = vsel %vm1974, %v1966, %v1971
        %v1976 = vmul.f32 %v1965, %v1975
        %v1977 = vld [vmem:[#allocation2] sm:$0xf]
        %vm1978 = vcmask 31744
        %v1980 = vsel %vm1978, %v1976, 0
        %vm1982 = vcmask 1043456
        %v1984 = vsel %vm1982, %v1977, 0
        %1986 = vmatpush.msra.mxu0 0.0
        %1987 = vmatpush.msra.mxu0 0.0
        %1988 = vmatpush.msra.mxu0 0.0
        %1989 = vmatpush.msra.mxu0 0.0
        %1990 = vmatpush.msra.mxu0 0.0
        %1991 = vmatpush.msra.mxu0 0.0
        %1992 = vmatpush.msra.mxu0 0.0
        %1993 = vmatpush.msra.mxu0 0.0
        %1994 = vmatpush.msra.mxu0 0.0
        %1995 = vmatpush.msra.mxu0 0.0
        %1996 = vmatpush.msra.mxu0 0.0
        %1997 = vmatpush.msra.mxu0 0.0
        %1998 = vmatpush.msra.mxu0 0.0
        %1999 = vmatpush.msra.mxu0 0.0
        %2000 = vmatpush.msra.mxu0 0.0
        %2001 = vmatpush.msra.mxu0 %v1984
        %2002 = vmatmul.f32.gmra.mxu0 %v1980
        %v2003 = vpop.f32.mrf.mxu0
        %v2004 = vadd.f32 0.0, %v2003
        %2005 = vdwg.mxu0
        %v2006 = vld [vmem:[#allocation7] sm:$0xff]
        %v2007 = vld [vmem:[#allocation7 + $0x8] sm:$0x3f]
        %v2009 = vsel %vm1352, %v2006, 0
        %v2012 = vsel %vm1352, %v2007, 0
        %2014 = vmatpush.msra.mxu0 0.0
        %2015 = vmatpush.msra.mxu0 0.0
        %2016 = vmatpush.msra.mxu0 0.0
        %2017 = vmatpush.msra.mxu0 0.0
        %2018 = vmatpush.msra.mxu0 0.0
        %2019 = vmatpush.msra.mxu0 0.0
        %2020 = vmatpush.msra.mxu0 0.0
        %2021 = vmatpush.msra.mxu0 0.0
        %2022 = vmatpush.msra.mxu0 0.0
        %2023 = vmatpush.msra.mxu0 0.0
        %2024 = vmatpush.msra.mxu0 0.0
        %2025 = vmatpush.msra.mxu0 0.0
        %2026 = vmatpush.msra.mxu0 0.0
        %2027 = vmatpush.msra.mxu0 0.0
        %2028 = vmatpush.msra.mxu0 %v1057
        %2029 = vmatpush.msra.mxu0 %v1054
        %2030 = vmatmul.f32.gmra.mxu0 %v2009
        %v2031 = vpop.f32.mrf.mxu0
        %v2032 = vadd.f32 0.0, %v2031
        %2033 = vmatmul.f32.gmra.mxu0 %v2012
        %v2034 = vpop.f32.mrf.mxu0
        %v2035 = vadd.f32 0.0, %v2034
        %2036 = vdwg.mxu0
        %v2037 = vld [vmem:[#allocation5] sm:$0xff]
        %v2038 = vld [vmem:[#allocation5 + $0x8] sm:$0x3f]
        %v2040 = vsel %vm1352, %v2037, 0
        %v2043 = vsel %vm1352, %v2038, 0
        %2045 = vmatpush.msra.mxu0 0.0
        %2046 = vmatpush.msra.mxu0 0.0
        %2047 = vmatpush.msra.mxu0 0.0
        %2048 = vmatpush.msra.mxu0 0.0
        %2049 = vmatpush.msra.mxu0 0.0
        %2050 = vmatpush.msra.mxu0 0.0
        %2051 = vmatpush.msra.mxu0 0.0
        %2052 = vmatpush.msra.mxu0 0.0
        %2053 = vmatpush.msra.mxu0 0.0
        %2054 = vmatpush.msra.mxu0 0.0
        %2055 = vmatpush.msra.mxu0 0.0
        %2056 = vmatpush.msra.mxu0 0.0
        %2057 = vmatpush.msra.mxu0 0.0
        %2058 = vmatpush.msra.mxu0 0.0
        %2059 = vmatpush.msra.mxu0 %v1057
        %2060 = vmatpush.msra.mxu0 %v1054
        %2061 = vmatmul.f32.gmra.mxu0 %v2040
        %v2062 = vpop.f32.mrf.mxu0
        %v2063 = vadd.f32 0.0, %v2062
        %2064 = vmatmul.f32.gmra.mxu0 %v2043
        %v2065 = vpop.f32.mrf.mxu0
        %v2066 = vadd.f32 0.0, %v2065
        %2067 = vdwg.mxu0
        %v2068 = vadd.f32 %v2032, %v2063
        %v2069 = vadd.f32 %v2035, %v2066
        %v2070 = vld [vmem:[%s17] sm:$0xff]
        %v2071 = vld [vmem:[%s17 + $0x8] sm:$0xff]
        %v2072 = vld [vmem:[%s17 + $0x10] sm:$0xff]
        %v2073 = vld [vmem:[%s17 + $0x18] sm:$0xff]
        %v2074 = vld [vmem:[%s17 + $0x20] sm:$0xff]
        %v2075 = vld [vmem:[%s17 + $0x28] sm:$0xff]
        %v2076 = vld [vmem:[%s17 + $0x30] sm:$0xff]
        %v2077 = vld [vmem:[%s17 + $0x38] sm:$0xff]
        %v2079 = vsel %vm1256, %v2068, 0
        %v2082 = vsel %vm1256, %v2069, 0
        %2084 = vmatpush.msra.mxu0 0.0
        %2085 = vmatpush.msra.mxu0 0.0
        %2086 = vmatpush.msra.mxu0 0.0
        %2087 = vmatpush.msra.mxu0 0.0
        %2088 = vmatpush.msra.mxu0 0.0
        %2089 = vmatpush.msra.mxu0 0.0
        %2090 = vmatpush.msra.mxu0 0.0
        %2091 = vmatpush.msra.mxu0 0.0
        %2092 = vmatpush.msra.mxu0 %v2077
        %2093 = vmatpush.msra.mxu0 %v2076
        %2094 = vmatpush.msra.mxu0 %v2075
        %2095 = vmatpush.msra.mxu0 %v2074
        %2096 = vmatpush.msra.mxu0 %v2073
        %2097 = vmatpush.msra.mxu0 %v2072
        %2098 = vmatpush.msra.mxu0 %v2071
        %2099 = vmatpush.msra.mxu0 %v2070
        %2100 = vmatmul.f32.gmra.mxu0 %v2079
        %v2101 = vpop.f32.mrf.mxu0
        %v2102 = vadd.f32 0.0, %v2101
        %2103 = vmatmul.f32.gmra.mxu0 %v2082
        %v2104 = vpop.f32.mrf.mxu0
        %v2105 = vadd.f32 0.0, %v2104
        %2106 = vdwg.mxu0
        %v2107 = vld [vmem:[%s15] sm:$0xff]
        %v2108 = vld [vmem:[%s15 + $0x8] sm:$0xff]
        %v2109 = vld [vmem:[%s15 + $0x10] sm:$0xff]
        %v2110 = vld [vmem:[%s15 + $0x18] sm:$0xff]
        %v2111 = vld [vmem:[%s15 + $0x20] sm:$0xff]
        %v2112 = vld [vmem:[%s15 + $0x28] sm:$0xff]
        %v2113 = vld [vmem:[%s15 + $0x30] sm:$0xff]
        %v2114 = vld [vmem:[%s15 + $0x38] sm:$0xff]
        %v2116 = vsel %vm1256, %v2032, 0
        %v2119 = vsel %vm1256, %v2035, 0
        %2121 = vmatpush.msra.mxu0 0.0
        %2122 = vmatpush.msra.mxu0 0.0
        %2123 = vmatpush.msra.mxu0 0.0
        %2124 = vmatpush.msra.mxu0 0.0
        %2125 = vmatpush.msra.mxu0 0.0
        %2126 = vmatpush.msra.mxu0 0.0
        %2127 = vmatpush.msra.mxu0 0.0
        %2128 = vmatpush.msra.mxu0 0.0
        %2129 = vmatpush.msra.mxu0 %v2114
        %2130 = vmatpush.msra.mxu0 %v2113
        %2131 = vmatpush.msra.mxu0 %v2112
        %2132 = vmatpush.msra.mxu0 %v2111
        %2133 = vmatpush.msra.mxu0 %v2110
        %2134 = vmatpush.msra.mxu0 %v2109
        %2135 = vmatpush.msra.mxu0 %v2108
        %2136 = vmatpush.msra.mxu0 %v2107
        %2137 = vmatmul.f32.gmra.mxu0 %v2116
        %v2138 = vpop.f32.mrf.mxu0
        %v2139 = vadd.f32 0.0, %v2138
        %2140 = vmatmul.f32.gmra.mxu0 %v2119
        %v2141 = vpop.f32.mrf.mxu0
        %v2142 = vadd.f32 0.0, %v2141
        %2143 = vdwg.mxu0
        %v2144 = vld [vmem:[%s13] sm:$0xff]
        %v2145 = vld [vmem:[%s13 + $0x8] sm:$0xff]
        %v2146 = vld [vmem:[%s13 + $0x10] sm:$0xff]
        %v2147 = vld [vmem:[%s13 + $0x18] sm:$0xff]
        %v2148 = vld [vmem:[%s13 + $0x20] sm:$0xff]
        %v2149 = vld [vmem:[%s13 + $0x28] sm:$0xff]
        %v2150 = vld [vmem:[%s13 + $0x30] sm:$0xff]
        %v2151 = vld [vmem:[%s13 + $0x38] sm:$0xff]
        %v2153 = vsel %vm1256, %v2063, 0
        %v2156 = vsel %vm1256, %v2066, 0
        %2158 = vmatpush.msra.mxu0 0.0
        %2159 = vmatpush.msra.mxu0 0.0
        %2160 = vmatpush.msra.mxu0 0.0
        %2161 = vmatpush.msra.mxu0 0.0
        %2162 = vmatpush.msra.mxu0 0.0
        %2163 = vmatpush.msra.mxu0 0.0
        %2164 = vmatpush.msra.mxu0 0.0
        %2165 = vmatpush.msra.mxu0 0.0
        %2166 = vmatpush.msra.mxu0 %v2151
        %2167 = vmatpush.msra.mxu0 %v2150
        %2168 = vmatpush.msra.mxu0 %v2149
        %2169 = vmatpush.msra.mxu0 %v2148
        %2170 = vmatpush.msra.mxu0 %v2147
        %2171 = vmatpush.msra.mxu0 %v2146
        %2172 = vmatpush.msra.mxu0 %v2145
        %2173 = vmatpush.msra.mxu0 %v2144
        %2174 = vmatmul.f32.gmra.mxu0 %v2153
        %v2175 = vpop.f32.mrf.mxu0
        %v2176 = vadd.f32 0.0, %v2175
        %2177 = vmatmul.f32.gmra.mxu0 %v2156
        %v2178 = vpop.f32.mrf.mxu0
        %v2179 = vadd.f32 0.0, %v2178
        %2180 = vdwg.mxu0
        %v2181 = vsub.f32 %v2139, %v2176
        %v2182 = vsub.f32 %v2142, %v2179
        %v2183 = vsub.f32 %v2102, %v2139
        %v2184 = vsub.f32 %v2105, %v2142
        %v2185 = vsub.f32 %v2183, %v2176
        %v2186 = vsub.f32 %v2184, %v2179
        %v2187 = vperm.slane %v2004, 0
        %v2188 = vadd.f32 %v1246, %v2187
        %v2189 = vadd.f32 %v1247, %v2187
        %v2190 = vrcp.pop %v2188
        %v2191 = vrcp.pop %v2189
        %v2192 = vmul.f32 %v2188, %v2190
        %v2193 = vmul.f32 %v2189, %v2191
        %v2194 = vsub.f32 2.0, %v2192
        %v2195 = vsub.f32 2.0, %v2193
        %v2196 = vmul.f32 %v2190, %v2194
        %v2197 = vmul.f32 %v2191, %v2195
        %v2198 = vmul.f32 %v1236, %v2196
        %v2199 = vmul.f32 %v1237, %v2197
        %v2200 = vsub.f32 0.0, %v1240
        %v2201 = vsub.f32 0.0, %v1241
        %v2202 = vmul.f32 %v2200, %v2196
        %v2203 = vmul.f32 %v2201, %v2197
        %v2204 = vmul.f32 %v2198, %v2181
        %v2205 = vmul.f32 %v2199, %v2182
        %v2206 = vmul.f32 %v2202, %v2185
        %v2207 = vmul.f32 %v2203, %v2186
        %v2208 = vsub.f32 %v2204, %v2206
        %v2209 = vsub.f32 %v2205, %v2207
        %v2210 = vmul.f32 %v2198, %v2185
        %v2211 = vmul.f32 %v2199, %v2186
        %v2212 = vmul.f32 %v2202, %v2181
        %v2213 = vmul.f32 %v2203, %v2182
        %v2214 = vadd.f32 %v2210, %v2212
        %v2215 = vadd.f32 %v2211, %v2213
        %v2216 = vld [vmem:[%s23] sm:$0xff]
        %v2217 = vld [vmem:[%s23 + $0x8] sm:$0xff]
        %v2218 = vadd.f32 %v2208, %v2214
        %v2219 = vadd.f32 %v2209, %v2215
        %vm2220 = vcmask 113664
        %v2222 = vsel %vm2220, %v2216, 0
        %v2225 = vsel %vm2220, %v2217, 0
        %vm2227 = vcmask 1045504
        %v2229 = vsel %vm2227, %v2219, 0
        %2231 = vmatpush.msra.mxu0 0.0
        %2232 = vmatpush.msra.mxu0 0.0
        %2233 = vmatpush.msra.mxu0 0.0
        %2234 = vmatpush.msra.mxu0 0.0
        %2235 = vmatpush.msra.mxu0 0.0
        %2236 = vmatpush.msra.mxu0 0.0
        %2237 = vmatpush.msra.mxu0 0.0
        %2238 = vmatpush.msra.mxu0 0.0
        %2239 = vmatpush.msra.mxu0 0.0
        %2240 = vmatpush.msra.mxu0 0.0
        %2241 = vmatpush.msra.mxu0 0.0
        %2242 = vmatpush.msra.mxu0 0.0
        %2243 = vmatpush.msra.mxu0 0.0
        %2244 = vmatpush.msra.mxu0 0.0
        %2245 = vmatpush.msra.mxu0 %v2229
        %2246 = vmatpush.msra.mxu0 %v2218
        %2247 = vmatmul.f32.gmra.mxu0 %v2222
        %v2248 = vpop.f32.mrf.mxu0
        %v2249 = vadd.f32 0.0, %v2248
        %2250 = vmatmul.f32.gmra.mxu0 %v2225
        %v2251 = vpop.f32.mrf.mxu0
        %v2252 = vadd.f32 0.0, %v2251
        %2253 = vdwg.mxu0
        %v2254 = vld [vmem:[%s21] sm:$0xff]
        %v2255 = vld [vmem:[%s21 + $0x8] sm:$0xff]
        %v2257 = vsel %vm2220, %v2254, 0
        %v2260 = vsel %vm2220, %v2255, 0
        %v2263 = vsel %vm2227, %v2209, 0
        %2265 = vmatpush.msra.mxu0 0.0
        %2266 = vmatpush.msra.mxu0 0.0
        %2267 = vmatpush.msra.mxu0 0.0
        %2268 = vmatpush.msra.mxu0 0.0
        %2269 = vmatpush.msra.mxu0 0.0
        %2270 = vmatpush.msra.mxu0 0.0
        %2271 = vmatpush.msra.mxu0 0.0
        %2272 = vmatpush.msra.mxu0 0.0
        %2273 = vmatpush.msra.mxu0 0.0
        %2274 = vmatpush.msra.mxu0 0.0
        %2275 = vmatpush.msra.mxu0 0.0
        %2276 = vmatpush.msra.mxu0 0.0
        %2277 = vmatpush.msra.mxu0 0.0
        %2278 = vmatpush.msra.mxu0 0.0
        %2279 = vmatpush.msra.mxu0 %v2263
        %2280 = vmatpush.msra.mxu0 %v2208
        %2281 = vmatmul.f32.gmra.mxu0 %v2257
        %v2282 = vpop.f32.mrf.mxu0
        %v2283 = vadd.f32 0.0, %v2282
        %2284 = vmatmul.f32.gmra.mxu0 %v2260
        %v2285 = vpop.f32.mrf.mxu0
        %v2286 = vadd.f32 0.0, %v2285
        %2287 = vdwg.mxu0
        %v2288 = vld [vmem:[%s19] sm:$0xff]
        %v2289 = vld [vmem:[%s19 + $0x8] sm:$0xff]
        %v2291 = vsel %vm2220, %v2288, 0
        %v2294 = vsel %vm2220, %v2289, 0
        %v2297 = vsel %vm2227, %v2215, 0
        %2299 = vmatpush.msra.mxu0 0.0
        %2300 = vmatpush.msra.mxu0 0.0
        %2301 = vmatpush.msra.mxu0 0.0
        %2302 = vmatpush.msra.mxu0 0.0
        %2303 = vmatpush.msra.mxu0 0.0
        %2304 = vmatpush.msra.mxu0 0.0
        %2305 = vmatpush.msra.mxu0 0.0
        %2306 = vmatpush.msra.mxu0 0.0
        %2307 = vmatpush.msra.mxu0 0.0
        %2308 = vmatpush.msra.mxu0 0.0
        %2309 = vmatpush.msra.mxu0 0.0
        %2310 = vmatpush.msra.mxu0 0.0
        %2311 = vmatpush.msra.mxu0 0.0
        %2312 = vmatpush.msra.mxu0 0.0
        %2313 = vmatpush.msra.mxu0 %v2297
        %2314 = vmatpush.msra.mxu0 %v2214
        %2315 = vmatmul.f32.gmra.mxu0 %v2291
        %v2316 = vpop.f32.mrf.mxu0
        %v2317 = vadd.f32 0.0, %v2316
        %2318 = vmatmul.f32.gmra.mxu0 %v2294
        %v2319 = vpop.f32.mrf.mxu0
        %v2320 = vadd.f32 0.0, %v2319
        %2321 = vdwg.mxu0
        %v2322 = vsub.f32 %v2283, %v2317
        %v2323 = vsub.f32 %v2286, %v2320
        %v2324 = vsub.f32 %v2249, %v2283
        %v2325 = vsub.f32 %v2252, %v2286
        %v2326 = vsub.f32 %v2324, %v2317
        %v2327 = vsub.f32 %v2325, %v2320
        %v2328 = vld [vmem:[%s27] sm:$0xff]
        %v2329 = vld [vmem:[%s27 + $0x8] sm:$0xff]
        %v2330 = vld [vmem:[%s27 + $0x10] sm:$0xff]
        %v2331 = vld [vmem:[%s27 + $0x18] sm:$0xff]
        %v2332 = vld [vmem:[%s27 + $0x20] sm:$0xff]
        %v2333 = vld [vmem:[%s27 + $0x28] sm:$0xff]
        %v2334 = vld [vmem:[%s27 + $0x30] sm:$0xff]
        %v2335 = vld [vmem:[%s27 + $0x38] sm:$0xff]
        %v2336 = vld [vmem:[%s27 + $0x40] sm:$0xff]
        %v2337 = vld [vmem:[%s27 + $0x48] sm:$0xff]
        %v2338 = vld [vmem:[%s27 + $0x50] sm:$0xff]
        %v2339 = vld [vmem:[%s27 + $0x58] sm:$0xff]
        %v2340 = vld [vmem:[%s27 + $0x60] sm:$0xff]
        %v2342 = vsel %vm1795, %v2322, 0
        %v2345 = vsel %vm1795, %v2323, 0
        %2347 = vmatpush.msra.mxu0 0.0
        %2348 = vmatpush.msra.mxu0 0.0
        %2349 = vmatpush.msra.mxu0 0.0
        %2350 = vmatpush.msra.mxu0 %v2340
        %2351 = vmatpush.msra.mxu0 %v2339
        %2352 = vmatpush.msra.mxu0 %v2338
        %2353 = vmatpush.msra.mxu0 %v2337
        %2354 = vmatpush.msra.mxu0 %v2336
        %2355 = vmatpush.msra.mxu0 %v2335
        %2356 = vmatpush.msra.mxu0 %v2334
        %2357 = vmatpush.msra.mxu0 %v2333
        %2358 = vmatpush.msra.mxu0 %v2332
        %2359 = vmatpush.msra.mxu0 %v2331
        %2360 = vmatpush.msra.mxu0 %v2330
        %2361 = vmatpush.msra.mxu0 %v2329
        %2362 = vmatpush.msra.mxu0 %v2328
        %2363 = vmatmul.f32.gmra.mxu0 %v2342
        %v2364 = vpop.f32.mrf.mxu0
        %v2365 = vadd.f32 0.0, %v2364
        %2366 = vmatmul.f32.gmra.mxu0 %v2345
        %v2367 = vpop.f32.mrf.mxu0
        %v2368 = vadd.f32 0.0, %v2367
        %2369 = vdwg.mxu0
        %v2370 = vld [vmem:[%s25] sm:$0xff]
        %v2371 = vld [vmem:[%s25 + $0x8] sm:$0xff]
        %v2372 = vld [vmem:[%s25 + $0x10] sm:$0xff]
        %v2373 = vld [vmem:[%s25 + $0x18] sm:$0xff]
        %v2374 = vld [vmem:[%s25 + $0x20] sm:$0xff]
        %v2375 = vld [vmem:[%s25 + $0x28] sm:$0xff]
        %v2376 = vld [vmem:[%s25 + $0x30] sm:$0xff]
        %v2377 = vld [vmem:[%s25 + $0x38] sm:$0xff]
        %v2378 = vld [vmem:[%s25 + $0x40] sm:$0xff]
        %v2379 = vld [vmem:[%s25 + $0x48] sm:$0xff]
        %v2380 = vld [vmem:[%s25 + $0x50] sm:$0xff]
        %v2381 = vld [vmem:[%s25 + $0x58] sm:$0xff]
        %v2382 = vld [vmem:[%s25 + $0x60] sm:$0xff]
        %v2384 = vsel %vm1795, %v2326, 0
        %v2387 = vsel %vm1795, %v2327, 0
        %2389 = vmatpush.msra.mxu0 0.0
        %2390 = vmatpush.msra.mxu0 0.0
        %2391 = vmatpush.msra.mxu0 0.0
        %2392 = vmatpush.msra.mxu0 %v2382
        %2393 = vmatpush.msra.mxu0 %v2381
        %2394 = vmatpush.msra.mxu0 %v2380
        %2395 = vmatpush.msra.mxu0 %v2379
        %2396 = vmatpush.msra.mxu0 %v2378
        %2397 = vmatpush.msra.mxu0 %v2377
        %2398 = vmatpush.msra.mxu0 %v2376
        %2399 = vmatpush.msra.mxu0 %v2375
        %2400 = vmatpush.msra.mxu0 %v2374
        %2401 = vmatpush.msra.mxu0 %v2373
        %2402 = vmatpush.msra.mxu0 %v2372
        %2403 = vmatpush.msra.mxu0 %v2371
        %2404 = vmatpush.msra.mxu0 %v2370
        %2405 = vmatmul.f32.gmra.mxu0 %v2384
        %v2406 = vpop.f32.mrf.mxu0
        %v2407 = vadd.f32 0.0, %v2406
        %2408 = vmatmul.f32.gmra.mxu0 %v2387
        %v2409 = vpop.f32.mrf.mxu0
        %v2410 = vadd.f32 0.0, %v2409
        %2411 = vdwg.mxu0
        %v2412 = vsub.f32 %v2365, %v2407
        %v2413 = vsub.f32 %v2368, %v2410
        %v2414 = vld [vmem:[%s29] sm:$0xff]
        %v2415 = vld [vmem:[%s29 + $0x8] sm:$0xff]
        %v2416 = vld [vmem:[%s29 + $0x10] sm:$0xff]
        %v2417 = vld [vmem:[%s29 + $0x18] sm:$0xff]
        %v2418 = vld [vmem:[%s29 + $0x20] sm:$0xff]
        %v2419 = vld [vmem:[%s29 + $0x28] sm:$0xff]
        %v2420 = vld [vmem:[%s29 + $0x30] sm:$0xff]
        %v2421 = vld [vmem:[%s29 + $0x38] sm:$0xff]
        %v2422 = vld [vmem:[%s29 + $0x40] sm:$0xff]
        %v2423 = vld [vmem:[%s29 + $0x48] sm:$0xff]
        %v2424 = vld [vmem:[%s29 + $0x50] sm:$0xff]
        %v2425 = vld [vmem:[%s29 + $0x58] sm:$0xff]
        %v2426 = vld [vmem:[%s29 + $0x60] sm:$0xff]
        %v2427 = vld [vmem:[%s29 + $0x68] sm:$0xff]
        %v2428 = vld [vmem:[%s29 + $0x70] sm:$0xff]
        %v2429 = vld [vmem:[%s29 + $0x78] sm:$0xff]
        %v2430 = vld [vmem:[%s47] sm:$0x3]
        %v2432 = vperm.slane %v2430, 0
        %v2433 = vperm.slane %v2430, 1
        %v2437 = vsel %vm1256, %v2412, 0
        %v2440 = vsel %vm1256, %v2413, 0
        %2442 = vmatpush.msra.mxu0 0.0
        %2443 = vmatpush.msra.mxu0 0.0
        %2444 = vmatpush.msra.mxu0 0.0
        %2445 = vmatpush.msra.mxu0 0.0
        %2446 = vmatpush.msra.mxu0 0.0
        %2447 = vmatpush.msra.mxu0 0.0
        %2448 = vmatpush.msra.mxu0 0.0
        %2449 = vmatpush.msra.mxu0 0.0
        %2450 = vmatpush.msra.mxu0 %v2428
        %2451 = vmatpush.msra.mxu0 %v2426
        %2452 = vmatpush.msra.mxu0 %v2424
        %2453 = vmatpush.msra.mxu0 %v2422
        %2454 = vmatpush.msra.mxu0 %v2420
        %2455 = vmatpush.msra.mxu0 %v2418
        %2456 = vmatpush.msra.mxu0 %v2416
        %2457 = vmatpush.msra.mxu0 %v2414
        %2458 = vmatmul.f32.gmra.mxu0 %v2437
        %v2459 = vpop.f32.mrf.mxu0
        %v2460 = vadd.f32 %v2432, %v2459
        %2461 = vmatmul.f32.gmra.mxu0 %v2440
        %v2462 = vpop.f32.mrf.mxu0
        %v2463 = vadd.f32 %v2432, %v2462
        %2464 = vdwg.mxu0
        %2465 = vmatpush.msra.mxu0 0.0
        %2466 = vmatpush.msra.mxu0 0.0
        %2467 = vmatpush.msra.mxu0 0.0
        %2468 = vmatpush.msra.mxu0 0.0
        %2469 = vmatpush.msra.mxu0 0.0
        %2470 = vmatpush.msra.mxu0 0.0
        %2471 = vmatpush.msra.mxu0 0.0
        %2472 = vmatpush.msra.mxu0 0.0
        %2473 = vmatpush.msra.mxu0 %v2429
        %2474 = vmatpush.msra.mxu0 %v2427
        %2475 = vmatpush.msra.mxu0 %v2425
        %2476 = vmatpush.msra.mxu0 %v2423
        %2477 = vmatpush.msra.mxu0 %v2421
        %2478 = vmatpush.msra.mxu0 %v2419
        %2479 = vmatpush.msra.mxu0 %v2417
        %2480 = vmatpush.msra.mxu0 %v2415
        %2481 = vmatmul.f32.gmra.mxu0 %v2437
        %v2482 = vpop.f32.mrf.mxu0
        %v2483 = vadd.f32 %v2433, %v2482
        %2484 = vmatmul.f32.gmra.mxu0 %v2440
        %v2485 = vpop.f32.mrf.mxu0
        %v2486 = vadd.f32 %v2433, %v2485
        %2487 = vdwg.mxu0
        %2488 = vst [vmem:[%s958] sm:$0xff] %v2460
        %2489 = vst [vmem:[%s958 + $0x8] sm:$0xff] %v2483
        %2490 = vst [vmem:[%s958 + $0x10] sm:$0xff] %v2463
        %2491 = vst [vmem:[%s958 + $0x18] sm:$0xff] %v2486
        %s2492 = sand.u32 %s702, 1
        %s2493 = scalar_lea.sflag [#allocation4], %s2492
        %s2494 = sand.u32 %s702, 1
        %s2495 = smul.addr %s2494, 32
        %s2496 = scalar_lea.vmem [#allocation8], %s2495
        // Predicated region
        $region149: #{tpu_custom_call.1} parent=135 // pred_check
          %p2497 = pneg %p712
        $region150: #{tpu_custom_call.1} parent=135 // pred_check_branch
          %2499 = sbr.rel (%p2497) target = $region152
        $region151: #{tpu_custom_call.1} parent=135 // pred_region
          %2501 = vsyncadd %s2493, 0
          %s2502 = smul.addr %s75, 4
          %s2503 = smul.addr %s2502, 8
          %s2504 = scalar_lea.hbm %s59, %s2503
          %s2505 = sshll.u32 %s2496, 4
          %s2506 = int_to_ptr.vmem [resolvable:$true] %s2505
          %s2507 = sshll.u32 %s2504, 4
          %s2508 = int_to_ptr.hbm [resolvable:$true] %s2507
          %2513 = dma.vmem_to_hbm [thread:$0]  %s2506, 512, %s2508, %s2493, 256, 256, 16
        $region152: #{tpu_custom_call.1} parent=135 // pred_fallthru
          _
      $region136: #{tpu_custom_call.1} parent=5 // pred_fallthru
        _
      %p2514 = scmp.le.s32.totalorder 2, %s70
      // Predicated region
      $region153: #{tpu_custom_call.1} parent=5 // pred_check
        %p2515 = pneg %p2514
      $region154: #{tpu_custom_call.1} parent=5 // pred_check_branch
        %2517 = sbr.rel (%p2515) target = $region156
      $region155: #{tpu_custom_call.1} parent=5 // pred_region
        %s2518 = ssub.s32 %s70, 2
        // Predicated region
        $region157: #{tpu_custom_call.1} parent=155 // pred_check
          %p2519 = pneg %p718
        $region158: #{tpu_custom_call.1} parent=155 // pred_check_branch
          %2521 = sbr.rel (%p2519) target = $region160
        $region159: #{tpu_custom_call.1} parent=155 // pred_region
          %s2522 = sand.u32 %s703, 1
          %s2523 = scalar_lea.sflag [#allocation4], %s2522
          %s2524 = sand.u32 %s703, 1
          %s2525 = smul.addr %s2524, 32
          %s2526 = scalar_lea.vmem [#allocation8], %s2525
          %2528 = dma.done %s2523, 512
        $region160: #{tpu_custom_call.1} parent=155 // pred_fallthru
          _
      $region156: #{tpu_custom_call.1} parent=5 // pred_fallthru
        _
    $region6: #{tpu_custom_call.1} parent=1 // loop_footer
      %s74 = sadd.s32 1, %s70
    $region7: #{tpu_custom_call.1} parent=1 // loop_footer_branch
      %69 = sbr.rel target = $region3
    $region8: #{tpu_custom_call.1} parent=1 // loop_exit
      _
    %2529 = vsyncpa [#allocation3], 1
    %s2530 = scalar_lea.sflag [#allocation3], 1
    %2531 = vsyncpa %s2530, 1
    %2532 = vsyncpa [#allocation6], 1
    %2533 = vsyncpa [#allocation4], 1
    %s2534 = scalar_lea.sflag [#allocation4], 1
    %2535 = vsyncpa %s2534, 1

</llo_original>
